<compile_context>
chip_gen: v6e
topology: v6e:2x2x1
jax: 0.10.0
libtpu: 0.0.40
codegen_flags: <defaults>
</compile_context>

<pallas_src>
import jax
import jax.numpy as jnp
import numpy as np
from jax.experimental import pallas as pl
from jax.experimental.pallas import tpu as pltpu

C_HID = 512               # trans_layer output channels (hard-coded in the module)
REDUCTION = 16            # ChannelAtt reduction
C_RED = C_HID // REDUCTION
BN_EPS = 1e-5
LANE = 128


def _choose_batch_tile(B, max_tile=8):
    """Largest divisor tile <= max_tile that still leaves >= 2 grid steps (so both
    v7x TensorCores get work); degenerates gracefully for tiny batches."""
    best = 1
    for bt in range(1, min(B, max_tile) + 1):
        if B % bt == 0 and (B // bt >= 2 or B == 1):
            best = bt
    return best


def _make_kernel(B_TILE, HW, KKC_PAD, C_OUT):
    def kernel(patch_ref, wc_ref, s_ref, b_ref, w1_ref, b1_ref,
               w2_ref, b2_ref, wpT_ref, m_ref, x1_ref, map_ref):
        # --- trans_layer conv (bias=False): ONE im2col matmul over the whole batch
        #     tile.  (B_TILE*HW, KKC_PAD) bf16 @ (KKC_PAD, 512) bf16 -> f32 acc.
        patches = patch_ref[...].reshape(B_TILE * HW, KKC_PAD)
        acc = jnp.dot(patches, wc_ref[...],
                      preferred_element_type=jnp.float32)            # (BT*HW, 512)
        acc3 = acc.reshape(B_TILE, HW, C_HID)                        # layout-free split

        # --- eval-mode BN folded to scale/shift; only the pooled statistic needs it
        #     before the gate: mean(acc*s + b) = mean(acc)*s + b.
        s = s_ref[...]                                               # (1, 512)
        b = b_ref[...]                                               # (1, 512)
        pooled = jnp.mean(acc3, axis=1) * s + b                      # (B_TILE, 512)

        # --- ChannelAtt MLP, batched over B_TILE items (tiny f32 matmuls).
        h1 = jnp.maximum(
            jnp.dot(pooled, w1_ref[...], preferred_element_type=jnp.float32)
            + b1_ref[...], 0.0)                                      # (B_TILE, C_RED)
        att = jax.nn.sigmoid(
            jnp.dot(h1, w2_ref[...], preferred_element_type=jnp.float32)
            + b2_ref[...])                                           # (B_TILE, 512)

        # --- BN + attention as a lane-aligned VPU scale of acc (no XLU transpose of
        #     the (HW,512) accumulator); BN-shift folded into a per-item bias.
        sa = s * att                                                 # (B_TILE, 512)
        ba = b * att                                                 # (B_TILE, 512)
        wpT = wpT_ref[...]                                           # (512, C_OUT) f32
        f = (acc3 * sa[:, None, :]).astype(jnp.bfloat16)             # (BT, HW, 512)
        bias = jnp.dot(ba, wpT, preferred_element_type=jnp.float32)  # (B_TILE, C_OUT)

        # --- 1x1 pred conv: clean K=512 contraction, stationary small bf16 RHS.
        logits = jnp.dot(f.reshape(B_TILE * HW, C_HID),
                         wpT.astype(jnp.bfloat16),
                         preferred_element_type=jnp.float32)         # (BT*HW, C_OUT)
        logits = logits.reshape(B_TILE, HW, C_OUT) + bias[:, None, :]

        # --- sigmoid, mask (lane broadcast from the size-1 lane), spatial sum.
        p = jax.nn.sigmoid(logits) * m_ref[...]                      # (BT, HW, C_OUT)
        map_ref[...] = p
        x1_ref[...] = jnp.sum(p, axis=1, keepdims=True)              # (BT, 1, C_OUT)

    return kernel


def counting_decoder_forward(x_nchw, mask_nchw, params, kernel_size, batch_tile=None):
    B, C_IN, H, W = x_nchw.shape
    K = kernel_size
    pad = K // 2
    HW = H * W
    KKC = K * K * C_IN
    KKC_PAD = ((KKC + LANE - 1) // LANE) * LANE                      # dense lane dim
    C_OUT = params['w_pred'].shape[0]
    B_TILE = batch_tile if batch_tile is not None else _choose_batch_tile(B)
    assert B % B_TILE == 0

    # --- im2col in the wrapper (layout plumbing handled by XLA), zero-padded to a
    #     full 128-lane contraction dim.
    x_nhwc = jnp.transpose(x_nchw.astype(jnp.float32), (0, 2, 3, 1))
    x_pad = jnp.pad(x_nhwc, ((0, 0), (pad, pad), (pad, pad), (0, 0)))
    patches = jnp.concatenate(
        [x_pad[:, dy:dy + H, dx:dx + W, :] for dy in range(K) for dx in range(K)],
        axis=-1).reshape(B, HW, KKC)
    patches = jnp.pad(patches, ((0, 0), (0, 0), (0, KKC_PAD - KKC))).astype(jnp.bfloat16)

    # Conv weight (C_HID, Cin, K, K) -> (K*K*Cin, C_HID), padded to match patches.
    w_conv = jnp.transpose(params['w_conv'], (2, 3, 1, 0)).reshape(KKC, C_HID)
    w_conv = jnp.pad(w_conv, ((0, KKC_PAD - KKC), (0, 0))).astype(jnp.bfloat16)

    # Fold eval-mode BatchNorm into per-channel scale / shift (row vectors).
    bn_s = (params['bn_gamma'] / jnp.sqrt(params['bn_var'] + BN_EPS)).reshape(1, C_HID)
    bn_b = (params['bn_beta'] - params['bn_mean'] * bn_s[0]).reshape(1, C_HID)

    w1 = params['w_fc1']
    b1 = params['b_fc1'].reshape(1, C_RED)
    w2 = params['w_fc2']
    b2 = params['b_fc2'].reshape(1, C_HID)
    wpT = jnp.transpose(params['w_pred'][:, :, 0, 0])                # (512, C_OUT)

    # Mask (B,1,H,W) -> (B, HW, 1): HW on sublanes matches the (HW, C_OUT) logits tile.
    mask = mask_nchw.astype(jnp.float32).reshape(B, HW, 1)

    kernel = _make_kernel(B_TILE, HW, KKC_PAD, C_OUT)

    def _wspec(shape):
        # Constant-index weights are fetched once; single-buffer them to halve their
        # VMEM reservation (matters under v7x's 64 MiB VMEM at real Cin).
        return pl.BlockSpec(shape, lambda b: (0, 0), pipeline_mode=pl.Buffered(1))

    grid_spec = pltpu.PrefetchScalarGridSpec(
        num_scalar_prefetch=0,
        grid=(B // B_TILE,),
        in_specs=[
            pl.BlockSpec((B_TILE, HW, KKC_PAD), lambda b: (b, 0, 0)),  # im2col patches
            _wspec((KKC_PAD, C_HID)),                                  # conv weight
            _wspec((1, C_HID)),                                        # bn scale
            _wspec((1, C_HID)),                                        # bn shift
            _wspec((C_HID, C_RED)),                                    # fc1 W
            _wspec((1, C_RED)),                                        # fc1 b
            _wspec((C_RED, C_HID)),                                    # fc2 W
            _wspec((1, C_HID)),                                        # fc2 b
            _wspec((C_HID, C_OUT)),                                    # pred W^T
            pl.BlockSpec((B_TILE, HW, 1), lambda b: (b, 0, 0)),        # mask
        ],
        out_specs=[
            pl.BlockSpec((B_TILE, 1, C_OUT), lambda b: (b, 0, 0)),     # counts x1
            pl.BlockSpec((B_TILE, HW, C_OUT), lambda b: (b, 0, 0)),    # density map
        ],
    )

    x1, p_map = pl.pallas_call(
        kernel,
        out_shape=(jax.ShapeDtypeStruct((B, 1, C_OUT), jnp.float32),
                   jax.ShapeDtypeStruct((B, HW, C_OUT), jnp.float32)),
        grid_spec=grid_spec,
        compiler_params=pltpu.CompilerParams(
            dimension_semantics=("parallel",),        # batch tiles are independent
            vmem_limit_bytes=64 * 1024 * 1024),       # explicit; <= physical on all gens
    )(patches, w_conv, bn_s, bn_b, w1, b1, w2, b2, wpT, mask)

    # Small wrapper-side transpose of the (HW, C_OUT) output -> NCHW; this replaces
    # the per-step XLU transpose of the big (HW, 512) accumulator.
    p_map = jnp.transpose(p_map, (0, 2, 1)).reshape(B, C_OUT, H, W)
    return x1.reshape(B, C_OUT), p_map


def reference_forward(x, mask, params, kernel_size):
    """Pure-JAX NCHW reference mirroring the PyTorch forward (eval-mode BN)."""
    pad = kernel_size // 2
    y = jax.lax.conv_general_dilated(
        x, params['w_conv'], window_strides=(1, 1),
        padding=[(pad, pad), (pad, pad)],
        dimension_numbers=('NCHW', 'OIHW', 'NCHW'))
    scale = params['bn_gamma'] / jnp.sqrt(params['bn_var'] + BN_EPS)
    shift = params['bn_beta'] - params['bn_mean'] * scale
    y = y * scale[None, :, None, None] + shift[None, :, None, None]
    pooled = y.mean(axis=(2, 3))                                     # (B, 512)
    h = jnp.maximum(pooled @ params['w_fc1'] + params['b_fc1'], 0.0)
    att = jax.nn.sigmoid(h @ params['w_fc2'] + params['b_fc2'])
    y = y * att[:, :, None, None]
    wp = params['w_pred'][:, :, 0, 0]                                # (C_OUT, 512)
    p = jax.nn.sigmoid(jnp.einsum('bchw,oc->bohw', y, wp))
    p = p * mask
    B = x.shape[0]
    C_OUT = wp.shape[0]
    x1 = p.reshape(B, C_OUT, -1).sum(-1)
    return x1, p


if __name__ == "__main__":
    B, C_IN, H, W = 2, 4, 16, 16
    C_OUT = 8
    K = 3

    key = jax.random.PRNGKey(0)
    ks = jax.random.split(key, 10)
    params = {
        'w_conv':  jax.random.normal(ks[0], (C_HID, C_IN, K, K), jnp.float32) * 0.1,
        'bn_gamma': 1.0 + 0.1 * jax.random.normal(ks[1], (C_HID,), jnp.float32),
        'bn_beta':  0.1 * jax.random.normal(ks[2], (C_HID,), jnp.float32),
        'bn_mean':  0.05 * jax.random.normal(ks[3], (C_HID,), jnp.float32),
        'bn_var':   1.0 + 0.2 * jax.random.uniform(ks[4], (C_HID,), jnp.float32),
        'w_fc1':   jax.random.normal(ks[5], (C_HID, C_RED), jnp.float32) * 0.05,
        'b_fc1':   0.01 * jax.random.normal(ks[6], (C_RED,), jnp.float32),
        'w_fc2':   jax.random.normal(ks[7], (C_RED, C_HID), jnp.float32) * 0.05,
        'b_fc2':   0.01 * jax.random.normal(ks[8], (C_HID,), jnp.float32),
        'w_pred':  jax.random.normal(ks[9], (C_OUT, C_HID, 1, 1), jnp.float32) * 0.05,
    }

    kx, km = jax.random.split(jax.random.PRNGKey(42))
    x = jax.random.normal(kx, (B, C_IN, H, W), jnp.float32)
    mask = (jax.random.uniform(km, (B, 1, H, W)) > 0.2).astype(jnp.float32)

    x1, p_map = counting_decoder_forward(x, mask, params, K)
    jax.block_until_ready((x1, p_map))

    x1_ref, p_ref = reference_forward(x, mask, params, K)
    # bf16 MXU operands (conv + pred matmuls) with f32 accumulation -> ~1e-2 tolerance.
    np.testing.assert_allclose(np.asarray(x1), np.asarray(x1_ref), rtol=1e-2, atol=5e-3)
    np.testing.assert_allclose(np.asarray(p_map), np.asarray(p_ref), rtol=1e-2, atol=5e-3)

    print("KERNEL_OK")
</pallas_src>

<mosaic_0001>
module attributes {stable_mosaic.version = 11 : i64} {
  func.func @kernel(%arg0: i32, %arg1: memref<1x256x128xbf16, #tpu.memory_space<vmem>>, %arg2: memref<128x512xbf16, #tpu.memory_space<vmem>>, %arg3: memref<1x512xf32, #tpu.memory_space<vmem>>, %arg4: memref<1x512xf32, #tpu.memory_space<vmem>>, %arg5: memref<512x32xf32, #tpu.memory_space<vmem>>, %arg6: memref<1x32xf32, #tpu.memory_space<vmem>>, %arg7: memref<32x512xf32, #tpu.memory_space<vmem>>, %arg8: memref<1x512xf32, #tpu.memory_space<vmem>>, %arg9: memref<512x8xf32, #tpu.memory_space<vmem>>, %arg10: memref<1x256x1xf32, #tpu.memory_space<vmem>>, %arg11: memref<1x1x8xf32, #tpu.memory_space<vmem>>, %arg12: memref<1x256x8xf32, #tpu.memory_space<vmem>>) attributes {dimension_semantics = [#tpu.dimension_semantics<parallel>], iteration_bounds = array<i64: 2>, scalar_prefetch = 0 : i64, scratch_operands = 0 : i64, tpu.core_type = #tpu.core_type<tc>, window_params = [{transform_indices = @transform_0, window_bounds = array<i64: 1, 256, 128>}, {pipeline_mode = #tpu.pipeline_mode<synchronous>, transform_indices = @transform_1, window_bounds = array<i64: 128, 512>}, {pipeline_mode = #tpu.pipeline_mode<synchronous>, transform_indices = @transform_2, window_bounds = array<i64: 1, 512>}, {pipeline_mode = #tpu.pipeline_mode<synchronous>, transform_indices = @transform_3, window_bounds = array<i64: 1, 512>}, {pipeline_mode = #tpu.pipeline_mode<synchronous>, transform_indices = @transform_4, window_bounds = array<i64: 512, 32>}, {pipeline_mode = #tpu.pipeline_mode<synchronous>, transform_indices = @transform_5, window_bounds = array<i64: 1, 32>}, {pipeline_mode = #tpu.pipeline_mode<synchronous>, transform_indices = @transform_6, window_bounds = array<i64: 32, 512>}, {pipeline_mode = #tpu.pipeline_mode<synchronous>, transform_indices = @transform_7, window_bounds = array<i64: 1, 512>}, {pipeline_mode = #tpu.pipeline_mode<synchronous>, transform_indices = @transform_8, window_bounds = array<i64: 512, 8>}, {transform_indices = @transform_9, window_bounds = array<i64: 1, 256, 1>}, {transform_indices = @transform_10, window_bounds = array<i64: 1, 1, 8>}, {transform_indices = @transform_11, window_bounds = array<i64: 1, 256, 8>}]} {
    %c0 = arith.constant 0 : index
    %c0_0 = arith.constant 0 : index
    %c0_1 = arith.constant 0 : index
    %0 = vector.load %arg1[%c0, %c0_0, %c0_1] : memref<1x256x128xbf16, #tpu.memory_space<vmem>>, vector<1x256x128xbf16>
    %1 = vector.shape_cast %0 : vector<1x256x128xbf16> to vector<256x128xbf16>
    %c0_2 = arith.constant 0 : index
    %c0_3 = arith.constant 0 : index
    %2 = vector.load %arg2[%c0_2, %c0_3] : memref<128x512xbf16, #tpu.memory_space<vmem>>, vector<128x512xbf16>
    %cst = arith.constant dense<0.000000e+00> : vector<256x512xf32>
    %3 = tpu.matmul %1, %2, %cst {dimension_numbers = #tpu.dot_dimension_numbers<[1], [0], [0], [1], [0, 0, 1, 1], [], []>} : vector<256x128xbf16>, vector<128x512xbf16>, vector<256x512xf32> -> vector<256x512xf32>
    %4 = vector.shape_cast %3 : vector<256x512xf32> to vector<1x256x512xf32>
    %c0_4 = arith.constant 0 : index
    %c0_5 = arith.constant 0 : index
    %5 = vector.load %arg3[%c0_4, %c0_5] : memref<1x512xf32, #tpu.memory_space<vmem>>, vector<1x512xf32>
    %c0_6 = arith.constant 0 : index
    %c0_7 = arith.constant 0 : index
    %6 = vector.load %arg4[%c0_6, %c0_7] : memref<1x512xf32, #tpu.memory_space<vmem>>, vector<1x512xf32>
    %cst_8 = arith.constant dense<0.000000e+00> : vector<1x512xf32>
    %7 = vector.multi_reduction <add>, %4, %cst_8 [1] : vector<1x256x512xf32> to vector<1x512xf32>
    %cst_9 = arith.constant 2.560000e+02 : f32
    %8 = vector.broadcast %cst_9 : f32 to vector<1x512xf32>
    %9 = arith.divf %7, %8 : vector<1x512xf32>
    %10 = arith.mulf %9, %5 : vector<1x512xf32>
    %11 = arith.addf %10, %6 : vector<1x512xf32>
    %c0_10 = arith.constant 0 : index
    %c0_11 = arith.constant 0 : index
    %12 = vector.load %arg5[%c0_10, %c0_11] : memref<512x32xf32, #tpu.memory_space<vmem>>, vector<512x32xf32>
    %cst_12 = arith.constant dense<0.000000e+00> : vector<1x32xf32>
    %13 = tpu.matmul %11, %12, %cst_12 {dimension_numbers = #tpu.dot_dimension_numbers<[1], [0], [0], [1], [0, 0, 1, 1], [], []>} : vector<1x512xf32>, vector<512x32xf32>, vector<1x32xf32> -> vector<1x32xf32>
    %c0_13 = arith.constant 0 : index
    %c0_14 = arith.constant 0 : index
    %14 = vector.load %arg6[%c0_13, %c0_14] : memref<1x32xf32, #tpu.memory_space<vmem>>, vector<1x32xf32>
    %15 = arith.addf %13, %14 : vector<1x32xf32>
    %cst_15 = arith.constant 0.000000e+00 : f32
    %16 = vector.broadcast %cst_15 : f32 to vector<1x32xf32>
    %17 = arith.maximumf %15, %16 : vector<1x32xf32>
    %c0_16 = arith.constant 0 : index
    %c0_17 = arith.constant 0 : index
    %18 = vector.load %arg7[%c0_16, %c0_17] : memref<32x512xf32, #tpu.memory_space<vmem>>, vector<32x512xf32>
    %cst_18 = arith.constant dense<0.000000e+00> : vector<1x512xf32>
    %19 = tpu.matmul %17, %18, %cst_18 {dimension_numbers = #tpu.dot_dimension_numbers<[1], [0], [0], [1], [0, 0, 1, 1], [], []>} : vector<1x32xf32>, vector<32x512xf32>, vector<1x512xf32> -> vector<1x512xf32>
    %c0_19 = arith.constant 0 : index
    %c0_20 = arith.constant 0 : index
    %20 = vector.load %arg8[%c0_19, %c0_20] : memref<1x512xf32, #tpu.memory_space<vmem>>, vector<1x512xf32>
    %21 = arith.addf %19, %20 : vector<1x512xf32>
    %22 = arith.negf %21 : vector<1x512xf32>
    %23 = math.exp %22 : vector<1x512xf32>
    %cst_21 = arith.constant 1.000000e+00 : f32
    %24 = vector.broadcast %cst_21 : f32 to vector<1x512xf32>
    %25 = arith.addf %24, %23 : vector<1x512xf32>
    %26 = arith.divf %24, %25 : vector<1x512xf32>
    %27 = arith.mulf %5, %26 : vector<1x512xf32>
    %28 = arith.mulf %6, %26 : vector<1x512xf32>
    %c0_22 = arith.constant 0 : index
    %c0_23 = arith.constant 0 : index
    %29 = vector.load %arg9[%c0_22, %c0_23] : memref<512x8xf32, #tpu.memory_space<vmem>>, vector<512x8xf32>
    %30 = vector.shape_cast %27 : vector<1x512xf32> to vector<1x1x512xf32>
    %31 = vector.broadcast %30 : vector<1x1x512xf32> to vector<1x256x512xf32>
    %32 = arith.mulf %4, %31 : vector<1x256x512xf32>
    %33 = arith.truncf %32 : vector<1x256x512xf32> to vector<1x256x512xbf16>
    %cst_24 = arith.constant dense<0.000000e+00> : vector<1x8xf32>
    %34 = tpu.matmul %28, %29, %cst_24 {dimension_numbers = #tpu.dot_dimension_numbers<[1], [0], [0], [1], [0, 0, 1, 1], [], []>} : vector<1x512xf32>, vector<512x8xf32>, vector<1x8xf32> -> vector<1x8xf32>
    %35 = vector.shape_cast %33 : vector<1x256x512xbf16> to vector<256x512xbf16>
    %36 = arith.truncf %29 : vector<512x8xf32> to vector<512x8xbf16>
    %cst_25 = arith.constant dense<0.000000e+00> : vector<256x8xf32>
    %37 = tpu.matmul %35, %36, %cst_25 {dimension_numbers = #tpu.dot_dimension_numbers<[1], [0], [0], [1], [0, 0, 1, 1], [], []>} : vector<256x512xbf16>, vector<512x8xbf16>, vector<256x8xf32> -> vector<256x8xf32>
    %38 = vector.shape_cast %37 : vector<256x8xf32> to vector<1x256x8xf32>
    %39 = vector.shape_cast %34 : vector<1x8xf32> to vector<1x1x8xf32>
    %40 = vector.broadcast %39 : vector<1x1x8xf32> to vector<1x256x8xf32>
    %41 = arith.addf %38, %40 : vector<1x256x8xf32>
    %42 = arith.negf %41 : vector<1x256x8xf32>
    %43 = math.exp %42 : vector<1x256x8xf32>
    %cst_26 = arith.constant 1.000000e+00 : f32
    %44 = vector.broadcast %cst_26 : f32 to vector<1x256x8xf32>
    %45 = arith.addf %44, %43 : vector<1x256x8xf32>
    %46 = arith.divf %44, %45 : vector<1x256x8xf32>
    %c0_27 = arith.constant 0 : index
    %c0_28 = arith.constant 0 : index
    %c0_29 = arith.constant 0 : index
    %47 = vector.load %arg10[%c0_27, %c0_28, %c0_29] : memref<1x256x1xf32, #tpu.memory_space<vmem>>, vector<1x256x1xf32>
    %48 = vector.broadcast %47 : vector<1x256x1xf32> to vector<1x256x8xf32>
    %49 = arith.mulf %46, %48 : vector<1x256x8xf32>
    %c0_30 = arith.constant 0 : index
    %c0_31 = arith.constant 0 : index
    %c0_32 = arith.constant 0 : index
    %50 = vector.load %arg12[%c0_30, %c0_31, %c0_32] : memref<1x256x8xf32, #tpu.memory_space<vmem>>, vector<1x256x8xf32>
    tpu.vector_store %arg12[%c0_30, %c0_31, %c0_32], %49 {strides = array<i32>} : memref<1x256x8xf32, #tpu.memory_space<vmem>>, vector<1x256x8xf32>,
    %cst_33 = arith.constant dense<0.000000e+00> : vector<1x8xf32>
    %51 = vector.multi_reduction <add>, %49, %cst_33 [1] : vector<1x256x8xf32> to vector<1x8xf32>
    %52 = vector.shape_cast %51 : vector<1x8xf32> to vector<1x1x8xf32>
    %c0_34 = arith.constant 0 : index
    %c0_35 = arith.constant 0 : index
    %c0_36 = arith.constant 0 : index
    %53 = vector.load %arg11[%c0_34, %c0_35, %c0_36] : memref<1x1x8xf32, #tpu.memory_space<vmem>>, vector<1x1x8xf32>
    tpu.vector_store %arg11[%c0_34, %c0_35, %c0_36], %52 {strides = array<i32>} : memref<1x1x8xf32, #tpu.memory_space<vmem>>, vector<1x1x8xf32>,
    return
  }
  func.func @transform_0(%arg0: i32) -> (i32, i32, i32) {
    %c0_i32 = arith.constant 0 : i32
    %c0_i32_0 = arith.constant 0 : i32
    %c0_i32_1 = arith.constant 0 : i32
    return %arg0, %c0_i32, %c0_i32_0 : i32, i32, i32
  }
  func.func @transform_1(%arg0: i32) -> (i32, i32) {
    %c0_i32 = arith.constant 0 : i32
    %c0_i32_0 = arith.constant 0 : i32
    %c0_i32_1 = arith.constant 0 : i32
    return %c0_i32, %c0_i32_0 : i32, i32
  }
  func.func @transform_2(%arg0: i32) -> (i32, i32) {
    %c0_i32 = arith.constant 0 : i32
    %c0_i32_0 = arith.constant 0 : i32
    %c0_i32_1 = arith.constant 0 : i32
    return %c0_i32, %c0_i32_0 : i32, i32
  }
  func.func @transform_3(%arg0: i32) -> (i32, i32) {
    %c0_i32 = arith.constant 0 : i32
    %c0_i32_0 = arith.constant 0 : i32
    %c0_i32_1 = arith.constant 0 : i32
    return %c0_i32, %c0_i32_0 : i32, i32
  }
  func.func @transform_4(%arg0: i32) -> (i32, i32) {
    %c0_i32 = arith.constant 0 : i32
    %c0_i32_0 = arith.constant 0 : i32
    %c0_i32_1 = arith.constant 0 : i32
    return %c0_i32, %c0_i32_0 : i32, i32
  }
  func.func @transform_5(%arg0: i32) -> (i32, i32) {
    %c0_i32 = arith.constant 0 : i32
    %c0_i32_0 = arith.constant 0 : i32
    %c0_i32_1 = arith.constant 0 : i32
    return %c0_i32, %c0_i32_0 : i32, i32
  }
  func.func @transform_6(%arg0: i32) -> (i32, i32) {
    %c0_i32 = arith.constant 0 : i32
    %c0_i32_0 = arith.constant 0 : i32
    %c0_i32_1 = arith.constant 0 : i32
    return %c0_i32, %c0_i32_0 : i32, i32
  }
  func.func @transform_7(%arg0: i32) -> (i32, i32) {
    %c0_i32 = arith.constant 0 : i32
    %c0_i32_0 = arith.constant 0 : i32
    %c0_i32_1 = arith.constant 0 : i32
    return %c0_i32, %c0_i32_0 : i32, i32
  }
  func.func @transform_8(%arg0: i32) -> (i32, i32) {
    %c0_i32 = arith.constant 0 : i32
    %c0_i32_0 = arith.constant 0 : i32
    %c0_i32_1 = arith.constant 0 : i32
    return %c0_i32, %c0_i32_0 : i32, i32
  }
  func.func @transform_9(%arg0: i32) -> (i32, i32, i32) {
    %c0_i32 = arith.constant 0 : i32
    %c0_i32_0 = arith.constant 0 : i32
    %c0_i32_1 = arith.constant 0 : i32
    return %arg0, %c0_i32, %c0_i32_0 : i32, i32, i32
  }
  func.func @transform_10(%arg0: i32) -> (i32, i32, i32) {
    %c0_i32 = arith.constant 0 : i32
    %c0_i32_0 = arith.constant 0 : i32
    %c0_i32_1 = arith.constant 0 : i32
    return %arg0, %c0_i32, %c0_i32_0 : i32, i32, i32
  }
  func.func @transform_11(%arg0: i32) -> (i32, i32, i32) {
    %c0_i32 = arith.constant 0 : i32
    %c0_i32_0 = arith.constant 0 : i32
    %c0_i32_1 = arith.constant 0 : i32
    return %arg0, %c0_i32, %c0_i32_0 : i32, i32, i32
  }
}

</mosaic_0001>

<llo_original>
// kernel: tpu_custom_call.1
$region0: #{tpu_custom_call.1}
  #allocation0 [shape = 'u32[]', space=smem, size = 0x4, offset = 0x4, fixed_abs, tag = 'smem constant byte address 0x4 - core index']
  #allocation1 [shape = 'u32[144,128]{1,0:T(1,128)}', space=vmem, size = 0x12000, scoped, tag = 'internal scratch']
  %s0 = inlined_call_operand.vmem [shape: bf16[2,256,128], index: 0, kind: input, shape index: {}]
  %s1 = inlined_call_operand.vmem [shape: bf16[128,512], index: 1, kind: input, shape index: {}]
  %s2 = inlined_call_operand.vmem [shape: f32[1,512], index: 2, kind: input, shape index: {}]
  %s3 = inlined_call_operand.vmem [shape: f32[1,512], index: 3, kind: input, shape index: {}]
  %s4 = inlined_call_operand.vmem [shape: f32[512,32], index: 4, kind: input, shape index: {}]
  %s5 = inlined_call_operand.vmem [shape: f32[1,32], index: 5, kind: input, shape index: {}]
  %s6 = inlined_call_operand.vmem [shape: f32[32,512], index: 6, kind: input, shape index: {}]
  %s7 = inlined_call_operand.vmem [shape: f32[1,512], index: 7, kind: input, shape index: {}]
  %s8 = inlined_call_operand.vmem [shape: f32[512,8], index: 8, kind: input, shape index: {}]
  %s9 = inlined_call_operand.vmem [shape: f32[2,256,1], index: 9, kind: input, shape index: {}]
  %s10 = inlined_call_operand.hbm [shape: f32[2,1,8], index: 10, kind: output, shape index: {0}]
  %s11 = inlined_call_operand.vmem [shape: f32[2,256,8], index: 11, kind: output, shape index: {1}]
  %12 = xla_tuple %s10, %s11
  %s13 = sld [smem:[#allocation0]]
  $region81: #{tpu_custom_call.1} parent=0
    _
  %s15 = ssub.s32 1, %s13
  %s16 = scalar_select 0, %s15, %s13
  $region1: #{tpu_custom_call.1} parent=0
    #allocation2 [shape = 'u8[1024]{0}', space=vmem, size = 0x400, scoped, tag = 'output window, operand 0']
    #allocation3 [shape = 's32[2]{0}', space=sflag, size = 0x8, scoped, tag = 'scoped memory for tpu_custom_call.1']
    %17 = vsyncpa [#allocation3], 0
    %s18 = scalar_lea.sflag [#allocation3], 1
    %19 = vsyncpa %s18, 0
    loop: start=0, step=1, limit=4
    $region2: #{tpu_custom_call.1} parent=1 // loop_pre_header
      _
    $region3: #{tpu_custom_call.1} parent=1 // loop_header
      %s21 = sphi 0, %s25
      %p22 = scmp.ge.s32.totalorder %s21, 4
      %s31 = sphi 0, %s33
      %s34 = sphi 0, %s31
      %s35 = sphi 0, %s34
      %s51 = sphi 0, %s35
      %s55 = sphi 0, %s55
      %s57 = sphi 0, %s55
      %s58 = sphi 0, %s57
      %s72 = sphi 0, %s58
      %s76 = sphi 0, %s76
      %s78 = sphi 0, %s76
      %s79 = sphi 0, %s78
      %s93 = sphi 0, %s79
      %s97 = sphi 0, %s97
      %s99 = sphi 0, %s97
      %s100 = sphi 0, %s99
      %s114 = sphi 0, %s100
      %s118 = sphi 0, %s118
      %s120 = sphi 0, %s118
      %s121 = sphi 0, %s120
      %s135 = sphi 0, %s121
      %s139 = sphi 0, %s139
      %s141 = sphi 0, %s139
      %s142 = sphi 0, %s141
      %s156 = sphi 0, %s142
      %s160 = sphi 0, %s160
      %s162 = sphi 0, %s160
      %s163 = sphi 0, %s162
      %s177 = sphi 0, %s163
      %s181 = sphi 0, %s181
      %s183 = sphi 0, %s181
      %s184 = sphi 0, %s183
      %s198 = sphi 0, %s184
      %s202 = sphi 0, %s202
      %s204 = sphi 0, %s202
      %s205 = sphi 0, %s204
      %s219 = sphi 0, %s205
      %s225 = sphi 0, %s227
      %s228 = sphi 0, %s225
      %s229 = sphi 0, %s228
      %s245 = sphi 0, %s229
      %s251 = sphi 0, %s253
      %s254 = sphi 0, %s251
      %s255 = sphi 0, %s254
      %s271 = sphi 0, %s255
      %s277 = sphi 0, %s279
      %s280 = sphi 0, %s277
      %s281 = sphi 0, %s280
      %s297 = sphi 0, %s281
    $region4: #{tpu_custom_call.1} parent=1 // loop_header_branch
      %24 = sbr.rel (%p22) target = $region8
    $region5: #{tpu_custom_call.1} parent=1 // loop_body
      %s26 = ssub.s32 %s21, 1
      %s27 = ssub.s32 %s21, 2
      %s28 = sadd.s32 %s21, 1
      %s29 = ssub.s32 %s21, %s28
      %p30 = scmp.eq.s32.totalorder %s29, 0
      %s32 = sadd.s32 %s31, 1
      %s33 = scalar_select %p30, %s31, %s32
      %p36 = pneg %p30
      %p37 = scmp.eq.s32.totalorder %s21, 1
      %p38 = por %p36, %p37
      %p39 = scmp.ne.s32.totalorder %s31, %s34
      %p40 = scmp.eq.s32.totalorder %s21, 0
      %p41 = por %p39, %p40
      %p42 = scmp.ne.s32.totalorder %s31, %s34
      %p43 = scmp.eq.s32.totalorder %s26, 1
      %p44 = por %p42, %p43
      %p45 = scmp.ne.s32.totalorder %s34, %s35
      %p46 = scmp.eq.s32.totalorder %s26, 0
      %p47 = por %p45, %p46
      %p48 = scmp.ne.s32.totalorder %s34, %s35
      %p49 = scmp.eq.s32.totalorder %s27, 1
      %p50 = por %p48, %p49
      %p52 = scmp.ne.s32.totalorder %s35, %s51
      %p53 = scmp.eq.s32.totalorder %s27, 0
      %p54 = por %p52, %p53
      %s56 = sadd.s32 %s55, 1
      %p59 = scmp.eq.s32.totalorder %s21, 1
      %p60 = scmp.ne.s32.totalorder %s55, %s57
      %p61 = scmp.eq.s32.totalorder %s21, 0
      %p62 = por %p60, %p61
      %p63 = scmp.ne.s32.totalorder %s55, %s57
      %p64 = scmp.eq.s32.totalorder %s26, 1
      %p65 = por %p63, %p64
      %p66 = scmp.ne.s32.totalorder %s57, %s58
      %p67 = scmp.eq.s32.totalorder %s26, 0
      %p68 = por %p66, %p67
      %p69 = scmp.ne.s32.totalorder %s57, %s58
      %p70 = scmp.eq.s32.totalorder %s27, 1
      %p71 = por %p69, %p70
      %p73 = scmp.ne.s32.totalorder %s58, %s72
      %p74 = scmp.eq.s32.totalorder %s27, 0
      %p75 = por %p73, %p74
      %s77 = sadd.s32 %s76, 1
      %p80 = scmp.eq.s32.totalorder %s21, 1
      %p81 = scmp.ne.s32.totalorder %s76, %s78
      %p82 = scmp.eq.s32.totalorder %s21, 0
      %p83 = por %p81, %p82
      %p84 = scmp.ne.s32.totalorder %s76, %s78
      %p85 = scmp.eq.s32.totalorder %s26, 1
      %p86 = por %p84, %p85
      %p87 = scmp.ne.s32.totalorder %s78, %s79
      %p88 = scmp.eq.s32.totalorder %s26, 0
      %p89 = por %p87, %p88
      %p90 = scmp.ne.s32.totalorder %s78, %s79
      %p91 = scmp.eq.s32.totalorder %s27, 1
      %p92 = por %p90, %p91
      %p94 = scmp.ne.s32.totalorder %s79, %s93
      %p95 = scmp.eq.s32.totalorder %s27, 0
      %p96 = por %p94, %p95
      %s98 = sadd.s32 %s97, 1
      %p101 = scmp.eq.s32.totalorder %s21, 1
      %p102 = scmp.ne.s32.totalorder %s97, %s99
      %p103 = scmp.eq.s32.totalorder %s21, 0
      %p104 = por %p102, %p103
      %p105 = scmp.ne.s32.totalorder %s97, %s99
      %p106 = scmp.eq.s32.totalorder %s26, 1
      %p107 = por %p105, %p106
      %p108 = scmp.ne.s32.totalorder %s99, %s100
      %p109 = scmp.eq.s32.totalorder %s26, 0
      %p110 = por %p108, %p109
      %p111 = scmp.ne.s32.totalorder %s99, %s100
      %p112 = scmp.eq.s32.totalorder %s27, 1
      %p113 = por %p111, %p112
      %p115 = scmp.ne.s32.totalorder %s100, %s114
      %p116 = scmp.eq.s32.totalorder %s27, 0
      %p117 = por %p115, %p116
      %s119 = sadd.s32 %s118, 1
      %p122 = scmp.eq.s32.totalorder %s21, 1
      %p123 = scmp.ne.s32.totalorder %s118, %s120
      %p124 = scmp.eq.s32.totalorder %s21, 0
      %p125 = por %p123, %p124
      %p126 = scmp.ne.s32.totalorder %s118, %s120
      %p127 = scmp.eq.s32.totalorder %s26, 1
      %p128 = por %p126, %p127
      %p129 = scmp.ne.s32.totalorder %s120, %s121
      %p130 = scmp.eq.s32.totalorder %s26, 0
      %p131 = por %p129, %p130
      %p132 = scmp.ne.s32.totalorder %s120, %s121
      %p133 = scmp.eq.s32.totalorder %s27, 1
      %p134 = por %p132, %p133
      %p136 = scmp.ne.s32.totalorder %s121, %s135
      %p137 = scmp.eq.s32.totalorder %s27, 0
      %p138 = por %p136, %p137
      %s140 = sadd.s32 %s139, 1
      %p143 = scmp.eq.s32.totalorder %s21, 1
      %p144 = scmp.ne.s32.totalorder %s139, %s141
      %p145 = scmp.eq.s32.totalorder %s21, 0
      %p146 = por %p144, %p145
      %p147 = scmp.ne.s32.totalorder %s139, %s141
      %p148 = scmp.eq.s32.totalorder %s26, 1
      %p149 = por %p147, %p148
      %p150 = scmp.ne.s32.totalorder %s141, %s142
      %p151 = scmp.eq.s32.totalorder %s26, 0
      %p152 = por %p150, %p151
      %p153 = scmp.ne.s32.totalorder %s141, %s142
      %p154 = scmp.eq.s32.totalorder %s27, 1
      %p155 = por %p153, %p154
      %p157 = scmp.ne.s32.totalorder %s142, %s156
      %p158 = scmp.eq.s32.totalorder %s27, 0
      %p159 = por %p157, %p158
      %s161 = sadd.s32 %s160, 1
      %p164 = scmp.eq.s32.totalorder %s21, 1
      %p165 = scmp.ne.s32.totalorder %s160, %s162
      %p166 = scmp.eq.s32.totalorder %s21, 0
      %p167 = por %p165, %p166
      %p168 = scmp.ne.s32.totalorder %s160, %s162
      %p169 = scmp.eq.s32.totalorder %s26, 1
      %p170 = por %p168, %p169
      %p171 = scmp.ne.s32.totalorder %s162, %s163
      %p172 = scmp.eq.s32.totalorder %s26, 0
      %p173 = por %p171, %p172
      %p174 = scmp.ne.s32.totalorder %s162, %s163
      %p175 = scmp.eq.s32.totalorder %s27, 1
      %p176 = por %p174, %p175
      %p178 = scmp.ne.s32.totalorder %s163, %s177
      %p179 = scmp.eq.s32.totalorder %s27, 0
      %p180 = por %p178, %p179
      %s182 = sadd.s32 %s181, 1
      %p185 = scmp.eq.s32.totalorder %s21, 1
      %p186 = scmp.ne.s32.totalorder %s181, %s183
      %p187 = scmp.eq.s32.totalorder %s21, 0
      %p188 = por %p186, %p187
      %p189 = scmp.ne.s32.totalorder %s181, %s183
      %p190 = scmp.eq.s32.totalorder %s26, 1
      %p191 = por %p189, %p190
      %p192 = scmp.ne.s32.totalorder %s183, %s184
      %p193 = scmp.eq.s32.totalorder %s26, 0
      %p194 = por %p192, %p193
      %p195 = scmp.ne.s32.totalorder %s183, %s184
      %p196 = scmp.eq.s32.totalorder %s27, 1
      %p197 = por %p195, %p196
      %p199 = scmp.ne.s32.totalorder %s184, %s198
      %p200 = scmp.eq.s32.totalorder %s27, 0
      %p201 = por %p199, %p200
      %s203 = sadd.s32 %s202, 1
      %p206 = scmp.eq.s32.totalorder %s21, 1
      %p207 = scmp.ne.s32.totalorder %s202, %s204
      %p208 = scmp.eq.s32.totalorder %s21, 0
      %p209 = por %p207, %p208
      %p210 = scmp.ne.s32.totalorder %s202, %s204
      %p211 = scmp.eq.s32.totalorder %s26, 1
      %p212 = por %p210, %p211
      %p213 = scmp.ne.s32.totalorder %s204, %s205
      %p214 = scmp.eq.s32.totalorder %s26, 0
      %p215 = por %p213, %p214
      %p216 = scmp.ne.s32.totalorder %s204, %s205
      %p217 = scmp.eq.s32.totalorder %s27, 1
      %p218 = por %p216, %p217
      %p220 = scmp.ne.s32.totalorder %s205, %s219
      %p221 = scmp.eq.s32.totalorder %s27, 0
      %p222 = por %p220, %p221
      %s223 = ssub.s32 %s21, %s28
      %p224 = scmp.eq.s32.totalorder %s223, 0
      %s226 = sadd.s32 %s225, 1
      %s227 = scalar_select %p224, %s225, %s226
      %p230 = pneg %p224
      %p231 = scmp.eq.s32.totalorder %s21, 1
      %p232 = por %p230, %p231
      %p233 = scmp.ne.s32.totalorder %s225, %s228
      %p234 = scmp.eq.s32.totalorder %s21, 0
      %p235 = por %p233, %p234
      %p236 = scmp.ne.s32.totalorder %s225, %s228
      %p237 = scmp.eq.s32.totalorder %s26, 1
      %p238 = por %p236, %p237
      %p239 = scmp.ne.s32.totalorder %s228, %s229
      %p240 = scmp.eq.s32.totalorder %s26, 0
      %p241 = por %p239, %p240
      %p242 = scmp.ne.s32.totalorder %s228, %s229
      %p243 = scmp.eq.s32.totalorder %s27, 1
      %p244 = por %p242, %p243
      %p246 = scmp.ne.s32.totalorder %s229, %s245
      %p247 = scmp.eq.s32.totalorder %s27, 0
      %p248 = por %p246, %p247
      %s249 = ssub.s32 %s21, %s28
      %p250 = scmp.eq.s32.totalorder %s249, 0
      %s252 = sadd.s32 %s251, 1
      %s253 = scalar_select %p250, %s251, %s252
      %p256 = pneg %p250
      %p257 = scmp.eq.s32.totalorder %s21, 1
      %p258 = por %p256, %p257
      %p259 = scmp.ne.s32.totalorder %s251, %s254
      %p260 = scmp.eq.s32.totalorder %s21, 0
      %p261 = por %p259, %p260
      %p262 = scmp.ne.s32.totalorder %s251, %s254
      %p263 = scmp.eq.s32.totalorder %s26, 1
      %p264 = por %p262, %p263
      %p265 = scmp.ne.s32.totalorder %s254, %s255
      %p266 = scmp.eq.s32.totalorder %s26, 0
      %p267 = por %p265, %p266
      %p268 = scmp.ne.s32.totalorder %s254, %s255
      %p269 = scmp.eq.s32.totalorder %s27, 1
      %p270 = por %p268, %p269
      %p272 = scmp.ne.s32.totalorder %s255, %s271
      %p273 = scmp.eq.s32.totalorder %s27, 0
      %p274 = por %p272, %p273
      %s275 = ssub.s32 %s21, %s28
      %p276 = scmp.eq.s32.totalorder %s275, 0
      %s278 = sadd.s32 %s277, 1
      %s279 = scalar_select %p276, %s277, %s278
      %p282 = pneg %p276
      %p283 = scmp.eq.s32.totalorder %s21, 1
      %p284 = por %p282, %p283
      %p285 = scmp.ne.s32.totalorder %s277, %s280
      %p286 = scmp.eq.s32.totalorder %s21, 0
      %p287 = por %p285, %p286
      %p288 = scmp.ne.s32.totalorder %s277, %s280
      %p289 = scmp.eq.s32.totalorder %s26, 1
      %p290 = por %p288, %p289
      %p291 = scmp.ne.s32.totalorder %s280, %s281
      %p292 = scmp.eq.s32.totalorder %s26, 0
      %p293 = por %p291, %p292
      %p294 = scmp.ne.s32.totalorder %s280, %s281
      %p295 = scmp.eq.s32.totalorder %s27, 1
      %p296 = por %p294, %p295
      %p298 = scmp.ne.s32.totalorder %s281, %s297
      %p299 = scmp.eq.s32.totalorder %s27, 0
      %p300 = por %p298, %p299
      %p301 = scmp.le.s32.totalorder 1, %s21
      %p302 = scmp.lt.s32.totalorder %s21, 3
      %p303 = pnand %p301, %p302
      %p304 = pneg %p303
      // Predicated region
      $region9: #{tpu_custom_call.1} parent=5 // pred_check
        _
      $region10: #{tpu_custom_call.1} parent=5 // pred_check_branch
        %306 = sbr.rel (%p303) target = $region12
      $region11: #{tpu_custom_call.1} parent=5 // pred_region
        %s307 = ssub.s32 %s21, 1
        // Predicated region
        $region13: #{tpu_custom_call.1} parent=11 // pred_check
          %p308 = pneg %p68
        $region14: #{tpu_custom_call.1} parent=11 // pred_check_branch
          %310 = sbr.rel (%p308) target = $region16
        $region15: #{tpu_custom_call.1} parent=11 // pred_region
          _
        $region16: #{tpu_custom_call.1} parent=11 // pred_fallthru
          _
        // Predicated region
        $region17: #{tpu_custom_call.1} parent=11 // pred_check
          %p311 = pneg %p89
        $region18: #{tpu_custom_call.1} parent=11 // pred_check_branch
          %313 = sbr.rel (%p311) target = $region20
        $region19: #{tpu_custom_call.1} parent=11 // pred_region
          _
        $region20: #{tpu_custom_call.1} parent=11 // pred_fallthru
          _
        // Predicated region
        $region21: #{tpu_custom_call.1} parent=11 // pred_check
          %p314 = pneg %p110
        $region22: #{tpu_custom_call.1} parent=11 // pred_check_branch
          %316 = sbr.rel (%p314) target = $region24
        $region23: #{tpu_custom_call.1} parent=11 // pred_region
          _
        $region24: #{tpu_custom_call.1} parent=11 // pred_fallthru
          _
        // Predicated region
        $region25: #{tpu_custom_call.1} parent=11 // pred_check
          %p317 = pneg %p131
        $region26: #{tpu_custom_call.1} parent=11 // pred_check_branch
          %319 = sbr.rel (%p317) target = $region28
        $region27: #{tpu_custom_call.1} parent=11 // pred_region
          _
        $region28: #{tpu_custom_call.1} parent=11 // pred_fallthru
          _
        // Predicated region
        $region29: #{tpu_custom_call.1} parent=11 // pred_check
          %p320 = pneg %p152
        $region30: #{tpu_custom_call.1} parent=11 // pred_check_branch
          %322 = sbr.rel (%p320) target = $region32
        $region31: #{tpu_custom_call.1} parent=11 // pred_region
          _
        $region32: #{tpu_custom_call.1} parent=11 // pred_fallthru
          _
        // Predicated region
        $region33: #{tpu_custom_call.1} parent=11 // pred_check
          %p323 = pneg %p173
        $region34: #{tpu_custom_call.1} parent=11 // pred_check_branch
          %325 = sbr.rel (%p323) target = $region36
        $region35: #{tpu_custom_call.1} parent=11 // pred_region
          _
        $region36: #{tpu_custom_call.1} parent=11 // pred_fallthru
          _
        // Predicated region
        $region37: #{tpu_custom_call.1} parent=11 // pred_check
          %p326 = pneg %p194
        $region38: #{tpu_custom_call.1} parent=11 // pred_check_branch
          %328 = sbr.rel (%p326) target = $region40
        $region39: #{tpu_custom_call.1} parent=11 // pred_region
          _
        $region40: #{tpu_custom_call.1} parent=11 // pred_fallthru
          _
        // Predicated region
        $region41: #{tpu_custom_call.1} parent=11 // pred_check
          %p329 = pneg %p215
        $region42: #{tpu_custom_call.1} parent=11 // pred_check_branch
          %331 = sbr.rel (%p329) target = $region44
        $region43: #{tpu_custom_call.1} parent=11 // pred_region
          _
        $region44: #{tpu_custom_call.1} parent=11 // pred_fallthru
          _
      $region12: #{tpu_custom_call.1} parent=5 // pred_fallthru
        _
      %p332 = scmp.lt.s32.totalorder %s21, 2
      // Predicated region
      $region45: #{tpu_custom_call.1} parent=5 // pred_check
        %p333 = pneg %p332
      $region46: #{tpu_custom_call.1} parent=5 // pred_check_branch
        %335 = sbr.rel (%p333) target = $region48
      $region47: #{tpu_custom_call.1} parent=5 // pred_region
        // Predicated region
        $region49: #{tpu_custom_call.1} parent=47 // pred_check
          %p336 = pneg %p41
        $region50: #{tpu_custom_call.1} parent=47 // pred_check_branch
          %338 = sbr.rel (%p336) target = $region52
        $region51: #{tpu_custom_call.1} parent=47 // pred_region
          %p339 = scmp.lt.s32.totalorder %s21, 1
          %s340 = scalar_select %p339, %s21, 1
          %s341 = smul.addr %s340, 32
          %s342 = smul.addr %s341, 4
          %s343 = scalar_lea.vmem %s0, %s342
        $region52: #{tpu_custom_call.1} parent=47 // pred_fallthru
          _
        // Predicated region
        $region53: #{tpu_custom_call.1} parent=47 // pred_check
          %p344 = pneg %p235
        $region54: #{tpu_custom_call.1} parent=47 // pred_check_branch
          %346 = sbr.rel (%p344) target = $region56
        $region55: #{tpu_custom_call.1} parent=47 // pred_region
          %p347 = scmp.lt.s32.totalorder %s21, 1
          %s348 = scalar_select %p347, %s21, 1
          %s349 = smul.addr %s348, 32
          %s350 = smul.addr %s349, 8
          %s351 = scalar_lea.vmem %s9, %s350
        $region56: #{tpu_custom_call.1} parent=47 // pred_fallthru
          _
      $region48: #{tpu_custom_call.1} parent=5 // pred_fallthru
        _
      %p352 = scmp.le.s32.totalorder 1, %s21
      %p353 = scmp.lt.s32.totalorder %s21, 3
      %p354 = pnand %p352, %p353
      %p355 = pneg %p354
      // Predicated region
      $region57: #{tpu_custom_call.1} parent=5 // pred_check
        _
      $region58: #{tpu_custom_call.1} parent=5 // pred_check_branch
        %357 = sbr.rel (%p354) target = $region60
      $region59: #{tpu_custom_call.1} parent=5 // pred_region
        %s358 = ssub.s32 %s21, 1
        %p359 = scmp.lt.s32.totalorder %s26, 1
        %s360 = scalar_select %p359, %s26, 1
        %s361 = smul.addr %s360, 32
        %s362 = smul.addr %s361, 4
        %s363 = scalar_lea.vmem %s0, %s362
        %p364 = pneg %p47
        %p365 = pneg %p44
        %p366 = pneg %p68
        %p367 = pneg %p65
        %p368 = pneg %p89
        %p369 = pneg %p86
        %p370 = pneg %p110
        %p371 = pneg %p107
        %p372 = pneg %p131
        %p373 = pneg %p128
        %p374 = pneg %p152
        %p375 = pneg %p149
        %p376 = pneg %p173
        %p377 = pneg %p170
        %p378 = pneg %p194
        %p379 = pneg %p191
        %p380 = pneg %p215
        %p381 = pneg %p212
        %p382 = scmp.lt.s32.totalorder %s26, 1
        %s383 = scalar_select %p382, %s26, 1
        %s384 = smul.addr %s383, 32
        %s385 = smul.addr %s384, 8
        %s386 = scalar_lea.vmem %s9, %s385
        %p387 = pneg %p241
        %p388 = pneg %p238
        %p389 = pneg %p267
        %p390 = pneg %p264
        %s391 = sand.u32 %s254, 1
        %s392 = scalar_lea.sflag [#allocation3], %s391
        %s393 = sand.u32 %s254, 1
        %s394 = scalar_lea.vmem [#allocation2], %s393
        %p395 = pneg %p293
        %p396 = pneg %p290
        %p397 = scmp.lt.s32.totalorder %s26, 1
        %s398 = scalar_select %p397, %s26, 1
        %s399 = smul.addr %s398, 32
        %s400 = smul.addr %s399, 8
        %s401 = scalar_lea.vmem %s11, %s400
        %p402 = scmp.lt.s32.totalorder %s26, 1
        %s403 = scalar_select %p402, %s26, 1
        %s404 = smul.addr %s403, 32
        %s405 = smul.addr %s404, 4
        %s406 = scalar_lea.vmem %s0, %s405
        %p407 = scmp.lt.s32.totalorder %s26, 1
        %s408 = scalar_select %p407, %s26, 1
        %s409 = smul.addr %s408, 32
        %s410 = smul.addr %s409, 8
        %s411 = scalar_lea.vmem %s9, %s410
        %p412 = scmp.lt.s32.totalorder %s26, 1
        %s413 = scalar_select %p412, %s26, 1
        %s414 = smul.addr %s413, 32
        %s415 = smul.addr %s414, 8
        %s416 = scalar_lea.vmem %s11, %s415
        %v418 = vld [vmem:[%s406] sm:$0xf]
        %v419 = vld [vmem:[%s406 + $0x4] sm:$0xf]
        %v420 = vld [vmem:[%s406 + $0x8] sm:$0xf]
        %v421 = vld [vmem:[%s406 + $0xc] sm:$0xf]
        %v422 = vld [vmem:[%s406 + $0x10] sm:$0xf]
        %v423 = vld [vmem:[%s406 + $0x14] sm:$0xf]
        %v424 = vld [vmem:[%s406 + $0x18] sm:$0xf]
        %v425 = vld [vmem:[%s406 + $0x1c] sm:$0xf]
        %v426 = vld [vmem:[%s406 + $0x20] sm:$0xf]
        %v427 = vld [vmem:[%s406 + $0x24] sm:$0xf]
        %v428 = vld [vmem:[%s406 + $0x28] sm:$0xf]
        %v429 = vld [vmem:[%s406 + $0x2c] sm:$0xf]
        %v430 = vld [vmem:[%s406 + $0x30] sm:$0xf]
        %v431 = vld [vmem:[%s406 + $0x34] sm:$0xf]
        %v432 = vld [vmem:[%s406 + $0x38] sm:$0xf]
        %v433 = vld [vmem:[%s406 + $0x3c] sm:$0xf]
        %v434 = vld [vmem:[%s406 + $0x40] sm:$0xf]
        %v435 = vld [vmem:[%s406 + $0x44] sm:$0xf]
        %v436 = vld [vmem:[%s406 + $0x48] sm:$0xf]
        %v437 = vld [vmem:[%s406 + $0x4c] sm:$0xf]
        %v438 = vld [vmem:[%s406 + $0x50] sm:$0xf]
        %v439 = vld [vmem:[%s406 + $0x54] sm:$0xf]
        %v440 = vld [vmem:[%s406 + $0x58] sm:$0xf]
        %v441 = vld [vmem:[%s406 + $0x5c] sm:$0xf]
        %v442 = vld [vmem:[%s406 + $0x60] sm:$0xf]
        %v443 = vld [vmem:[%s406 + $0x64] sm:$0xf]
        %v444 = vld [vmem:[%s406 + $0x68] sm:$0xf]
        %v445 = vld [vmem:[%s406 + $0x6c] sm:$0xf]
        %v446 = vld [vmem:[%s406 + $0x70] sm:$0xf]
        %v447 = vld [vmem:[%s406 + $0x74] sm:$0xf]
        %v448 = vld [vmem:[%s406 + $0x78] sm:$0xf]
        %v449 = vld [vmem:[%s406 + $0x7c] sm:$0xf]
        %v450 = vld [vmem:[%s1] sm:$0xff]
        %v451 = vld [vmem:[%s1 + $0x8] sm:$0xff]
        %v452 = vld [vmem:[%s1 + $0x10] sm:$0xff]
        %v453 = vld [vmem:[%s1 + $0x18] sm:$0xff]
        %v454 = vld [vmem:[%s1 + $0x20] sm:$0xff]
        %v455 = vld [vmem:[%s1 + $0x28] sm:$0xff]
        %v456 = vld [vmem:[%s1 + $0x30] sm:$0xff]
        %v457 = vld [vmem:[%s1 + $0x38] sm:$0xff]
        %v458 = vld [vmem:[%s1 + $0x40] sm:$0xff]
        %v459 = vld [vmem:[%s1 + $0x48] sm:$0xff]
        %v460 = vld [vmem:[%s1 + $0x50] sm:$0xff]
        %v461 = vld [vmem:[%s1 + $0x58] sm:$0xff]
        %v462 = vld [vmem:[%s1 + $0x60] sm:$0xff]
        %v463 = vld [vmem:[%s1 + $0x68] sm:$0xff]
        %v464 = vld [vmem:[%s1 + $0x70] sm:$0xff]
        %v465 = vld [vmem:[%s1 + $0x78] sm:$0xff]
        %v466 = vld [vmem:[%s1 + $0x80] sm:$0xff]
        %v467 = vld [vmem:[%s1 + $0x88] sm:$0xff]
        %v468 = vld [vmem:[%s1 + $0x90] sm:$0xff]
        %v469 = vld [vmem:[%s1 + $0x98] sm:$0xff]
        %v470 = vld [vmem:[%s1 + $0xa0] sm:$0xff]
        %v471 = vld [vmem:[%s1 + $0xa8] sm:$0xff]
        %v472 = vld [vmem:[%s1 + $0xb0] sm:$0xff]
        %v473 = vld [vmem:[%s1 + $0xb8] sm:$0xff]
        %v474 = vld [vmem:[%s1 + $0xc0] sm:$0xff]
        %v475 = vld [vmem:[%s1 + $0xc8] sm:$0xff]
        %v476 = vld [vmem:[%s1 + $0xd0] sm:$0xff]
        %v477 = vld [vmem:[%s1 + $0xd8] sm:$0xff]
        %v478 = vld [vmem:[%s1 + $0xe0] sm:$0xff]
        %v479 = vld [vmem:[%s1 + $0xe8] sm:$0xff]
        %v480 = vld [vmem:[%s1 + $0xf0] sm:$0xff]
        %v481 = vld [vmem:[%s1 + $0xf8] sm:$0xff]
        %v514 = vunpack.c.l.b16 %v418
        %v515 = vunpack.c.l.b16 %v419
        %v516 = vunpack.c.l.b16 %v420
        %v517 = vunpack.c.l.b16 %v421
        %v518 = vunpack.c.l.b16 %v422
        %v519 = vunpack.c.l.b16 %v423
        %v520 = vunpack.c.l.b16 %v424
        %v521 = vunpack.c.l.b16 %v425
        %v522 = vunpack.c.l.b16 %v426
        %v523 = vunpack.c.l.b16 %v427
        %v524 = vunpack.c.l.b16 %v428
        %v525 = vunpack.c.l.b16 %v429
        %v526 = vunpack.c.l.b16 %v430
        %v527 = vunpack.c.l.b16 %v431
        %v528 = vunpack.c.l.b16 %v432
        %v529 = vunpack.c.l.b16 %v433
        %v530 = vunpack.c.l.b16 %v434
        %v531 = vunpack.c.l.b16 %v435
        %v532 = vunpack.c.l.b16 %v436
        %v533 = vunpack.c.l.b16 %v437
        %v534 = vunpack.c.l.b16 %v438
        %v535 = vunpack.c.l.b16 %v439
        %v536 = vunpack.c.l.b16 %v440
        %v537 = vunpack.c.l.b16 %v441
        %v538 = vunpack.c.l.b16 %v442
        %v539 = vunpack.c.l.b16 %v443
        %v540 = vunpack.c.l.b16 %v444
        %v541 = vunpack.c.l.b16 %v445
        %v542 = vunpack.c.l.b16 %v446
        %v543 = vunpack.c.l.b16 %v447
        %v544 = vunpack.c.l.b16 %v448
        %v545 = vunpack.c.l.b16 %v449
        %v546 = vpack.c.b16 %v515, %v514
        %v547 = vpack.c.b16 %v517, %v516
        %v548 = vpack.c.b16 %v519, %v518
        %v549 = vpack.c.b16 %v521, %v520
        %v550 = vpack.c.b16 %v523, %v522
        %v551 = vpack.c.b16 %v525, %v524
        %v552 = vpack.c.b16 %v527, %v526
        %v553 = vpack.c.b16 %v529, %v528
        %v554 = vpack.c.b16 %v531, %v530
        %v555 = vpack.c.b16 %v533, %v532
        %v556 = vpack.c.b16 %v535, %v534
        %v557 = vpack.c.b16 %v537, %v536
        %v558 = vpack.c.b16 %v539, %v538
        %v559 = vpack.c.b16 %v541, %v540
        %v560 = vpack.c.b16 %v543, %v542
        %v561 = vpack.c.b16 %v545, %v544
        %v610 = vunpack.c.l.b16 %v450
        %v611 = vunpack.c.h.b16 %v450
        %v612 = vunpack.c.l.b16 %v451
        %v613 = vunpack.c.h.b16 %v451
        %v614 = vunpack.c.l.b16 %v452
        %v615 = vunpack.c.h.b16 %v452
        %v616 = vunpack.c.l.b16 %v453
        %v617 = vunpack.c.h.b16 %v453
        %v618 = vunpack.c.l.b16 %v454
        %v619 = vunpack.c.h.b16 %v454
        %v620 = vunpack.c.l.b16 %v455
        %v621 = vunpack.c.h.b16 %v455
        %v622 = vunpack.c.l.b16 %v456
        %v623 = vunpack.c.h.b16 %v456
        %v624 = vunpack.c.l.b16 %v457
        %v625 = vunpack.c.h.b16 %v457
        %v626 = vunpack.c.l.b16 %v458
        %v627 = vunpack.c.h.b16 %v458
        %v628 = vunpack.c.l.b16 %v459
        %v629 = vunpack.c.h.b16 %v459
        %v630 = vunpack.c.l.b16 %v460
        %v631 = vunpack.c.h.b16 %v460
        %v632 = vunpack.c.l.b16 %v461
        %v633 = vunpack.c.h.b16 %v461
        %v634 = vunpack.c.l.b16 %v462
        %v635 = vunpack.c.h.b16 %v462
        %v636 = vunpack.c.l.b16 %v463
        %v637 = vunpack.c.h.b16 %v463
        %v638 = vunpack.c.l.b16 %v464
        %v639 = vunpack.c.h.b16 %v464
        %v640 = vunpack.c.l.b16 %v465
        %v641 = vunpack.c.h.b16 %v465
        %v642 = vunpack.c.l.b16 %v466
        %v643 = vunpack.c.h.b16 %v466
        %v644 = vunpack.c.l.b16 %v467
        %v645 = vunpack.c.h.b16 %v467
        %v646 = vunpack.c.l.b16 %v468
        %v647 = vunpack.c.h.b16 %v468
        %v648 = vunpack.c.l.b16 %v469
        %v649 = vunpack.c.h.b16 %v469
        %v650 = vunpack.c.l.b16 %v470
        %v651 = vunpack.c.h.b16 %v470
        %v652 = vunpack.c.l.b16 %v471
        %v653 = vunpack.c.h.b16 %v471
        %v654 = vunpack.c.l.b16 %v472
        %v655 = vunpack.c.h.b16 %v472
        %v656 = vunpack.c.l.b16 %v473
        %v657 = vunpack.c.h.b16 %v473
        %v658 = vunpack.c.l.b16 %v474
        %v659 = vunpack.c.h.b16 %v474
        %v660 = vunpack.c.l.b16 %v475
        %v661 = vunpack.c.h.b16 %v475
        %v662 = vunpack.c.l.b16 %v476
        %v663 = vunpack.c.h.b16 %v476
        %v664 = vunpack.c.l.b16 %v477
        %v665 = vunpack.c.h.b16 %v477
        %v666 = vunpack.c.l.b16 %v478
        %v667 = vunpack.c.h.b16 %v478
        %v668 = vunpack.c.l.b16 %v479
        %v669 = vunpack.c.h.b16 %v479
        %v670 = vunpack.c.l.b16 %v480
        %v671 = vunpack.c.h.b16 %v480
        %v672 = vunpack.c.l.b16 %v481
        %v673 = vunpack.c.h.b16 %v481
        %v674 = vpack.c.b16 %v614, %v610
        %v675 = vpack.c.b16 %v615, %v611
        %v676 = vpack.c.b16 %v616, %v612
        %v677 = vpack.c.b16 %v617, %v613
        %v678 = vpack.c.b16 %v622, %v618
        %v679 = vpack.c.b16 %v623, %v619
        %v680 = vpack.c.b16 %v624, %v620
        %v681 = vpack.c.b16 %v625, %v621
        %v682 = vpack.c.b16 %v630, %v626
        %v683 = vpack.c.b16 %v631, %v627
        %v684 = vpack.c.b16 %v632, %v628
        %v685 = vpack.c.b16 %v633, %v629
        %v686 = vpack.c.b16 %v638, %v634
        %v687 = vpack.c.b16 %v639, %v635
        %v688 = vpack.c.b16 %v640, %v636
        %v689 = vpack.c.b16 %v641, %v637
        %v690 = vpack.c.b16 %v646, %v642
        %v691 = vpack.c.b16 %v647, %v643
        %v692 = vpack.c.b16 %v648, %v644
        %v693 = vpack.c.b16 %v649, %v645
        %v694 = vpack.c.b16 %v654, %v650
        %v695 = vpack.c.b16 %v655, %v651
        %v696 = vpack.c.b16 %v656, %v652
        %v697 = vpack.c.b16 %v657, %v653
        %v698 = vpack.c.b16 %v662, %v658
        %v699 = vpack.c.b16 %v663, %v659
        %v700 = vpack.c.b16 %v664, %v660
        %v701 = vpack.c.b16 %v665, %v661
        %v702 = vpack.c.b16 %v670, %v666
        %v703 = vpack.c.b16 %v671, %v667
        %v704 = vpack.c.b16 %v672, %v668
        %v705 = vpack.c.b16 %v673, %v669
        %738 = vmatprep.subr.bf16.mxu0 %v703
        %739 = vmatpush1.bf16.msra.mxu0 %v702
        %740 = vmatprep.subr.bf16.mxu0 %v699
        %741 = vmatpush1.bf16.msra.mxu0 %v698
        %742 = vmatprep.subr.bf16.mxu0 %v695
        %743 = vmatpush1.bf16.msra.mxu0 %v694
        %744 = vmatprep.subr.bf16.mxu0 %v691
        %745 = vmatpush1.bf16.msra.mxu0 %v690
        %746 = vmatprep.subr.bf16.mxu0 %v687
        %747 = vmatpush1.bf16.msra.mxu0 %v686
        %748 = vmatprep.subr.bf16.mxu0 %v683
        %749 = vmatpush1.bf16.msra.mxu0 %v682
        %750 = vmatprep.subr.bf16.mxu0 %v679
        %751 = vmatpush1.bf16.msra.mxu0 %v678
        %752 = vmatprep.subr.bf16.mxu0 %v675
        %753 = vmatpush1.bf16.msra.mxu0 %v674
        %754 = vmatprep.subr.bf16.mxu0 0
        %755 = vmatpush2.bf16.msra.mxu0 0
        %756 = vmatprep.subr.bf16.mxu0 0
        %757 = vmatpush2.bf16.msra.mxu0 0
        %758 = vmatprep.subr.bf16.mxu0 0
        %759 = vmatpush2.bf16.msra.mxu0 0
        %760 = vmatprep.subr.bf16.mxu0 0
        %761 = vmatpush2.bf16.msra.mxu0 0
        %762 = vmatprep.subr.bf16.mxu0 0
        %763 = vmatpush2.bf16.msra.mxu0 0
        %764 = vmatprep.subr.bf16.mxu0 0
        %765 = vmatpush2.bf16.msra.mxu0 0
        %766 = vmatprep.subr.bf16.mxu0 0
        %767 = vmatpush2.bf16.msra.mxu0 0
        %768 = vmatprep.subr.bf16.mxu0 0
        %769 = vmatpush2.bf16.msra.mxu0 0
        %770 = vmatprep.mubr.bf16.mxu0 0
        %771 = vmatmul.mubr.bf16.gmra.mxu0 %v546
        %v772 = vpop.f32.mrf.mxu0
        %v773 = vadd.f32 0.0, %v772
        %v774 = vpop.f32.mrf.mxu0
        %v775 = vadd.f32 0.0, %v774
        %v776 = vpop.f32.mrf.mxu0
        %v777 = vadd.f32 0.0, %v776
        %v778 = vpop.f32.mrf.mxu0
        %v779 = vadd.f32 0.0, %v778
        %780 = vmatprep.mubr.bf16.mxu0 0
        %781 = vmatmul.mubr.bf16.gmra.mxu0 %v547
        %v782 = vpop.f32.mrf.mxu0
        %v783 = vadd.f32 0.0, %v782
        %v784 = vpop.f32.mrf.mxu0
        %v785 = vadd.f32 0.0, %v784
        %v786 = vpop.f32.mrf.mxu0
        %v787 = vadd.f32 0.0, %v786
        %v788 = vpop.f32.mrf.mxu0
        %v789 = vadd.f32 0.0, %v788
        %790 = vmatprep.mubr.bf16.mxu0 0
        %791 = vmatmul.mubr.bf16.gmra.mxu0 %v548
        %v792 = vpop.f32.mrf.mxu0
        %v793 = vadd.f32 0.0, %v792
        %v794 = vpop.f32.mrf.mxu0
        %v795 = vadd.f32 0.0, %v794
        %v796 = vpop.f32.mrf.mxu0
        %v797 = vadd.f32 0.0, %v796
        %v798 = vpop.f32.mrf.mxu0
        %v799 = vadd.f32 0.0, %v798
        %800 = vmatprep.mubr.bf16.mxu0 0
        %801 = vmatmul.mubr.bf16.gmra.mxu0 %v549
        %v802 = vpop.f32.mrf.mxu0
        %v803 = vadd.f32 0.0, %v802
        %v804 = vpop.f32.mrf.mxu0
        %v805 = vadd.f32 0.0, %v804
        %v806 = vpop.f32.mrf.mxu0
        %v807 = vadd.f32 0.0, %v806
        %v808 = vpop.f32.mrf.mxu0
        %v809 = vadd.f32 0.0, %v808
        %810 = vmatprep.mubr.bf16.mxu0 0
        %811 = vmatmul.mubr.bf16.gmra.mxu0 %v550
        %v812 = vpop.f32.mrf.mxu0
        %v813 = vadd.f32 0.0, %v812
        %v814 = vpop.f32.mrf.mxu0
        %v815 = vadd.f32 0.0, %v814
        %v816 = vpop.f32.mrf.mxu0
        %v817 = vadd.f32 0.0, %v816
        %v818 = vpop.f32.mrf.mxu0
        %v819 = vadd.f32 0.0, %v818
        %820 = vmatprep.mubr.bf16.mxu0 0
        %821 = vmatmul.mubr.bf16.gmra.mxu0 %v551
        %v822 = vpop.f32.mrf.mxu0
        %v823 = vadd.f32 0.0, %v822
        %v824 = vpop.f32.mrf.mxu0
        %v825 = vadd.f32 0.0, %v824
        %v826 = vpop.f32.mrf.mxu0
        %v827 = vadd.f32 0.0, %v826
        %v828 = vpop.f32.mrf.mxu0
        %v829 = vadd.f32 0.0, %v828
        %830 = vmatprep.mubr.bf16.mxu0 0
        %831 = vmatmul.mubr.bf16.gmra.mxu0 %v552
        %v832 = vpop.f32.mrf.mxu0
        %v833 = vadd.f32 0.0, %v832
        %v834 = vpop.f32.mrf.mxu0
        %v835 = vadd.f32 0.0, %v834
        %v836 = vpop.f32.mrf.mxu0
        %v837 = vadd.f32 0.0, %v836
        %v838 = vpop.f32.mrf.mxu0
        %v839 = vadd.f32 0.0, %v838
        %840 = vmatprep.mubr.bf16.mxu0 0
        %841 = vmatmul.mubr.bf16.gmra.mxu0 %v553
        %v842 = vpop.f32.mrf.mxu0
        %v843 = vadd.f32 0.0, %v842
        %v844 = vpop.f32.mrf.mxu0
        %v845 = vadd.f32 0.0, %v844
        %v846 = vpop.f32.mrf.mxu0
        %v847 = vadd.f32 0.0, %v846
        %v848 = vpop.f32.mrf.mxu0
        %v849 = vadd.f32 0.0, %v848
        %850 = vmatprep.mubr.bf16.mxu0 0
        %851 = vmatmul.mubr.bf16.gmra.mxu0 %v554
        %v852 = vpop.f32.mrf.mxu0
        %v853 = vadd.f32 0.0, %v852
        %v854 = vpop.f32.mrf.mxu0
        %v855 = vadd.f32 0.0, %v854
        %v856 = vpop.f32.mrf.mxu0
        %v857 = vadd.f32 0.0, %v856
        %v858 = vpop.f32.mrf.mxu0
        %v859 = vadd.f32 0.0, %v858
        %860 = vmatprep.mubr.bf16.mxu0 0
        %861 = vmatmul.mubr.bf16.gmra.mxu0 %v555
        %v862 = vpop.f32.mrf.mxu0
        %v863 = vadd.f32 0.0, %v862
        %v864 = vpop.f32.mrf.mxu0
        %v865 = vadd.f32 0.0, %v864
        %v866 = vpop.f32.mrf.mxu0
        %v867 = vadd.f32 0.0, %v866
        %v868 = vpop.f32.mrf.mxu0
        %v869 = vadd.f32 0.0, %v868
        %870 = vmatprep.mubr.bf16.mxu0 0
        %871 = vmatmul.mubr.bf16.gmra.mxu0 %v556
        %v872 = vpop.f32.mrf.mxu0
        %v873 = vadd.f32 0.0, %v872
        %v874 = vpop.f32.mrf.mxu0
        %v875 = vadd.f32 0.0, %v874
        %v876 = vpop.f32.mrf.mxu0
        %v877 = vadd.f32 0.0, %v876
        %v878 = vpop.f32.mrf.mxu0
        %v879 = vadd.f32 0.0, %v878
        %880 = vmatprep.mubr.bf16.mxu0 0
        %881 = vmatmul.mubr.bf16.gmra.mxu0 %v557
        %v882 = vpop.f32.mrf.mxu0
        %v883 = vadd.f32 0.0, %v882
        %v884 = vpop.f32.mrf.mxu0
        %v885 = vadd.f32 0.0, %v884
        %v886 = vpop.f32.mrf.mxu0
        %v887 = vadd.f32 0.0, %v886
        %v888 = vpop.f32.mrf.mxu0
        %v889 = vadd.f32 0.0, %v888
        %890 = vmatprep.mubr.bf16.mxu0 0
        %891 = vmatmul.mubr.bf16.gmra.mxu0 %v558
        %v892 = vpop.f32.mrf.mxu0
        %v893 = vadd.f32 0.0, %v892
        %v894 = vpop.f32.mrf.mxu0
        %v895 = vadd.f32 0.0, %v894
        %v896 = vpop.f32.mrf.mxu0
        %v897 = vadd.f32 0.0, %v896
        %v898 = vpop.f32.mrf.mxu0
        %v899 = vadd.f32 0.0, %v898
        %900 = vmatprep.mubr.bf16.mxu0 0
        %901 = vmatmul.mubr.bf16.gmra.mxu0 %v559
        %v902 = vpop.f32.mrf.mxu0
        %v903 = vadd.f32 0.0, %v902
        %v904 = vpop.f32.mrf.mxu0
        %v905 = vadd.f32 0.0, %v904
        %v906 = vpop.f32.mrf.mxu0
        %v907 = vadd.f32 0.0, %v906
        %v908 = vpop.f32.mrf.mxu0
        %v909 = vadd.f32 0.0, %v908
        %910 = vmatprep.mubr.bf16.mxu0 0
        %911 = vmatmul.mubr.bf16.gmra.mxu0 %v560
        %v912 = vpop.f32.mrf.mxu0
        %v913 = vadd.f32 0.0, %v912
        %v914 = vpop.f32.mrf.mxu0
        %v915 = vadd.f32 0.0, %v914
        %v916 = vpop.f32.mrf.mxu0
        %v917 = vadd.f32 0.0, %v916
        %v918 = vpop.f32.mrf.mxu0
        %v919 = vadd.f32 0.0, %v918
        %920 = vmatprep.mubr.bf16.mxu0 0
        %921 = vmatmul.mubr.bf16.gmra.mxu0 %v561
        %v922 = vpop.f32.mrf.mxu0
        %v923 = vadd.f32 0.0, %v922
        %v924 = vpop.f32.mrf.mxu0
        %v925 = vadd.f32 0.0, %v924
        %v926 = vpop.f32.mrf.mxu0
        %v927 = vadd.f32 0.0, %v926
        %v928 = vpop.f32.mrf.mxu0
        %v929 = vadd.f32 0.0, %v928
        %930 = vdwg.mxu0
        %931 = vmatprep.subr.bf16.mxu0 %v705
        %932 = vmatpush1.bf16.msra.mxu0 %v704
        %933 = vmatprep.subr.bf16.mxu0 %v701
        %934 = vmatpush1.bf16.msra.mxu0 %v700
        %935 = vmatprep.subr.bf16.mxu0 %v697
        %936 = vmatpush1.bf16.msra.mxu0 %v696
        %937 = vmatprep.subr.bf16.mxu0 %v693
        %938 = vmatpush1.bf16.msra.mxu0 %v692
        %939 = vmatprep.subr.bf16.mxu0 %v689
        %940 = vmatpush1.bf16.msra.mxu0 %v688
        %941 = vmatprep.subr.bf16.mxu0 %v685
        %942 = vmatpush1.bf16.msra.mxu0 %v684
        %943 = vmatprep.subr.bf16.mxu0 %v681
        %944 = vmatpush1.bf16.msra.mxu0 %v680
        %945 = vmatprep.subr.bf16.mxu0 %v677
        %946 = vmatpush1.bf16.msra.mxu0 %v676
        %947 = vmatprep.subr.bf16.mxu0 0
        %948 = vmatpush2.bf16.msra.mxu0 0
        %949 = vmatprep.subr.bf16.mxu0 0
        %950 = vmatpush2.bf16.msra.mxu0 0
        %951 = vmatprep.subr.bf16.mxu0 0
        %952 = vmatpush2.bf16.msra.mxu0 0
        %953 = vmatprep.subr.bf16.mxu0 0
        %954 = vmatpush2.bf16.msra.mxu0 0
        %955 = vmatprep.subr.bf16.mxu0 0
        %956 = vmatpush2.bf16.msra.mxu0 0
        %957 = vmatprep.subr.bf16.mxu0 0
        %958 = vmatpush2.bf16.msra.mxu0 0
        %959 = vmatprep.subr.bf16.mxu0 0
        %960 = vmatpush2.bf16.msra.mxu0 0
        %961 = vmatprep.subr.bf16.mxu0 0
        %962 = vmatpush2.bf16.msra.mxu0 0
        %963 = vmatprep.mubr.bf16.mxu0 0
        %964 = vmatmul.mubr.bf16.gmra.mxu0 %v546
        %v965 = vpop.f32.mrf.mxu0
        %v966 = vadd.f32 0.0, %v965
        %v967 = vpop.f32.mrf.mxu0
        %v968 = vadd.f32 0.0, %v967
        %v969 = vpop.f32.mrf.mxu0
        %v970 = vadd.f32 0.0, %v969
        %v971 = vpop.f32.mrf.mxu0
        %v972 = vadd.f32 0.0, %v971
        %973 = vmatprep.mubr.bf16.mxu0 0
        %974 = vmatmul.mubr.bf16.gmra.mxu0 %v547
        %v975 = vpop.f32.mrf.mxu0
        %v976 = vadd.f32 0.0, %v975
        %v977 = vpop.f32.mrf.mxu0
        %v978 = vadd.f32 0.0, %v977
        %v979 = vpop.f32.mrf.mxu0
        %v980 = vadd.f32 0.0, %v979
        %v981 = vpop.f32.mrf.mxu0
        %v982 = vadd.f32 0.0, %v981
        %983 = vmatprep.mubr.bf16.mxu0 0
        %984 = vmatmul.mubr.bf16.gmra.mxu0 %v548
        %v985 = vpop.f32.mrf.mxu0
        %v986 = vadd.f32 0.0, %v985
        %v987 = vpop.f32.mrf.mxu0
        %v988 = vadd.f32 0.0, %v987
        %v989 = vpop.f32.mrf.mxu0
        %v990 = vadd.f32 0.0, %v989
        %v991 = vpop.f32.mrf.mxu0
        %v992 = vadd.f32 0.0, %v991
        %993 = vmatprep.mubr.bf16.mxu0 0
        %994 = vmatmul.mubr.bf16.gmra.mxu0 %v549
        %v995 = vpop.f32.mrf.mxu0
        %v996 = vadd.f32 0.0, %v995
        %v997 = vpop.f32.mrf.mxu0
        %v998 = vadd.f32 0.0, %v997
        %v999 = vpop.f32.mrf.mxu0
        %v1000 = vadd.f32 0.0, %v999
        %v1001 = vpop.f32.mrf.mxu0
        %v1002 = vadd.f32 0.0, %v1001
        %1003 = vmatprep.mubr.bf16.mxu0 0
        %1004 = vmatmul.mubr.bf16.gmra.mxu0 %v550
        %v1005 = vpop.f32.mrf.mxu0
        %v1006 = vadd.f32 0.0, %v1005
        %v1007 = vpop.f32.mrf.mxu0
        %v1008 = vadd.f32 0.0, %v1007
        %v1009 = vpop.f32.mrf.mxu0
        %v1010 = vadd.f32 0.0, %v1009
        %v1011 = vpop.f32.mrf.mxu0
        %v1012 = vadd.f32 0.0, %v1011
        %1013 = vmatprep.mubr.bf16.mxu0 0
        %1014 = vmatmul.mubr.bf16.gmra.mxu0 %v551
        %v1015 = vpop.f32.mrf.mxu0
        %v1016 = vadd.f32 0.0, %v1015
        %v1017 = vpop.f32.mrf.mxu0
        %v1018 = vadd.f32 0.0, %v1017
        %v1019 = vpop.f32.mrf.mxu0
        %v1020 = vadd.f32 0.0, %v1019
        %v1021 = vpop.f32.mrf.mxu0
        %v1022 = vadd.f32 0.0, %v1021
        %1023 = vmatprep.mubr.bf16.mxu0 0
        %1024 = vmatmul.mubr.bf16.gmra.mxu0 %v552
        %v1025 = vpop.f32.mrf.mxu0
        %v1026 = vadd.f32 0.0, %v1025
        %v1027 = vpop.f32.mrf.mxu0
        %v1028 = vadd.f32 0.0, %v1027
        %v1029 = vpop.f32.mrf.mxu0
        %v1030 = vadd.f32 0.0, %v1029
        %v1031 = vpop.f32.mrf.mxu0
        %v1032 = vadd.f32 0.0, %v1031
        %1033 = vmatprep.mubr.bf16.mxu0 0
        %1034 = vmatmul.mubr.bf16.gmra.mxu0 %v553
        %v1035 = vpop.f32.mrf.mxu0
        %v1036 = vadd.f32 0.0, %v1035
        %v1037 = vpop.f32.mrf.mxu0
        %v1038 = vadd.f32 0.0, %v1037
        %v1039 = vpop.f32.mrf.mxu0
        %v1040 = vadd.f32 0.0, %v1039
        %v1041 = vpop.f32.mrf.mxu0
        %v1042 = vadd.f32 0.0, %v1041
        %1043 = vmatprep.mubr.bf16.mxu0 0
        %1044 = vmatmul.mubr.bf16.gmra.mxu0 %v554
        %v1045 = vpop.f32.mrf.mxu0
        %v1046 = vadd.f32 0.0, %v1045
        %v1047 = vpop.f32.mrf.mxu0
        %v1048 = vadd.f32 0.0, %v1047
        %v1049 = vpop.f32.mrf.mxu0
        %v1050 = vadd.f32 0.0, %v1049
        %v1051 = vpop.f32.mrf.mxu0
        %v1052 = vadd.f32 0.0, %v1051
        %1053 = vmatprep.mubr.bf16.mxu0 0
        %1054 = vmatmul.mubr.bf16.gmra.mxu0 %v555
        %v1055 = vpop.f32.mrf.mxu0
        %v1056 = vadd.f32 0.0, %v1055
        %v1057 = vpop.f32.mrf.mxu0
        %v1058 = vadd.f32 0.0, %v1057
        %v1059 = vpop.f32.mrf.mxu0
        %v1060 = vadd.f32 0.0, %v1059
        %v1061 = vpop.f32.mrf.mxu0
        %v1062 = vadd.f32 0.0, %v1061
        %1063 = vmatprep.mubr.bf16.mxu0 0
        %1064 = vmatmul.mubr.bf16.gmra.mxu0 %v556
        %v1065 = vpop.f32.mrf.mxu0
        %v1066 = vadd.f32 0.0, %v1065
        %v1067 = vpop.f32.mrf.mxu0
        %v1068 = vadd.f32 0.0, %v1067
        %v1069 = vpop.f32.mrf.mxu0
        %v1070 = vadd.f32 0.0, %v1069
        %v1071 = vpop.f32.mrf.mxu0
        %v1072 = vadd.f32 0.0, %v1071
        %1073 = vmatprep.mubr.bf16.mxu0 0
        %1074 = vmatmul.mubr.bf16.gmra.mxu0 %v557
        %v1075 = vpop.f32.mrf.mxu0
        %v1076 = vadd.f32 0.0, %v1075
        %v1077 = vpop.f32.mrf.mxu0
        %v1078 = vadd.f32 0.0, %v1077
        %v1079 = vpop.f32.mrf.mxu0
        %v1080 = vadd.f32 0.0, %v1079
        %v1081 = vpop.f32.mrf.mxu0
        %v1082 = vadd.f32 0.0, %v1081
        %1083 = vmatprep.mubr.bf16.mxu0 0
        %1084 = vmatmul.mubr.bf16.gmra.mxu0 %v558
        %v1085 = vpop.f32.mrf.mxu0
        %v1086 = vadd.f32 0.0, %v1085
        %v1087 = vpop.f32.mrf.mxu0
        %v1088 = vadd.f32 0.0, %v1087
        %v1089 = vpop.f32.mrf.mxu0
        %v1090 = vadd.f32 0.0, %v1089
        %v1091 = vpop.f32.mrf.mxu0
        %v1092 = vadd.f32 0.0, %v1091
        %1093 = vmatprep.mubr.bf16.mxu0 0
        %1094 = vmatmul.mubr.bf16.gmra.mxu0 %v559
        %v1095 = vpop.f32.mrf.mxu0
        %v1096 = vadd.f32 0.0, %v1095
        %v1097 = vpop.f32.mrf.mxu0
        %v1098 = vadd.f32 0.0, %v1097
        %v1099 = vpop.f32.mrf.mxu0
        %v1100 = vadd.f32 0.0, %v1099
        %v1101 = vpop.f32.mrf.mxu0
        %v1102 = vadd.f32 0.0, %v1101
        %1103 = vmatprep.mubr.bf16.mxu0 0
        %1104 = vmatmul.mubr.bf16.gmra.mxu0 %v560
        %v1105 = vpop.f32.mrf.mxu0
        %v1106 = vadd.f32 0.0, %v1105
        %v1107 = vpop.f32.mrf.mxu0
        %v1108 = vadd.f32 0.0, %v1107
        %v1109 = vpop.f32.mrf.mxu0
        %v1110 = vadd.f32 0.0, %v1109
        %v1111 = vpop.f32.mrf.mxu0
        %v1112 = vadd.f32 0.0, %v1111
        %1113 = vmatprep.mubr.bf16.mxu0 0
        %1114 = vmatmul.mubr.bf16.gmra.mxu0 %v561
        %v1115 = vpop.f32.mrf.mxu0
        %v1116 = vadd.f32 0.0, %v1115
        %v1117 = vpop.f32.mrf.mxu0
        %v1118 = vadd.f32 0.0, %v1117
        %v1119 = vpop.f32.mrf.mxu0
        %v1120 = vadd.f32 0.0, %v1119
        %v1121 = vpop.f32.mrf.mxu0
        %v1122 = vadd.f32 0.0, %v1121
        %1123 = vdwg.mxu0
        %v1124 = vld [vmem:[%s2] sm:$0xf]
        %v1125 = vld [vmem:[%s3] sm:$0xf]
        %v1126 = vadd.f32 %v773, %v777
        %v1127 = vadd.f32 %v1126, %v783
        %v1128 = vadd.f32 %v1127, %v787
        %v1129 = vadd.f32 %v1128, %v793
        %v1130 = vadd.f32 %v1129, %v797
        %v1131 = vadd.f32 %v1130, %v803
        %v1132 = vadd.f32 %v1131, %v807
        %v1133 = vadd.f32 %v1132, %v813
        %v1134 = vadd.f32 %v1133, %v817
        %v1135 = vadd.f32 %v1134, %v823
        %v1136 = vadd.f32 %v1135, %v827
        %v1137 = vadd.f32 %v1136, %v833
        %v1138 = vadd.f32 %v1137, %v837
        %v1139 = vadd.f32 %v1138, %v843
        %v1140 = vadd.f32 %v1139, %v847
        %v1141 = vadd.f32 %v1140, %v853
        %v1142 = vadd.f32 %v1141, %v857
        %v1143 = vadd.f32 %v1142, %v863
        %v1144 = vadd.f32 %v1143, %v867
        %v1145 = vadd.f32 %v1144, %v873
        %v1146 = vadd.f32 %v1145, %v877
        %v1147 = vadd.f32 %v1146, %v883
        %v1148 = vadd.f32 %v1147, %v887
        %v1149 = vadd.f32 %v1148, %v893
        %v1150 = vadd.f32 %v1149, %v897
        %v1151 = vadd.f32 %v1150, %v903
        %v1152 = vadd.f32 %v1151, %v907
        %v1153 = vadd.f32 %v1152, %v913
        %v1154 = vadd.f32 %v1153, %v917
        %v1155 = vadd.f32 %v1154, %v923
        %v1156 = vadd.f32 %v1155, %v927
        %v1157 = vrot.slane %v1156, 4
        %v1158 = vadd.f32 %v1156, %v1157
        %v1159 = vrot.slane %v1158, 2
        %v1160 = vadd.f32 %v1158, %v1159
        %v1161 = vrot.slane %v1160, 1
        %v1162 = vadd.f32 %v1160, %v1161
        %v1163 = vadd.f32 %v775, %v779
        %v1164 = vadd.f32 %v1163, %v785
        %v1165 = vadd.f32 %v1164, %v789
        %v1166 = vadd.f32 %v1165, %v795
        %v1167 = vadd.f32 %v1166, %v799
        %v1168 = vadd.f32 %v1167, %v805
        %v1169 = vadd.f32 %v1168, %v809
        %v1170 = vadd.f32 %v1169, %v815
        %v1171 = vadd.f32 %v1170, %v819
        %v1172 = vadd.f32 %v1171, %v825
        %v1173 = vadd.f32 %v1172, %v829
        %v1174 = vadd.f32 %v1173, %v835
        %v1175 = vadd.f32 %v1174, %v839
        %v1176 = vadd.f32 %v1175, %v845
        %v1177 = vadd.f32 %v1176, %v849
        %v1178 = vadd.f32 %v1177, %v855
        %v1179 = vadd.f32 %v1178, %v859
        %v1180 = vadd.f32 %v1179, %v865
        %v1181 = vadd.f32 %v1180, %v869
        %v1182 = vadd.f32 %v1181, %v875
        %v1183 = vadd.f32 %v1182, %v879
        %v1184 = vadd.f32 %v1183, %v885
        %v1185 = vadd.f32 %v1184, %v889
        %v1186 = vadd.f32 %v1185, %v895
        %v1187 = vadd.f32 %v1186, %v899
        %v1188 = vadd.f32 %v1187, %v905
        %v1189 = vadd.f32 %v1188, %v909
        %v1190 = vadd.f32 %v1189, %v915
        %v1191 = vadd.f32 %v1190, %v919
        %v1192 = vadd.f32 %v1191, %v925
        %v1193 = vadd.f32 %v1192, %v929
        %v1194 = vrot.slane %v1193, 4
        %v1195 = vadd.f32 %v1193, %v1194
        %v1196 = vrot.slane %v1195, 2
        %v1197 = vadd.f32 %v1195, %v1196
        %v1198 = vrot.slane %v1197, 1
        %v1199 = vadd.f32 %v1197, %v1198
        %v1200 = vadd.f32 %v966, %v970
        %v1201 = vadd.f32 %v1200, %v976
        %v1202 = vadd.f32 %v1201, %v980
        %v1203 = vadd.f32 %v1202, %v986
        %v1204 = vadd.f32 %v1203, %v990
        %v1205 = vadd.f32 %v1204, %v996
        %v1206 = vadd.f32 %v1205, %v1000
        %v1207 = vadd.f32 %v1206, %v1006
        %v1208 = vadd.f32 %v1207, %v1010
        %v1209 = vadd.f32 %v1208, %v1016
        %v1210 = vadd.f32 %v1209, %v1020
        %v1211 = vadd.f32 %v1210, %v1026
        %v1212 = vadd.f32 %v1211, %v1030
        %v1213 = vadd.f32 %v1212, %v1036
        %v1214 = vadd.f32 %v1213, %v1040
        %v1215 = vadd.f32 %v1214, %v1046
        %v1216 = vadd.f32 %v1215, %v1050
        %v1217 = vadd.f32 %v1216, %v1056
        %v1218 = vadd.f32 %v1217, %v1060
        %v1219 = vadd.f32 %v1218, %v1066
        %v1220 = vadd.f32 %v1219, %v1070
        %v1221 = vadd.f32 %v1220, %v1076
        %v1222 = vadd.f32 %v1221, %v1080
        %v1223 = vadd.f32 %v1222, %v1086
        %v1224 = vadd.f32 %v1223, %v1090
        %v1225 = vadd.f32 %v1224, %v1096
        %v1226 = vadd.f32 %v1225, %v1100
        %v1227 = vadd.f32 %v1226, %v1106
        %v1228 = vadd.f32 %v1227, %v1110
        %v1229 = vadd.f32 %v1228, %v1116
        %v1230 = vadd.f32 %v1229, %v1120
        %v1231 = vrot.slane %v1230, 4
        %v1232 = vadd.f32 %v1230, %v1231
        %v1233 = vrot.slane %v1232, 2
        %v1234 = vadd.f32 %v1232, %v1233
        %v1235 = vrot.slane %v1234, 1
        %v1236 = vadd.f32 %v1234, %v1235
        %v1237 = vadd.f32 %v968, %v972
        %v1238 = vadd.f32 %v1237, %v978
        %v1239 = vadd.f32 %v1238, %v982
        %v1240 = vadd.f32 %v1239, %v988
        %v1241 = vadd.f32 %v1240, %v992
        %v1242 = vadd.f32 %v1241, %v998
        %v1243 = vadd.f32 %v1242, %v1002
        %v1244 = vadd.f32 %v1243, %v1008
        %v1245 = vadd.f32 %v1244, %v1012
        %v1246 = vadd.f32 %v1245, %v1018
        %v1247 = vadd.f32 %v1246, %v1022
        %v1248 = vadd.f32 %v1247, %v1028
        %v1249 = vadd.f32 %v1248, %v1032
        %v1250 = vadd.f32 %v1249, %v1038
        %v1251 = vadd.f32 %v1250, %v1042
        %v1252 = vadd.f32 %v1251, %v1048
        %v1253 = vadd.f32 %v1252, %v1052
        %v1254 = vadd.f32 %v1253, %v1058
        %v1255 = vadd.f32 %v1254, %v1062
        %v1256 = vadd.f32 %v1255, %v1068
        %v1257 = vadd.f32 %v1256, %v1072
        %v1258 = vadd.f32 %v1257, %v1078
        %v1259 = vadd.f32 %v1258, %v1082
        %v1260 = vadd.f32 %v1259, %v1088
        %v1261 = vadd.f32 %v1260, %v1092
        %v1262 = vadd.f32 %v1261, %v1098
        %v1263 = vadd.f32 %v1262, %v1102
        %v1264 = vadd.f32 %v1263, %v1108
        %v1265 = vadd.f32 %v1264, %v1112
        %v1266 = vadd.f32 %v1265, %v1118
        %v1267 = vadd.f32 %v1266, %v1122
        %v1268 = vrot.slane %v1267, 4
        %v1269 = vadd.f32 %v1267, %v1268
        %v1270 = vrot.slane %v1269, 2
        %v1271 = vadd.f32 %v1269, %v1270
        %v1272 = vrot.slane %v1271, 1
        %v1273 = vadd.f32 %v1271, %v1272
        %v1274 = vrcp.pop 256.0
        %v1275 = vmul.f32 %v1162, %v1274
        %v1276 = vmul.f32 %v1199, %v1274
        %v1277 = vmul.f32 %v1236, %v1274
        %v1278 = vmul.f32 %v1273, %v1274
        %v1280 = vlaneseq
        %v1281 = vshrl.u32 %v1280, 7
        %v1282 = vsub.s32 0, %v1281
        %v1283 = vrot.slane %v1124, %v1282
        %v1284 = vlaneseq
        %v1285 = vshrl.u32 %v1284, 7
        %v1286 = vsub.s32 1, %v1285
        %v1287 = vrot.slane %v1124, %v1286
        %v1288 = vlaneseq
        %v1289 = vshrl.u32 %v1288, 7
        %v1290 = vsub.s32 2, %v1289
        %v1291 = vrot.slane %v1124, %v1290
        %v1292 = vlaneseq
        %v1293 = vshrl.u32 %v1292, 7
        %v1294 = vsub.s32 3, %v1293
        %v1295 = vrot.slane %v1124, %v1294
        %v1300 = vmul.f32 %v1275, %v1283
        %v1301 = vmul.f32 %v1276, %v1287
        %v1302 = vmul.f32 %v1277, %v1291
        %v1303 = vmul.f32 %v1278, %v1295
        %v1305 = vlaneseq
        %v1306 = vshrl.u32 %v1305, 7
        %v1307 = vsub.s32 0, %v1306
        %v1308 = vrot.slane %v1125, %v1307
        %v1309 = vlaneseq
        %v1310 = vshrl.u32 %v1309, 7
        %v1311 = vsub.s32 1, %v1310
        %v1312 = vrot.slane %v1125, %v1311
        %v1313 = vlaneseq
        %v1314 = vshrl.u32 %v1313, 7
        %v1315 = vsub.s32 2, %v1314
        %v1316 = vrot.slane %v1125, %v1315
        %v1317 = vlaneseq
        %v1318 = vshrl.u32 %v1317, 7
        %v1319 = vsub.s32 3, %v1318
        %v1320 = vrot.slane %v1125, %v1319
        %v1325 = vadd.f32 %v1300, %v1308
        %v1326 = vadd.f32 %v1301, %v1312
        %v1327 = vadd.f32 %v1302, %v1316
        %v1328 = vadd.f32 %v1303, %v1320
        %v1329 = vld [vmem:[%s4] sm:$0xff]
        %v1330 = vld [vmem:[%s4 + $0x8] sm:$0xff]
        %v1331 = vld [vmem:[%s4 + $0x10] sm:$0xff]
        %v1332 = vld [vmem:[%s4 + $0x18] sm:$0xff]
        %v1333 = vld [vmem:[%s4 + $0x20] sm:$0xff]
        %v1334 = vld [vmem:[%s4 + $0x28] sm:$0xff]
        %v1335 = vld [vmem:[%s4 + $0x30] sm:$0xff]
        %v1336 = vld [vmem:[%s4 + $0x38] sm:$0xff]
        %v1337 = vld [vmem:[%s4 + $0x40] sm:$0xff]
        %v1338 = vld [vmem:[%s4 + $0x48] sm:$0xff]
        %v1339 = vld [vmem:[%s4 + $0x50] sm:$0xff]
        %v1340 = vld [vmem:[%s4 + $0x58] sm:$0xff]
        %v1341 = vld [vmem:[%s4 + $0x60] sm:$0xff]
        %v1342 = vld [vmem:[%s4 + $0x68] sm:$0xff]
        %v1343 = vld [vmem:[%s4 + $0x70] sm:$0xff]
        %v1344 = vld [vmem:[%s4 + $0x78] sm:$0xff]
        %v1345 = vld [vmem:[%s4 + $0x80] sm:$0xff]
        %v1346 = vld [vmem:[%s4 + $0x88] sm:$0xff]
        %v1347 = vld [vmem:[%s4 + $0x90] sm:$0xff]
        %v1348 = vld [vmem:[%s4 + $0x98] sm:$0xff]
        %v1349 = vld [vmem:[%s4 + $0xa0] sm:$0xff]
        %v1350 = vld [vmem:[%s4 + $0xa8] sm:$0xff]
        %v1351 = vld [vmem:[%s4 + $0xb0] sm:$0xff]
        %v1352 = vld [vmem:[%s4 + $0xb8] sm:$0xff]
        %v1353 = vld [vmem:[%s4 + $0xc0] sm:$0xff]
        %v1354 = vld [vmem:[%s4 + $0xc8] sm:$0xff]
        %v1355 = vld [vmem:[%s4 + $0xd0] sm:$0xff]
        %v1356 = vld [vmem:[%s4 + $0xd8] sm:$0xff]
        %v1357 = vld [vmem:[%s4 + $0xe0] sm:$0xff]
        %v1358 = vld [vmem:[%s4 + $0xe8] sm:$0xff]
        %v1359 = vld [vmem:[%s4 + $0xf0] sm:$0xff]
        %v1360 = vld [vmem:[%s4 + $0xf8] sm:$0xff]
        %v1361 = vld [vmem:[%s4 + $0x100] sm:$0xff]
        %v1362 = vld [vmem:[%s4 + $0x108] sm:$0xff]
        %v1363 = vld [vmem:[%s4 + $0x110] sm:$0xff]
        %v1364 = vld [vmem:[%s4 + $0x118] sm:$0xff]
        %v1365 = vld [vmem:[%s4 + $0x120] sm:$0xff]
        %v1366 = vld [vmem:[%s4 + $0x128] sm:$0xff]
        %v1367 = vld [vmem:[%s4 + $0x130] sm:$0xff]
        %v1368 = vld [vmem:[%s4 + $0x138] sm:$0xff]
        %v1369 = vld [vmem:[%s4 + $0x140] sm:$0xff]
        %v1370 = vld [vmem:[%s4 + $0x148] sm:$0xff]
        %v1371 = vld [vmem:[%s4 + $0x150] sm:$0xff]
        %v1372 = vld [vmem:[%s4 + $0x158] sm:$0xff]
        %v1373 = vld [vmem:[%s4 + $0x160] sm:$0xff]
        %v1374 = vld [vmem:[%s4 + $0x168] sm:$0xff]
        %v1375 = vld [vmem:[%s4 + $0x170] sm:$0xff]
        %v1376 = vld [vmem:[%s4 + $0x178] sm:$0xff]
        %v1377 = vld [vmem:[%s4 + $0x180] sm:$0xff]
        %v1378 = vld [vmem:[%s4 + $0x188] sm:$0xff]
        %v1379 = vld [vmem:[%s4 + $0x190] sm:$0xff]
        %v1380 = vld [vmem:[%s4 + $0x198] sm:$0xff]
        %v1381 = vld [vmem:[%s4 + $0x1a0] sm:$0xff]
        %v1382 = vld [vmem:[%s4 + $0x1a8] sm:$0xff]
        %v1383 = vld [vmem:[%s4 + $0x1b0] sm:$0xff]
        %v1384 = vld [vmem:[%s4 + $0x1b8] sm:$0xff]
        %v1385 = vld [vmem:[%s4 + $0x1c0] sm:$0xff]
        %v1386 = vld [vmem:[%s4 + $0x1c8] sm:$0xff]
        %v1387 = vld [vmem:[%s4 + $0x1d0] sm:$0xff]
        %v1388 = vld [vmem:[%s4 + $0x1d8] sm:$0xff]
        %v1389 = vld [vmem:[%s4 + $0x1e0] sm:$0xff]
        %v1390 = vld [vmem:[%s4 + $0x1e8] sm:$0xff]
        %v1391 = vld [vmem:[%s4 + $0x1f0] sm:$0xff]
        %v1392 = vld [vmem:[%s4 + $0x1f8] sm:$0xff]
        %v1393 = vld [vmem:[%s5] sm:$0x1]
        %1394 = vmatprep.subr.mxu0 0.0
        %1395 = vmatpush1.msra.mxu0 %v1344
        %1396 = vmatprep.subr.mxu0 0.0
        %1397 = vmatpush1.msra.mxu0 %v1343
        %1398 = vmatprep.subr.mxu0 0.0
        %1399 = vmatpush1.msra.mxu0 %v1342
        %1400 = vmatprep.subr.mxu0 0.0
        %1401 = vmatpush1.msra.mxu0 %v1341
        %1402 = vmatprep.subr.mxu0 0.0
        %1403 = vmatpush1.msra.mxu0 %v1340
        %1404 = vmatprep.subr.mxu0 0.0
        %1405 = vmatpush1.msra.mxu0 %v1339
        %1406 = vmatprep.subr.mxu0 0.0
        %1407 = vmatpush1.msra.mxu0 %v1338
        %1408 = vmatprep.subr.mxu0 0.0
        %1409 = vmatpush1.msra.mxu0 %v1337
        %1410 = vmatprep.subr.mxu0 0.0
        %1411 = vmatpush1.msra.mxu0 %v1336
        %1412 = vmatprep.subr.mxu0 0.0
        %1413 = vmatpush1.msra.mxu0 %v1335
        %1414 = vmatprep.subr.mxu0 0.0
        %1415 = vmatpush1.msra.mxu0 %v1334
        %1416 = vmatprep.subr.mxu0 0.0
        %1417 = vmatpush1.msra.mxu0 %v1333
        %1418 = vmatprep.subr.mxu0 0.0
        %1419 = vmatpush1.msra.mxu0 %v1332
        %1420 = vmatprep.subr.mxu0 0.0
        %1421 = vmatpush1.msra.mxu0 %v1331
        %1422 = vmatprep.subr.mxu0 0.0
        %1423 = vmatpush1.msra.mxu0 %v1330
        %1424 = vmatprep.subr.mxu0 0.0
        %1425 = vmatpush1.msra.mxu0 %v1329
        %1426 = vmatprep.subr.mxu0 0.0
        %1427 = vmatpush2.msra.mxu0 %v1360
        %1428 = vmatprep.subr.mxu0 0.0
        %1429 = vmatpush2.msra.mxu0 %v1359
        %1430 = vmatprep.subr.mxu0 0.0
        %1431 = vmatpush2.msra.mxu0 %v1358
        %1432 = vmatprep.subr.mxu0 0.0
        %1433 = vmatpush2.msra.mxu0 %v1357
        %1434 = vmatprep.subr.mxu0 0.0
        %1435 = vmatpush2.msra.mxu0 %v1356
        %1436 = vmatprep.subr.mxu0 0.0
        %1437 = vmatpush2.msra.mxu0 %v1355
        %1438 = vmatprep.subr.mxu0 0.0
        %1439 = vmatpush2.msra.mxu0 %v1354
        %1440 = vmatprep.subr.mxu0 0.0
        %1441 = vmatpush2.msra.mxu0 %v1353
        %1442 = vmatprep.subr.mxu0 0.0
        %1443 = vmatpush2.msra.mxu0 %v1352
        %1444 = vmatprep.subr.mxu0 0.0
        %1445 = vmatpush2.msra.mxu0 %v1351
        %1446 = vmatprep.subr.mxu0 0.0
        %1447 = vmatpush2.msra.mxu0 %v1350
        %1448 = vmatprep.subr.mxu0 0.0
        %1449 = vmatpush2.msra.mxu0 %v1349
        %1450 = vmatprep.subr.mxu0 0.0
        %1451 = vmatpush2.msra.mxu0 %v1348
        %1452 = vmatprep.subr.mxu0 0.0
        %1453 = vmatpush2.msra.mxu0 %v1347
        %1454 = vmatprep.subr.mxu0 0.0
        %1455 = vmatpush2.msra.mxu0 %v1346
        %1456 = vmatprep.subr.mxu0 0.0
        %1457 = vmatpush2.msra.mxu0 %v1345
        %1458 = vmatprep.mubr.f32.mxu0 %v1326
        %1459 = vmatmul.mubr.f32.gmra.mxu0 %v1325
        %v1460 = vpop.f32.mrf.mxu0
        %v1461 = vadd.f32 %v1393, %v1460
        %v1462 = vpop.f32.mrf.mxu0
        %1463 = vdwg.mxu0
        %1464 = vmatprep.subr.mxu0 0.0
        %1465 = vmatpush1.msra.mxu0 %v1376
        %1466 = vmatprep.subr.mxu0 0.0
        %1467 = vmatpush1.msra.mxu0 %v1375
        %1468 = vmatprep.subr.mxu0 0.0
        %1469 = vmatpush1.msra.mxu0 %v1374
        %1470 = vmatprep.subr.mxu0 0.0
        %1471 = vmatpush1.msra.mxu0 %v1373
        %1472 = vmatprep.subr.mxu0 0.0
        %1473 = vmatpush1.msra.mxu0 %v1372
        %1474 = vmatprep.subr.mxu0 0.0
        %1475 = vmatpush1.msra.mxu0 %v1371
        %1476 = vmatprep.subr.mxu0 0.0
        %1477 = vmatpush1.msra.mxu0 %v1370
        %1478 = vmatprep.subr.mxu0 0.0
        %1479 = vmatpush1.msra.mxu0 %v1369
        %1480 = vmatprep.subr.mxu0 0.0
        %1481 = vmatpush1.msra.mxu0 %v1368
        %1482 = vmatprep.subr.mxu0 0.0
        %1483 = vmatpush1.msra.mxu0 %v1367
        %1484 = vmatprep.subr.mxu0 0.0
        %1485 = vmatpush1.msra.mxu0 %v1366
        %1486 = vmatprep.subr.mxu0 0.0
        %1487 = vmatpush1.msra.mxu0 %v1365
        %1488 = vmatprep.subr.mxu0 0.0
        %1489 = vmatpush1.msra.mxu0 %v1364
        %1490 = vmatprep.subr.mxu0 0.0
        %1491 = vmatpush1.msra.mxu0 %v1363
        %1492 = vmatprep.subr.mxu0 0.0
        %1493 = vmatpush1.msra.mxu0 %v1362
        %1494 = vmatprep.subr.mxu0 0.0
        %1495 = vmatpush1.msra.mxu0 %v1361
        %1496 = vmatprep.subr.mxu0 0.0
        %1497 = vmatpush2.msra.mxu0 %v1392
        %1498 = vmatprep.subr.mxu0 0.0
        %1499 = vmatpush2.msra.mxu0 %v1391
        %1500 = vmatprep.subr.mxu0 0.0
        %1501 = vmatpush2.msra.mxu0 %v1390
        %1502 = vmatprep.subr.mxu0 0.0
        %1503 = vmatpush2.msra.mxu0 %v1389
        %1504 = vmatprep.subr.mxu0 0.0
        %1505 = vmatpush2.msra.mxu0 %v1388
        %1506 = vmatprep.subr.mxu0 0.0
        %1507 = vmatpush2.msra.mxu0 %v1387
        %1508 = vmatprep.subr.mxu0 0.0
        %1509 = vmatpush2.msra.mxu0 %v1386
        %1510 = vmatprep.subr.mxu0 0.0
        %1511 = vmatpush2.msra.mxu0 %v1385
        %1512 = vmatprep.subr.mxu0 0.0
        %1513 = vmatpush2.msra.mxu0 %v1384
        %1514 = vmatprep.subr.mxu0 0.0
        %1515 = vmatpush2.msra.mxu0 %v1383
        %1516 = vmatprep.subr.mxu0 0.0
        %1517 = vmatpush2.msra.mxu0 %v1382
        %1518 = vmatprep.subr.mxu0 0.0
        %1519 = vmatpush2.msra.mxu0 %v1381
        %1520 = vmatprep.subr.mxu0 0.0
        %1521 = vmatpush2.msra.mxu0 %v1380
        %1522 = vmatprep.subr.mxu0 0.0
        %1523 = vmatpush2.msra.mxu0 %v1379
        %1524 = vmatprep.subr.mxu0 0.0
        %1525 = vmatpush2.msra.mxu0 %v1378
        %1526 = vmatprep.subr.mxu0 0.0
        %1527 = vmatpush2.msra.mxu0 %v1377
        %1528 = vmatprep.mubr.f32.mxu0 %v1328
        %1529 = vmatmul.mubr.f32.gmra.mxu0 %v1327
        %v1530 = vpop.f32.mrf.mxu0
        %v1531 = vadd.f32 %v1461, %v1530
        %v1532 = vpop.f32.mrf.mxu0
        %1533 = vdwg.mxu0
        %v1534 = vmax.f32 %v1531, 0.0
        %v1535 = vld [vmem:[%s6] sm:$0xff]
        %v1536 = vld [vmem:[%s6 + $0x8] sm:$0xff]
        %v1537 = vld [vmem:[%s6 + $0x10] sm:$0xff]
        %v1538 = vld [vmem:[%s6 + $0x18] sm:$0xff]
        %v1539 = vld [vmem:[%s6 + $0x20] sm:$0xff]
        %v1540 = vld [vmem:[%s6 + $0x28] sm:$0xff]
        %v1541 = vld [vmem:[%s6 + $0x30] sm:$0xff]
        %v1542 = vld [vmem:[%s6 + $0x38] sm:$0xff]
        %v1543 = vld [vmem:[%s6 + $0x40] sm:$0xff]
        %v1544 = vld [vmem:[%s6 + $0x48] sm:$0xff]
        %v1545 = vld [vmem:[%s6 + $0x50] sm:$0xff]
        %v1546 = vld [vmem:[%s6 + $0x58] sm:$0xff]
        %v1547 = vld [vmem:[%s6 + $0x60] sm:$0xff]
        %v1548 = vld [vmem:[%s6 + $0x68] sm:$0xff]
        %v1549 = vld [vmem:[%s6 + $0x70] sm:$0xff]
        %v1550 = vld [vmem:[%s6 + $0x78] sm:$0xff]
        %v1551 = vld [vmem:[%s7] sm:$0xf]
        %v1553 = vlaneseq
        %v1554 = vshrl.u32 %v1553, 7
        %v1555 = vsub.s32 0, %v1554
        %v1556 = vrot.slane %v1551, %v1555
        %v1557 = vlaneseq
        %v1558 = vshrl.u32 %v1557, 7
        %v1559 = vsub.s32 1, %v1558
        %v1560 = vrot.slane %v1551, %v1559
        %v1561 = vlaneseq
        %v1562 = vshrl.u32 %v1561, 7
        %v1563 = vsub.s32 2, %v1562
        %v1564 = vrot.slane %v1551, %v1563
        %v1565 = vlaneseq
        %v1566 = vshrl.u32 %v1565, 7
        %v1567 = vsub.s32 3, %v1566
        %v1568 = vrot.slane %v1551, %v1567
        %vm1573 = vcmask 261120
        %v1575 = vsel %vm1573, %v1534, 0
        %1577 = vmatprep.subr.mxu0 0.0
        %1578 = vmatpush1.msra.mxu0 0.0
        %1579 = vmatprep.subr.mxu0 0.0
        %1580 = vmatpush1.msra.mxu0 0.0
        %1581 = vmatprep.subr.mxu0 0.0
        %1582 = vmatpush1.msra.mxu0 0.0
        %1583 = vmatprep.subr.mxu0 0.0
        %1584 = vmatpush1.msra.mxu0 0.0
        %1585 = vmatprep.subr.mxu0 0.0
        %1586 = vmatpush1.msra.mxu0 0.0
        %1587 = vmatprep.subr.mxu0 0.0
        %1588 = vmatpush1.msra.mxu0 0.0
        %1589 = vmatprep.subr.mxu0 0.0
        %1590 = vmatpush1.msra.mxu0 0.0
        %1591 = vmatprep.subr.mxu0 0.0
        %1592 = vmatpush1.msra.mxu0 0.0
        %1593 = vmatprep.subr.mxu0 0.0
        %1594 = vmatpush1.msra.mxu0 0.0
        %1595 = vmatprep.subr.mxu0 0.0
        %1596 = vmatpush1.msra.mxu0 0.0
        %1597 = vmatprep.subr.mxu0 0.0
        %1598 = vmatpush1.msra.mxu0 0.0
        %1599 = vmatprep.subr.mxu0 0.0
        %1600 = vmatpush1.msra.mxu0 0.0
        %1601 = vmatprep.subr.mxu0 %v1548
        %1602 = vmatpush1.msra.mxu0 %v1547
        %1603 = vmatprep.subr.mxu0 %v1544
        %1604 = vmatpush1.msra.mxu0 %v1543
        %1605 = vmatprep.subr.mxu0 %v1540
        %1606 = vmatpush1.msra.mxu0 %v1539
        %1607 = vmatprep.subr.mxu0 %v1536
        %1608 = vmatpush1.msra.mxu0 %v1535
        %1609 = vmatprep.subr.mxu0 0.0
        %1610 = vmatpush2.msra.mxu0 0.0
        %1611 = vmatprep.subr.mxu0 0.0
        %1612 = vmatpush2.msra.mxu0 0.0
        %1613 = vmatprep.subr.mxu0 0.0
        %1614 = vmatpush2.msra.mxu0 0.0
        %1615 = vmatprep.subr.mxu0 0.0
        %1616 = vmatpush2.msra.mxu0 0.0
        %1617 = vmatprep.subr.mxu0 0.0
        %1618 = vmatpush2.msra.mxu0 0.0
        %1619 = vmatprep.subr.mxu0 0.0
        %1620 = vmatpush2.msra.mxu0 0.0
        %1621 = vmatprep.subr.mxu0 0.0
        %1622 = vmatpush2.msra.mxu0 0.0
        %1623 = vmatprep.subr.mxu0 0.0
        %1624 = vmatpush2.msra.mxu0 0.0
        %1625 = vmatprep.subr.mxu0 0.0
        %1626 = vmatpush2.msra.mxu0 0.0
        %1627 = vmatprep.subr.mxu0 0.0
        %1628 = vmatpush2.msra.mxu0 0.0
        %1629 = vmatprep.subr.mxu0 0.0
        %1630 = vmatpush2.msra.mxu0 0.0
        %1631 = vmatprep.subr.mxu0 0.0
        %1632 = vmatpush2.msra.mxu0 0.0
        %1633 = vmatprep.subr.mxu0 0.0
        %1634 = vmatpush2.msra.mxu0 0.0
        %1635 = vmatprep.subr.mxu0 0.0
        %1636 = vmatpush2.msra.mxu0 0.0
        %1637 = vmatprep.subr.mxu0 0.0
        %1638 = vmatpush2.msra.mxu0 0.0
        %1639 = vmatprep.subr.mxu0 0.0
        %1640 = vmatpush2.msra.mxu0 0.0
        %1641 = vmatprep.mubr.f32.mxu0 0.0
        %1642 = vmatmul.mubr.f32.gmra.mxu0 %v1575
        %v1643 = vpop.f32.mrf.mxu0
        %v1644 = vadd.f32 %v1556, %v1643
        %v1645 = vpop.f32.mrf.mxu0
        %v1646 = vadd.f32 %v1560, %v1645
        %1647 = vdwg.mxu0
        %1648 = vmatprep.subr.mxu0 0.0
        %1649 = vmatpush1.msra.mxu0 0.0
        %1650 = vmatprep.subr.mxu0 0.0
        %1651 = vmatpush1.msra.mxu0 0.0
        %1652 = vmatprep.subr.mxu0 0.0
        %1653 = vmatpush1.msra.mxu0 0.0
        %1654 = vmatprep.subr.mxu0 0.0
        %1655 = vmatpush1.msra.mxu0 0.0
        %1656 = vmatprep.subr.mxu0 0.0
        %1657 = vmatpush1.msra.mxu0 0.0
        %1658 = vmatprep.subr.mxu0 0.0
        %1659 = vmatpush1.msra.mxu0 0.0
        %1660 = vmatprep.subr.mxu0 0.0
        %1661 = vmatpush1.msra.mxu0 0.0
        %1662 = vmatprep.subr.mxu0 0.0
        %1663 = vmatpush1.msra.mxu0 0.0
        %1664 = vmatprep.subr.mxu0 0.0
        %1665 = vmatpush1.msra.mxu0 0.0
        %1666 = vmatprep.subr.mxu0 0.0
        %1667 = vmatpush1.msra.mxu0 0.0
        %1668 = vmatprep.subr.mxu0 0.0
        %1669 = vmatpush1.msra.mxu0 0.0
        %1670 = vmatprep.subr.mxu0 0.0
        %1671 = vmatpush1.msra.mxu0 0.0
        %1672 = vmatprep.subr.mxu0 %v1550
        %1673 = vmatpush1.msra.mxu0 %v1549
        %1674 = vmatprep.subr.mxu0 %v1546
        %1675 = vmatpush1.msra.mxu0 %v1545
        %1676 = vmatprep.subr.mxu0 %v1542
        %1677 = vmatpush1.msra.mxu0 %v1541
        %1678 = vmatprep.subr.mxu0 %v1538
        %1679 = vmatpush1.msra.mxu0 %v1537
        %1680 = vmatprep.subr.mxu0 0.0
        %1681 = vmatpush2.msra.mxu0 0.0
        %1682 = vmatprep.subr.mxu0 0.0
        %1683 = vmatpush2.msra.mxu0 0.0
        %1684 = vmatprep.subr.mxu0 0.0
        %1685 = vmatpush2.msra.mxu0 0.0
        %1686 = vmatprep.subr.mxu0 0.0
        %1687 = vmatpush2.msra.mxu0 0.0
        %1688 = vmatprep.subr.mxu0 0.0
        %1689 = vmatpush2.msra.mxu0 0.0
        %1690 = vmatprep.subr.mxu0 0.0
        %1691 = vmatpush2.msra.mxu0 0.0
        %1692 = vmatprep.subr.mxu0 0.0
        %1693 = vmatpush2.msra.mxu0 0.0
        %1694 = vmatprep.subr.mxu0 0.0
        %1695 = vmatpush2.msra.mxu0 0.0
        %1696 = vmatprep.subr.mxu0 0.0
        %1697 = vmatpush2.msra.mxu0 0.0
        %1698 = vmatprep.subr.mxu0 0.0
        %1699 = vmatpush2.msra.mxu0 0.0
        %1700 = vmatprep.subr.mxu0 0.0
        %1701 = vmatpush2.msra.mxu0 0.0
        %1702 = vmatprep.subr.mxu0 0.0
        %1703 = vmatpush2.msra.mxu0 0.0
        %1704 = vmatprep.subr.mxu0 0.0
        %1705 = vmatpush2.msra.mxu0 0.0
        %1706 = vmatprep.subr.mxu0 0.0
        %1707 = vmatpush2.msra.mxu0 0.0
        %1708 = vmatprep.subr.mxu0 0.0
        %1709 = vmatpush2.msra.mxu0 0.0
        %1710 = vmatprep.subr.mxu0 0.0
        %1711 = vmatpush2.msra.mxu0 0.0
        %1712 = vmatprep.mubr.f32.mxu0 0.0
        %1713 = vmatmul.mubr.f32.gmra.mxu0 %v1575
        %v1714 = vpop.f32.mrf.mxu0
        %v1715 = vadd.f32 %v1564, %v1714
        %v1716 = vpop.f32.mrf.mxu0
        %v1717 = vadd.f32 %v1568, %v1716
        %1718 = vdwg.mxu0
        %v1719 = vxor.u32 %v1644, 2147483648
        %v1720 = vxor.u32 %v1646, 2147483648
        %v1721 = vxor.u32 %v1715, 2147483648
        %v1722 = vxor.u32 %v1717, 2147483648
        %v1723 = vmul.f32 %v1719, 1.442695
        %v1724 = vpow.pop %v1723
        %v1725 = vmul.f32 %v1720, 1.442695
        %v1726 = vpow.pop %v1725
        %v1727 = vmul.f32 %v1721, 1.442695
        %v1728 = vpow.pop %v1727
        %v1729 = vmul.f32 %v1722, 1.442695
        %v1730 = vpow.pop %v1729
        %v1731 = vadd.f32 %v1724, 1.0
        %v1732 = vadd.f32 %v1726, 1.0
        %v1733 = vadd.f32 %v1728, 1.0
        %v1734 = vadd.f32 %v1730, 1.0
        %v1735 = vrcp.pop %v1731
        %v1736 = vmul.f32 1.0, %v1735
        %v1737 = vrcp.pop %v1732
        %v1738 = vmul.f32 1.0, %v1737
        %v1739 = vrcp.pop %v1733
        %v1740 = vmul.f32 1.0, %v1739
        %v1741 = vrcp.pop %v1734
        %v1742 = vmul.f32 1.0, %v1741
        %v1747 = vcombine.low %v1736, %v1738
        %v1748 = vcombine.low %v1740, %v1742
        %v1750 = vunpack.c.l.s4 1966171168
        %v1751 = vunpack.c.0.s8 %v1750
        %v1752 = vlaneseq
        %v1753 = vshrl.u32 %v1752, 7
        %v1754 = vsub.s32 %v1751, %v1753
        %v1755 = vrot.slane %v1747, %v1754
        %v1757 = vunpack.c.l.s4 1966171168
        %v1758 = vunpack.c.0.s8 %v1757
        %v1759 = vlaneseq
        %v1760 = vshrl.u32 %v1759, 7
        %v1761 = vsub.s32 %v1758, %v1760
        %v1762 = vrot.slane %v1748, %v1761
        %v1763 = vcombine.low %v1755, %v1762
        %v1765 = vunpack.c.l.s4 1966171168
        %v1766 = vunpack.c.0.s8 %v1765
        %v1767 = vlaneseq
        %v1768 = vshrl.u32 %v1767, 7
        %v1769 = vsub.s32 %v1766, %v1768
        %v1770 = vrot.slane %v1763, %v1769
        %v1772 = vmul.f32 %v1124, %v1770
        %v1773 = vmul.f32 %v1125, %v1770
        %v1774 = vld [vmem:[%s8] sm:$0xff]
        %v1775 = vld [vmem:[%s8 + $0x8] sm:$0xff]
        %v1776 = vld [vmem:[%s8 + $0x10] sm:$0xff]
        %v1777 = vld [vmem:[%s8 + $0x18] sm:$0xff]
        %v1778 = vld [vmem:[%s8 + $0x20] sm:$0xff]
        %v1779 = vld [vmem:[%s8 + $0x28] sm:$0xff]
        %v1780 = vld [vmem:[%s8 + $0x30] sm:$0xff]
        %v1781 = vld [vmem:[%s8 + $0x38] sm:$0xff]
        %v1782 = vld [vmem:[%s8 + $0x40] sm:$0xff]
        %v1783 = vld [vmem:[%s8 + $0x48] sm:$0xff]
        %v1784 = vld [vmem:[%s8 + $0x50] sm:$0xff]
        %v1785 = vld [vmem:[%s8 + $0x58] sm:$0xff]
        %v1786 = vld [vmem:[%s8 + $0x60] sm:$0xff]
        %v1787 = vld [vmem:[%s8 + $0x68] sm:$0xff]
        %v1788 = vld [vmem:[%s8 + $0x70] sm:$0xff]
        %v1789 = vld [vmem:[%s8 + $0x78] sm:$0xff]
        %v1790 = vld [vmem:[%s8 + $0x80] sm:$0xff]
        %v1791 = vld [vmem:[%s8 + $0x88] sm:$0xff]
        %v1792 = vld [vmem:[%s8 + $0x90] sm:$0xff]
        %v1793 = vld [vmem:[%s8 + $0x98] sm:$0xff]
        %v1794 = vld [vmem:[%s8 + $0xa0] sm:$0xff]
        %v1795 = vld [vmem:[%s8 + $0xa8] sm:$0xff]
        %v1796 = vld [vmem:[%s8 + $0xb0] sm:$0xff]
        %v1797 = vld [vmem:[%s8 + $0xb8] sm:$0xff]
        %v1798 = vld [vmem:[%s8 + $0xc0] sm:$0xff]
        %v1799 = vld [vmem:[%s8 + $0xc8] sm:$0xff]
        %v1800 = vld [vmem:[%s8 + $0xd0] sm:$0xff]
        %v1801 = vld [vmem:[%s8 + $0xd8] sm:$0xff]
        %v1802 = vld [vmem:[%s8 + $0xe0] sm:$0xff]
        %v1803 = vld [vmem:[%s8 + $0xe8] sm:$0xff]
        %v1804 = vld [vmem:[%s8 + $0xf0] sm:$0xff]
        %v1805 = vld [vmem:[%s8 + $0xf8] sm:$0xff]
        %v1806 = vld [vmem:[%s8 + $0x100] sm:$0xff]
        %v1807 = vld [vmem:[%s8 + $0x108] sm:$0xff]
        %v1808 = vld [vmem:[%s8 + $0x110] sm:$0xff]
        %v1809 = vld [vmem:[%s8 + $0x118] sm:$0xff]
        %v1810 = vld [vmem:[%s8 + $0x120] sm:$0xff]
        %v1811 = vld [vmem:[%s8 + $0x128] sm:$0xff]
        %v1812 = vld [vmem:[%s8 + $0x130] sm:$0xff]
        %v1813 = vld [vmem:[%s8 + $0x138] sm:$0xff]
        %v1814 = vld [vmem:[%s8 + $0x140] sm:$0xff]
        %v1815 = vld [vmem:[%s8 + $0x148] sm:$0xff]
        %v1816 = vld [vmem:[%s8 + $0x150] sm:$0xff]
        %v1817 = vld [vmem:[%s8 + $0x158] sm:$0xff]
        %v1818 = vld [vmem:[%s8 + $0x160] sm:$0xff]
        %v1819 = vld [vmem:[%s8 + $0x168] sm:$0xff]
        %v1820 = vld [vmem:[%s8 + $0x170] sm:$0xff]
        %v1821 = vld [vmem:[%s8 + $0x178] sm:$0xff]
        %v1822 = vld [vmem:[%s8 + $0x180] sm:$0xff]
        %v1823 = vld [vmem:[%s8 + $0x188] sm:$0xff]
        %v1824 = vld [vmem:[%s8 + $0x190] sm:$0xff]
        %v1825 = vld [vmem:[%s8 + $0x198] sm:$0xff]
        %v1826 = vld [vmem:[%s8 + $0x1a0] sm:$0xff]
        %v1827 = vld [vmem:[%s8 + $0x1a8] sm:$0xff]
        %v1828 = vld [vmem:[%s8 + $0x1b0] sm:$0xff]
        %v1829 = vld [vmem:[%s8 + $0x1b8] sm:$0xff]
        %v1830 = vld [vmem:[%s8 + $0x1c0] sm:$0xff]
        %v1831 = vld [vmem:[%s8 + $0x1c8] sm:$0xff]
        %v1832 = vld [vmem:[%s8 + $0x1d0] sm:$0xff]
        %v1833 = vld [vmem:[%s8 + $0x1d8] sm:$0xff]
        %v1834 = vld [vmem:[%s8 + $0x1e0] sm:$0xff]
        %v1835 = vld [vmem:[%s8 + $0x1e8] sm:$0xff]
        %v1836 = vld [vmem:[%s8 + $0x1f0] sm:$0xff]
        %v1837 = vld [vmem:[%s8 + $0x1f8] sm:$0xff]
        %v1839 = vlaneseq
        %v1840 = vshrl.u32 %v1839, 7
        %v1841 = vsub.s32 0, %v1840
        %v1842 = vrot.slane %v1772, %v1841
        %v1843 = vlaneseq
        %v1844 = vshrl.u32 %v1843, 7
        %v1845 = vsub.s32 1, %v1844
        %v1846 = vrot.slane %v1772, %v1845
        %v1847 = vlaneseq
        %v1848 = vshrl.u32 %v1847, 7
        %v1849 = vsub.s32 2, %v1848
        %v1850 = vrot.slane %v1772, %v1849
        %v1851 = vlaneseq
        %v1852 = vshrl.u32 %v1851, 7
        %v1853 = vsub.s32 3, %v1852
        %v1854 = vrot.slane %v1772, %v1853
        %v1859 = vmul.f32 %v773, %v1842
        %v1860 = vmul.f32 %v775, %v1846
        %v1861 = vmul.f32 %v966, %v1850
        %v1862 = vmul.f32 %v968, %v1854
        %v1863 = vmul.f32 %v777, %v1842
        %v1864 = vmul.f32 %v779, %v1846
        %v1865 = vmul.f32 %v970, %v1850
        %v1866 = vmul.f32 %v972, %v1854
        %v1867 = vmul.f32 %v783, %v1842
        %v1868 = vmul.f32 %v785, %v1846
        %v1869 = vmul.f32 %v976, %v1850
        %v1870 = vmul.f32 %v978, %v1854
        %v1871 = vmul.f32 %v787, %v1842
        %v1872 = vmul.f32 %v789, %v1846
        %v1873 = vmul.f32 %v980, %v1850
        %v1874 = vmul.f32 %v982, %v1854
        %v1875 = vmul.f32 %v793, %v1842
        %v1876 = vmul.f32 %v795, %v1846
        %v1877 = vmul.f32 %v986, %v1850
        %v1878 = vmul.f32 %v988, %v1854
        %v1879 = vmul.f32 %v797, %v1842
        %v1880 = vmul.f32 %v799, %v1846
        %v1881 = vmul.f32 %v990, %v1850
        %v1882 = vmul.f32 %v992, %v1854
        %v1883 = vmul.f32 %v803, %v1842
        %v1884 = vmul.f32 %v805, %v1846
        %v1885 = vmul.f32 %v996, %v1850
        %v1886 = vmul.f32 %v998, %v1854
        %v1887 = vmul.f32 %v807, %v1842
        %v1888 = vmul.f32 %v809, %v1846
        %v1889 = vmul.f32 %v1000, %v1850
        %v1890 = vmul.f32 %v1002, %v1854
        %v1891 = vmul.f32 %v813, %v1842
        %v1892 = vmul.f32 %v815, %v1846
        %v1893 = vmul.f32 %v1006, %v1850
        %v1894 = vmul.f32 %v1008, %v1854
        %v1895 = vmul.f32 %v817, %v1842
        %v1896 = vmul.f32 %v819, %v1846
        %v1897 = vmul.f32 %v1010, %v1850
        %v1898 = vmul.f32 %v1012, %v1854
        %v1899 = vmul.f32 %v823, %v1842
        %v1900 = vmul.f32 %v825, %v1846
        %v1901 = vmul.f32 %v1016, %v1850
        %v1902 = vmul.f32 %v1018, %v1854
        %v1903 = vmul.f32 %v827, %v1842
        %v1904 = vmul.f32 %v829, %v1846
        %v1905 = vmul.f32 %v1020, %v1850
        %v1906 = vmul.f32 %v1022, %v1854
        %v1907 = vmul.f32 %v833, %v1842
        %v1908 = vmul.f32 %v835, %v1846
        %v1909 = vmul.f32 %v1026, %v1850
        %v1910 = vmul.f32 %v1028, %v1854
        %v1911 = vmul.f32 %v837, %v1842
        %v1912 = vmul.f32 %v839, %v1846
        %v1913 = vmul.f32 %v1030, %v1850
        %v1914 = vmul.f32 %v1032, %v1854
        %v1915 = vmul.f32 %v843, %v1842
        %v1916 = vmul.f32 %v845, %v1846
        %v1917 = vmul.f32 %v1036, %v1850
        %v1918 = vmul.f32 %v1038, %v1854
        %v1919 = vmul.f32 %v847, %v1842
        %v1920 = vmul.f32 %v849, %v1846
        %v1921 = vmul.f32 %v1040, %v1850
        %v1922 = vmul.f32 %v1042, %v1854
        %v1923 = vmul.f32 %v853, %v1842
        %v1924 = vmul.f32 %v855, %v1846
        %v1925 = vmul.f32 %v1046, %v1850
        %v1926 = vmul.f32 %v1048, %v1854
        %v1927 = vmul.f32 %v857, %v1842
        %v1928 = vmul.f32 %v859, %v1846
        %v1929 = vmul.f32 %v1050, %v1850
        %v1930 = vmul.f32 %v1052, %v1854
        %v1931 = vmul.f32 %v863, %v1842
        %v1932 = vmul.f32 %v865, %v1846
        %v1933 = vmul.f32 %v1056, %v1850
        %v1934 = vmul.f32 %v1058, %v1854
        %v1935 = vmul.f32 %v867, %v1842
        %v1936 = vmul.f32 %v869, %v1846
        %v1937 = vmul.f32 %v1060, %v1850
        %v1938 = vmul.f32 %v1062, %v1854
        %v1939 = vmul.f32 %v873, %v1842
        %v1940 = vmul.f32 %v875, %v1846
        %v1941 = vmul.f32 %v1066, %v1850
        %v1942 = vmul.f32 %v1068, %v1854
        %v1943 = vmul.f32 %v877, %v1842
        %v1944 = vmul.f32 %v879, %v1846
        %v1945 = vmul.f32 %v1070, %v1850
        %v1946 = vmul.f32 %v1072, %v1854
        %v1947 = vmul.f32 %v883, %v1842
        %v1948 = vmul.f32 %v885, %v1846
        %v1949 = vmul.f32 %v1076, %v1850
        %v1950 = vmul.f32 %v1078, %v1854
        %v1951 = vmul.f32 %v887, %v1842
        %v1952 = vmul.f32 %v889, %v1846
        %v1953 = vmul.f32 %v1080, %v1850
        %v1954 = vmul.f32 %v1082, %v1854
        %v1955 = vmul.f32 %v893, %v1842
        %v1956 = vmul.f32 %v895, %v1846
        %v1957 = vmul.f32 %v1086, %v1850
        %v1958 = vmul.f32 %v1088, %v1854
        %v1959 = vmul.f32 %v897, %v1842
        %v1960 = vmul.f32 %v899, %v1846
        %v1961 = vmul.f32 %v1090, %v1850
        %v1962 = vmul.f32 %v1092, %v1854
        %v1963 = vmul.f32 %v903, %v1842
        %v1964 = vmul.f32 %v905, %v1846
        %v1965 = vmul.f32 %v1096, %v1850
        %v1966 = vmul.f32 %v1098, %v1854
        %v1967 = vmul.f32 %v907, %v1842
        %v1968 = vmul.f32 %v909, %v1846
        %v1969 = vmul.f32 %v1100, %v1850
        %v1970 = vmul.f32 %v1102, %v1854
        %v1971 = vmul.f32 %v913, %v1842
        %v1972 = vmul.f32 %v915, %v1846
        %v1973 = vmul.f32 %v1106, %v1850
        %v1974 = vmul.f32 %v1108, %v1854
        %v1975 = vmul.f32 %v917, %v1842
        %v1976 = vmul.f32 %v919, %v1846
        %v1977 = vmul.f32 %v1110, %v1850
        %v1978 = vmul.f32 %v1112, %v1854
        %v1979 = vmul.f32 %v923, %v1842
        %v1980 = vmul.f32 %v925, %v1846
        %v1981 = vmul.f32 %v1116, %v1850
        %v1982 = vmul.f32 %v1118, %v1854
        %v1983 = vmul.f32 %v927, %v1842
        %v1984 = vmul.f32 %v929, %v1846
        %v1985 = vmul.f32 %v1120, %v1850
        %v1986 = vmul.f32 %v1122, %v1854
        %v1987 = vpack.c.bf16 %v1863, %v1859
        %v1988 = vpack.c.bf16 %v1864, %v1860
        %v1989 = vpack.c.bf16 %v1865, %v1861
        %v1990 = vpack.c.bf16 %v1866, %v1862
        %v1991 = vpack.c.bf16 %v1871, %v1867
        %v1992 = vpack.c.bf16 %v1872, %v1868
        %v1993 = vpack.c.bf16 %v1873, %v1869
        %v1994 = vpack.c.bf16 %v1874, %v1870
        %v1995 = vpack.c.bf16 %v1879, %v1875
        %v1996 = vpack.c.bf16 %v1880, %v1876
        %v1997 = vpack.c.bf16 %v1881, %v1877
        %v1998 = vpack.c.bf16 %v1882, %v1878
        %v1999 = vpack.c.bf16 %v1887, %v1883
        %v2000 = vpack.c.bf16 %v1888, %v1884
        %v2001 = vpack.c.bf16 %v1889, %v1885
        %v2002 = vpack.c.bf16 %v1890, %v1886
        %v2003 = vpack.c.bf16 %v1895, %v1891
        %v2004 = vpack.c.bf16 %v1896, %v1892
        %v2005 = vpack.c.bf16 %v1897, %v1893
        %v2006 = vpack.c.bf16 %v1898, %v1894
        %v2007 = vpack.c.bf16 %v1903, %v1899
        %v2008 = vpack.c.bf16 %v1904, %v1900
        %v2009 = vpack.c.bf16 %v1905, %v1901
        %v2010 = vpack.c.bf16 %v1906, %v1902
        %v2011 = vpack.c.bf16 %v1911, %v1907
        %v2012 = vpack.c.bf16 %v1912, %v1908
        %v2013 = vpack.c.bf16 %v1913, %v1909
        %v2014 = vpack.c.bf16 %v1914, %v1910
        %v2015 = vpack.c.bf16 %v1919, %v1915
        %v2016 = vpack.c.bf16 %v1920, %v1916
        %v2017 = vpack.c.bf16 %v1921, %v1917
        %v2018 = vpack.c.bf16 %v1922, %v1918
        %v2019 = vpack.c.bf16 %v1927, %v1923
        %v2020 = vpack.c.bf16 %v1928, %v1924
        %v2021 = vpack.c.bf16 %v1929, %v1925
        %v2022 = vpack.c.bf16 %v1930, %v1926
        %v2023 = vpack.c.bf16 %v1935, %v1931
        %v2024 = vpack.c.bf16 %v1936, %v1932
        %v2025 = vpack.c.bf16 %v1937, %v1933
        %v2026 = vpack.c.bf16 %v1938, %v1934
        %v2027 = vpack.c.bf16 %v1943, %v1939
        %v2028 = vpack.c.bf16 %v1944, %v1940
        %v2029 = vpack.c.bf16 %v1945, %v1941
        %v2030 = vpack.c.bf16 %v1946, %v1942
        %v2031 = vpack.c.bf16 %v1951, %v1947
        %v2032 = vpack.c.bf16 %v1952, %v1948
        %v2033 = vpack.c.bf16 %v1953, %v1949
        %v2034 = vpack.c.bf16 %v1954, %v1950
        %v2035 = vpack.c.bf16 %v1959, %v1955
        %v2036 = vpack.c.bf16 %v1960, %v1956
        %v2037 = vpack.c.bf16 %v1961, %v1957
        %v2038 = vpack.c.bf16 %v1962, %v1958
        %v2039 = vpack.c.bf16 %v1967, %v1963
        %v2040 = vpack.c.bf16 %v1968, %v1964
        %v2041 = vpack.c.bf16 %v1969, %v1965
        %v2042 = vpack.c.bf16 %v1970, %v1966
        %v2043 = vpack.c.bf16 %v1975, %v1971
        %v2044 = vpack.c.bf16 %v1976, %v1972
        %v2045 = vpack.c.bf16 %v1977, %v1973
        %v2046 = vpack.c.bf16 %v1978, %v1974
        %v2047 = vpack.c.bf16 %v1983, %v1979
        %v2048 = vpack.c.bf16 %v1984, %v1980
        %v2049 = vpack.c.bf16 %v1985, %v1981
        %v2050 = vpack.c.bf16 %v1986, %v1982
        %v2052 = vlaneseq
        %v2053 = vshrl.u32 %v2052, 7
        %v2054 = vsub.s32 0, %v2053
        %v2055 = vrot.slane %v1773, %v2054
        %v2056 = vlaneseq
        %v2057 = vshrl.u32 %v2056, 7
        %v2058 = vsub.s32 1, %v2057
        %v2059 = vrot.slane %v1773, %v2058
        %v2060 = vlaneseq
        %v2061 = vshrl.u32 %v2060, 7
        %v2062 = vsub.s32 2, %v2061
        %v2063 = vrot.slane %v1773, %v2062
        %v2064 = vlaneseq
        %v2065 = vshrl.u32 %v2064, 7
        %v2066 = vsub.s32 3, %v2065
        %v2067 = vrot.slane %v1773, %v2066
        %2072 = vmatprep.subr.mxu0 0.0
        %2073 = vmatpush1.msra.mxu0 %v1789
        %2074 = vmatprep.subr.mxu0 0.0
        %2075 = vmatpush1.msra.mxu0 %v1788
        %2076 = vmatprep.subr.mxu0 0.0
        %2077 = vmatpush1.msra.mxu0 %v1787
        %2078 = vmatprep.subr.mxu0 0.0
        %2079 = vmatpush1.msra.mxu0 %v1786
        %2080 = vmatprep.subr.mxu0 0.0
        %2081 = vmatpush1.msra.mxu0 %v1785
        %2082 = vmatprep.subr.mxu0 0.0
        %2083 = vmatpush1.msra.mxu0 %v1784
        %2084 = vmatprep.subr.mxu0 0.0
        %2085 = vmatpush1.msra.mxu0 %v1783
        %2086 = vmatprep.subr.mxu0 0.0
        %2087 = vmatpush1.msra.mxu0 %v1782
        %2088 = vmatprep.subr.mxu0 0.0
        %2089 = vmatpush1.msra.mxu0 %v1781
        %2090 = vmatprep.subr.mxu0 0.0
        %2091 = vmatpush1.msra.mxu0 %v1780
        %2092 = vmatprep.subr.mxu0 0.0
        %2093 = vmatpush1.msra.mxu0 %v1779
        %2094 = vmatprep.subr.mxu0 0.0
        %2095 = vmatpush1.msra.mxu0 %v1778
        %2096 = vmatprep.subr.mxu0 0.0
        %2097 = vmatpush1.msra.mxu0 %v1777
        %2098 = vmatprep.subr.mxu0 0.0
        %2099 = vmatpush1.msra.mxu0 %v1776
        %2100 = vmatprep.subr.mxu0 0.0
        %2101 = vmatpush1.msra.mxu0 %v1775
        %2102 = vmatprep.subr.mxu0 0.0
        %2103 = vmatpush1.msra.mxu0 %v1774
        %2104 = vmatprep.subr.mxu0 0.0
        %2105 = vmatpush2.msra.mxu0 %v1805
        %2106 = vmatprep.subr.mxu0 0.0
        %2107 = vmatpush2.msra.mxu0 %v1804
        %2108 = vmatprep.subr.mxu0 0.0
        %2109 = vmatpush2.msra.mxu0 %v1803
        %2110 = vmatprep.subr.mxu0 0.0
        %2111 = vmatpush2.msra.mxu0 %v1802
        %2112 = vmatprep.subr.mxu0 0.0
        %2113 = vmatpush2.msra.mxu0 %v1801
        %2114 = vmatprep.subr.mxu0 0.0
        %2115 = vmatpush2.msra.mxu0 %v1800
        %2116 = vmatprep.subr.mxu0 0.0
        %2117 = vmatpush2.msra.mxu0 %v1799
        %2118 = vmatprep.subr.mxu0 0.0
        %2119 = vmatpush2.msra.mxu0 %v1798
        %2120 = vmatprep.subr.mxu0 0.0
        %2121 = vmatpush2.msra.mxu0 %v1797
        %2122 = vmatprep.subr.mxu0 0.0
        %2123 = vmatpush2.msra.mxu0 %v1796
        %2124 = vmatprep.subr.mxu0 0.0
        %2125 = vmatpush2.msra.mxu0 %v1795
        %2126 = vmatprep.subr.mxu0 0.0
        %2127 = vmatpush2.msra.mxu0 %v1794
        %2128 = vmatprep.subr.mxu0 0.0
        %2129 = vmatpush2.msra.mxu0 %v1793
        %2130 = vmatprep.subr.mxu0 0.0
        %2131 = vmatpush2.msra.mxu0 %v1792
        %2132 = vmatprep.subr.mxu0 0.0
        %2133 = vmatpush2.msra.mxu0 %v1791
        %2134 = vmatprep.subr.mxu0 0.0
        %2135 = vmatpush2.msra.mxu0 %v1790
        %2136 = vmatprep.mubr.f32.mxu0 %v2059
        %2137 = vmatmul.mubr.f32.gmra.mxu0 %v2055
        %v2138 = vpop.f32.mrf.mxu0
        %v2139 = vadd.f32 0.0, %v2138
        %v2140 = vpop.f32.mrf.mxu0
        %2141 = vdwg.mxu0
        %2142 = vmatprep.subr.mxu0 0.0
        %2143 = vmatpush1.msra.mxu0 %v1821
        %2144 = vmatprep.subr.mxu0 0.0
        %2145 = vmatpush1.msra.mxu0 %v1820
        %2146 = vmatprep.subr.mxu0 0.0
        %2147 = vmatpush1.msra.mxu0 %v1819
        %2148 = vmatprep.subr.mxu0 0.0
        %2149 = vmatpush1.msra.mxu0 %v1818
        %2150 = vmatprep.subr.mxu0 0.0
        %2151 = vmatpush1.msra.mxu0 %v1817
        %2152 = vmatprep.subr.mxu0 0.0
        %2153 = vmatpush1.msra.mxu0 %v1816
        %2154 = vmatprep.subr.mxu0 0.0
        %2155 = vmatpush1.msra.mxu0 %v1815
        %2156 = vmatprep.subr.mxu0 0.0
        %2157 = vmatpush1.msra.mxu0 %v1814
        %2158 = vmatprep.subr.mxu0 0.0
        %2159 = vmatpush1.msra.mxu0 %v1813
        %2160 = vmatprep.subr.mxu0 0.0
        %2161 = vmatpush1.msra.mxu0 %v1812
        %2162 = vmatprep.subr.mxu0 0.0
        %2163 = vmatpush1.msra.mxu0 %v1811
        %2164 = vmatprep.subr.mxu0 0.0
        %2165 = vmatpush1.msra.mxu0 %v1810
        %2166 = vmatprep.subr.mxu0 0.0
        %2167 = vmatpush1.msra.mxu0 %v1809
        %2168 = vmatprep.subr.mxu0 0.0
        %2169 = vmatpush1.msra.mxu0 %v1808
        %2170 = vmatprep.subr.mxu0 0.0
        %2171 = vmatpush1.msra.mxu0 %v1807
        %2172 = vmatprep.subr.mxu0 0.0
        %2173 = vmatpush1.msra.mxu0 %v1806
        %2174 = vmatprep.subr.mxu0 0.0
        %2175 = vmatpush2.msra.mxu0 %v1837
        %2176 = vmatprep.subr.mxu0 0.0
        %2177 = vmatpush2.msra.mxu0 %v1836
        %2178 = vmatprep.subr.mxu0 0.0
        %2179 = vmatpush2.msra.mxu0 %v1835
        %2180 = vmatprep.subr.mxu0 0.0
        %2181 = vmatpush2.msra.mxu0 %v1834
        %2182 = vmatprep.subr.mxu0 0.0
        %2183 = vmatpush2.msra.mxu0 %v1833
        %2184 = vmatprep.subr.mxu0 0.0
        %2185 = vmatpush2.msra.mxu0 %v1832
        %2186 = vmatprep.subr.mxu0 0.0
        %2187 = vmatpush2.msra.mxu0 %v1831
        %2188 = vmatprep.subr.mxu0 0.0
        %2189 = vmatpush2.msra.mxu0 %v1830
        %2190 = vmatprep.subr.mxu0 0.0
        %2191 = vmatpush2.msra.mxu0 %v1829
        %2192 = vmatprep.subr.mxu0 0.0
        %2193 = vmatpush2.msra.mxu0 %v1828
        %2194 = vmatprep.subr.mxu0 0.0
        %2195 = vmatpush2.msra.mxu0 %v1827
        %2196 = vmatprep.subr.mxu0 0.0
        %2197 = vmatpush2.msra.mxu0 %v1826
        %2198 = vmatprep.subr.mxu0 0.0
        %2199 = vmatpush2.msra.mxu0 %v1825
        %2200 = vmatprep.subr.mxu0 0.0
        %2201 = vmatpush2.msra.mxu0 %v1824
        %2202 = vmatprep.subr.mxu0 0.0
        %2203 = vmatpush2.msra.mxu0 %v1823
        %2204 = vmatprep.subr.mxu0 0.0
        %2205 = vmatpush2.msra.mxu0 %v1822
        %2206 = vmatprep.mubr.f32.mxu0 %v2067
        %2207 = vmatmul.mubr.f32.gmra.mxu0 %v2063
        %v2208 = vpop.f32.mrf.mxu0
        %v2209 = vadd.f32 %v2139, %v2208
        %v2210 = vpop.f32.mrf.mxu0
        %2211 = vdwg.mxu0
        %v2212 = vpack.c.bf16 %v1775, %v1774
        %v2213 = vpack.c.bf16 %v1777, %v1776
        %v2214 = vpack.c.bf16 %v1779, %v1778
        %v2215 = vpack.c.bf16 %v1781, %v1780
        %v2216 = vpack.c.bf16 %v1783, %v1782
        %v2217 = vpack.c.bf16 %v1785, %v1784
        %v2218 = vpack.c.bf16 %v1787, %v1786
        %v2219 = vpack.c.bf16 %v1789, %v1788
        %v2220 = vpack.c.bf16 %v1791, %v1790
        %v2221 = vpack.c.bf16 %v1793, %v1792
        %v2222 = vpack.c.bf16 %v1795, %v1794
        %v2223 = vpack.c.bf16 %v1797, %v1796
        %v2224 = vpack.c.bf16 %v1799, %v1798
        %v2225 = vpack.c.bf16 %v1801, %v1800
        %v2226 = vpack.c.bf16 %v1803, %v1802
        %v2227 = vpack.c.bf16 %v1805, %v1804
        %v2228 = vpack.c.bf16 %v1807, %v1806
        %v2229 = vpack.c.bf16 %v1809, %v1808
        %v2230 = vpack.c.bf16 %v1811, %v1810
        %v2231 = vpack.c.bf16 %v1813, %v1812
        %v2232 = vpack.c.bf16 %v1815, %v1814
        %v2233 = vpack.c.bf16 %v1817, %v1816
        %v2234 = vpack.c.bf16 %v1819, %v1818
        %v2235 = vpack.c.bf16 %v1821, %v1820
        %v2236 = vpack.c.bf16 %v1823, %v1822
        %v2237 = vpack.c.bf16 %v1825, %v1824
        %v2238 = vpack.c.bf16 %v1827, %v1826
        %v2239 = vpack.c.bf16 %v1829, %v1828
        %v2240 = vpack.c.bf16 %v1831, %v1830
        %v2241 = vpack.c.bf16 %v1833, %v1832
        %v2242 = vpack.c.bf16 %v1835, %v1834
        %v2243 = vpack.c.bf16 %v1837, %v1836
        %2244 = vmatprep.subr.bf16.mxu0 0
        %2245 = vmatpush1.bf16.msra.mxu0 %v2219
        %2246 = vmatprep.subr.bf16.mxu0 0
        %2247 = vmatpush1.bf16.msra.mxu0 %v2218
        %2248 = vmatprep.subr.bf16.mxu0 0
        %2249 = vmatpush1.bf16.msra.mxu0 %v2217
        %2250 = vmatprep.subr.bf16.mxu0 0
        %2251 = vmatpush1.bf16.msra.mxu0 %v2216
        %2252 = vmatprep.subr.bf16.mxu0 0
        %2253 = vmatpush1.bf16.msra.mxu0 %v2215
        %2254 = vmatprep.subr.bf16.mxu0 0
        %2255 = vmatpush1.bf16.msra.mxu0 %v2214
        %2256 = vmatprep.subr.bf16.mxu0 0
        %2257 = vmatpush1.bf16.msra.mxu0 %v2213
        %2258 = vmatprep.subr.bf16.mxu0 0
        %2259 = vmatpush1.bf16.msra.mxu0 %v2212
        %2260 = vmatprep.subr.bf16.mxu0 0
        %2261 = vmatpush2.bf16.msra.mxu0 %v2227
        %2262 = vmatprep.subr.bf16.mxu0 0
        %2263 = vmatpush2.bf16.msra.mxu0 %v2226
        %2264 = vmatprep.subr.bf16.mxu0 0
        %2265 = vmatpush2.bf16.msra.mxu0 %v2225
        %2266 = vmatprep.subr.bf16.mxu0 0
        %2267 = vmatpush2.bf16.msra.mxu0 %v2224
        %2268 = vmatprep.subr.bf16.mxu0 0
        %2269 = vmatpush2.bf16.msra.mxu0 %v2223
        %2270 = vmatprep.subr.bf16.mxu0 0
        %2271 = vmatpush2.bf16.msra.mxu0 %v2222
        %2272 = vmatprep.subr.bf16.mxu0 0
        %2273 = vmatpush2.bf16.msra.mxu0 %v2221
        %2274 = vmatprep.subr.bf16.mxu0 0
        %2275 = vmatpush2.bf16.msra.mxu0 %v2220
        %2276 = vmatprep.mubr.bf16.mxu0 %v1988
        %2277 = vmatmul.mubr.bf16.gmra.mxu0 %v1987
        %v2278 = vpop.f32.mrf.mxu0
        %v2279 = vadd.f32 0.0, %v2278
        %v2280 = vpop.f32.mrf.mxu0
        %v2281 = vpop.f32.mrf.mxu0
        %v2282 = vadd.f32 0.0, %v2281
        %v2283 = vpop.f32.mrf.mxu0
        %2284 = vmatprep.mubr.bf16.mxu0 %v1992
        %2285 = vmatmul.mubr.bf16.gmra.mxu0 %v1991
        %v2286 = vpop.f32.mrf.mxu0
        %v2287 = vadd.f32 0.0, %v2286
        %v2288 = vpop.f32.mrf.mxu0
        %v2289 = vpop.f32.mrf.mxu0
        %v2290 = vadd.f32 0.0, %v2289
        %v2291 = vpop.f32.mrf.mxu0
        %2292 = vmatprep.mubr.bf16.mxu0 %v1996
        %2293 = vmatmul.mubr.bf16.gmra.mxu0 %v1995
        %v2294 = vpop.f32.mrf.mxu0
        %v2295 = vadd.f32 0.0, %v2294
        %v2296 = vpop.f32.mrf.mxu0
        %v2297 = vpop.f32.mrf.mxu0
        %v2298 = vadd.f32 0.0, %v2297
        %v2299 = vpop.f32.mrf.mxu0
        %2300 = vmatprep.mubr.bf16.mxu0 %v2000
        %2301 = vmatmul.mubr.bf16.gmra.mxu0 %v1999
        %v2302 = vpop.f32.mrf.mxu0
        %v2303 = vadd.f32 0.0, %v2302
        %v2304 = vpop.f32.mrf.mxu0
        %v2305 = vpop.f32.mrf.mxu0
        %v2306 = vadd.f32 0.0, %v2305
        %v2307 = vpop.f32.mrf.mxu0
        %2308 = vmatprep.mubr.bf16.mxu0 %v2004
        %2309 = vmatmul.mubr.bf16.gmra.mxu0 %v2003
        %v2310 = vpop.f32.mrf.mxu0
        %v2311 = vadd.f32 0.0, %v2310
        %v2312 = vpop.f32.mrf.mxu0
        %v2313 = vpop.f32.mrf.mxu0
        %v2314 = vadd.f32 0.0, %v2313
        %v2315 = vpop.f32.mrf.mxu0
        %2316 = vmatprep.mubr.bf16.mxu0 %v2008
        %2317 = vmatmul.mubr.bf16.gmra.mxu0 %v2007
        %v2318 = vpop.f32.mrf.mxu0
        %v2319 = vadd.f32 0.0, %v2318
        %v2320 = vpop.f32.mrf.mxu0
        %v2321 = vpop.f32.mrf.mxu0
        %v2322 = vadd.f32 0.0, %v2321
        %v2323 = vpop.f32.mrf.mxu0
        %2324 = vmatprep.mubr.bf16.mxu0 %v2012
        %2325 = vmatmul.mubr.bf16.gmra.mxu0 %v2011
        %v2326 = vpop.f32.mrf.mxu0
        %v2327 = vadd.f32 0.0, %v2326
        %v2328 = vpop.f32.mrf.mxu0
        %v2329 = vpop.f32.mrf.mxu0
        %v2330 = vadd.f32 0.0, %v2329
        %v2331 = vpop.f32.mrf.mxu0
        %2332 = vmatprep.mubr.bf16.mxu0 %v2016
        %2333 = vmatmul.mubr.bf16.gmra.mxu0 %v2015
        %v2334 = vpop.f32.mrf.mxu0
        %v2335 = vadd.f32 0.0, %v2334
        %v2336 = vpop.f32.mrf.mxu0
        %v2337 = vpop.f32.mrf.mxu0
        %v2338 = vadd.f32 0.0, %v2337
        %v2339 = vpop.f32.mrf.mxu0
        %2340 = vmatprep.mubr.bf16.mxu0 %v2020
        %2341 = vmatmul.mubr.bf16.gmra.mxu0 %v2019
        %v2342 = vpop.f32.mrf.mxu0
        %v2343 = vadd.f32 0.0, %v2342
        %v2344 = vpop.f32.mrf.mxu0
        %v2345 = vpop.f32.mrf.mxu0
        %v2346 = vadd.f32 0.0, %v2345
        %v2347 = vpop.f32.mrf.mxu0
        %2348 = vmatprep.mubr.bf16.mxu0 %v2024
        %2349 = vmatmul.mubr.bf16.gmra.mxu0 %v2023
        %v2350 = vpop.f32.mrf.mxu0
        %v2351 = vadd.f32 0.0, %v2350
        %v2352 = vpop.f32.mrf.mxu0
        %v2353 = vpop.f32.mrf.mxu0
        %v2354 = vadd.f32 0.0, %v2353
        %v2355 = vpop.f32.mrf.mxu0
        %2356 = vmatprep.mubr.bf16.mxu0 %v2028
        %2357 = vmatmul.mubr.bf16.gmra.mxu0 %v2027
        %v2358 = vpop.f32.mrf.mxu0
        %v2359 = vadd.f32 0.0, %v2358
        %v2360 = vpop.f32.mrf.mxu0
        %v2361 = vpop.f32.mrf.mxu0
        %v2362 = vadd.f32 0.0, %v2361
        %v2363 = vpop.f32.mrf.mxu0
        %2364 = vmatprep.mubr.bf16.mxu0 %v2032
        %2365 = vmatmul.mubr.bf16.gmra.mxu0 %v2031
        %v2366 = vpop.f32.mrf.mxu0
        %v2367 = vadd.f32 0.0, %v2366
        %v2368 = vpop.f32.mrf.mxu0
        %v2369 = vpop.f32.mrf.mxu0
        %v2370 = vadd.f32 0.0, %v2369
        %v2371 = vpop.f32.mrf.mxu0
        %2372 = vmatprep.mubr.bf16.mxu0 %v2036
        %2373 = vmatmul.mubr.bf16.gmra.mxu0 %v2035
        %v2374 = vpop.f32.mrf.mxu0
        %v2375 = vadd.f32 0.0, %v2374
        %v2376 = vpop.f32.mrf.mxu0
        %v2377 = vpop.f32.mrf.mxu0
        %v2378 = vadd.f32 0.0, %v2377
        %v2379 = vpop.f32.mrf.mxu0
        %2380 = vmatprep.mubr.bf16.mxu0 %v2040
        %2381 = vmatmul.mubr.bf16.gmra.mxu0 %v2039
        %v2382 = vpop.f32.mrf.mxu0
        %v2383 = vadd.f32 0.0, %v2382
        %v2384 = vpop.f32.mrf.mxu0
        %v2385 = vpop.f32.mrf.mxu0
        %v2386 = vadd.f32 0.0, %v2385
        %v2387 = vpop.f32.mrf.mxu0
        %2388 = vmatprep.mubr.bf16.mxu0 %v2044
        %2389 = vmatmul.mubr.bf16.gmra.mxu0 %v2043
        %v2390 = vpop.f32.mrf.mxu0
        %v2391 = vadd.f32 0.0, %v2390
        %v2392 = vpop.f32.mrf.mxu0
        %v2393 = vpop.f32.mrf.mxu0
        %v2394 = vadd.f32 0.0, %v2393
        %v2395 = vpop.f32.mrf.mxu0
        %2396 = vmatprep.mubr.bf16.mxu0 %v2048
        %2397 = vmatmul.mubr.bf16.gmra.mxu0 %v2047
        %v2398 = vpop.f32.mrf.mxu0
        %v2399 = vadd.f32 0.0, %v2398
        %v2400 = vpop.f32.mrf.mxu0
        %v2401 = vpop.f32.mrf.mxu0
        %v2402 = vadd.f32 0.0, %v2401
        %v2403 = vpop.f32.mrf.mxu0
        %2404 = vdwg.mxu0
        %2405 = vmatprep.subr.bf16.mxu0 0
        %2406 = vmatpush1.bf16.msra.mxu0 %v2235
        %2407 = vmatprep.subr.bf16.mxu0 0
        %2408 = vmatpush1.bf16.msra.mxu0 %v2234
        %2409 = vmatprep.subr.bf16.mxu0 0
        %2410 = vmatpush1.bf16.msra.mxu0 %v2233
        %2411 = vmatprep.subr.bf16.mxu0 0
        %2412 = vmatpush1.bf16.msra.mxu0 %v2232
        %2413 = vmatprep.subr.bf16.mxu0 0
        %2414 = vmatpush1.bf16.msra.mxu0 %v2231
        %2415 = vmatprep.subr.bf16.mxu0 0
        %2416 = vmatpush1.bf16.msra.mxu0 %v2230
        %2417 = vmatprep.subr.bf16.mxu0 0
        %2418 = vmatpush1.bf16.msra.mxu0 %v2229
        %2419 = vmatprep.subr.bf16.mxu0 0
        %2420 = vmatpush1.bf16.msra.mxu0 %v2228
        %2421 = vmatprep.subr.bf16.mxu0 0
        %2422 = vmatpush2.bf16.msra.mxu0 %v2243
        %2423 = vmatprep.subr.bf16.mxu0 0
        %2424 = vmatpush2.bf16.msra.mxu0 %v2242
        %2425 = vmatprep.subr.bf16.mxu0 0
        %2426 = vmatpush2.bf16.msra.mxu0 %v2241
        %2427 = vmatprep.subr.bf16.mxu0 0
        %2428 = vmatpush2.bf16.msra.mxu0 %v2240
        %2429 = vmatprep.subr.bf16.mxu0 0
        %2430 = vmatpush2.bf16.msra.mxu0 %v2239
        %2431 = vmatprep.subr.bf16.mxu0 0
        %2432 = vmatpush2.bf16.msra.mxu0 %v2238
        %2433 = vmatprep.subr.bf16.mxu0 0
        %2434 = vmatpush2.bf16.msra.mxu0 %v2237
        %2435 = vmatprep.subr.bf16.mxu0 0
        %2436 = vmatpush2.bf16.msra.mxu0 %v2236
        %2437 = vmatprep.mubr.bf16.mxu0 %v1990
        %2438 = vmatmul.mubr.bf16.gmra.mxu0 %v1989
        %v2439 = vpop.f32.mrf.mxu0
        %v2440 = vadd.f32 %v2279, %v2439
        %v2441 = vpop.f32.mrf.mxu0
        %v2442 = vpop.f32.mrf.mxu0
        %v2443 = vadd.f32 %v2282, %v2442
        %v2444 = vpop.f32.mrf.mxu0
        %2445 = vmatprep.mubr.bf16.mxu0 %v1994
        %2446 = vmatmul.mubr.bf16.gmra.mxu0 %v1993
        %v2447 = vpop.f32.mrf.mxu0
        %v2448 = vadd.f32 %v2287, %v2447
        %v2449 = vpop.f32.mrf.mxu0
        %v2450 = vpop.f32.mrf.mxu0
        %v2451 = vadd.f32 %v2290, %v2450
        %v2452 = vpop.f32.mrf.mxu0
        %2453 = vmatprep.mubr.bf16.mxu0 %v1998
        %2454 = vmatmul.mubr.bf16.gmra.mxu0 %v1997
        %v2455 = vpop.f32.mrf.mxu0
        %v2456 = vadd.f32 %v2295, %v2455
        %v2457 = vpop.f32.mrf.mxu0
        %v2458 = vpop.f32.mrf.mxu0
        %v2459 = vadd.f32 %v2298, %v2458
        %v2460 = vpop.f32.mrf.mxu0
        %2461 = vmatprep.mubr.bf16.mxu0 %v2002
        %2462 = vmatmul.mubr.bf16.gmra.mxu0 %v2001
        %v2463 = vpop.f32.mrf.mxu0
        %v2464 = vadd.f32 %v2303, %v2463
        %v2465 = vpop.f32.mrf.mxu0
        %v2466 = vpop.f32.mrf.mxu0
        %v2467 = vadd.f32 %v2306, %v2466
        %v2468 = vpop.f32.mrf.mxu0
        %2469 = vmatprep.mubr.bf16.mxu0 %v2006
        %2470 = vmatmul.mubr.bf16.gmra.mxu0 %v2005
        %v2471 = vpop.f32.mrf.mxu0
        %v2472 = vadd.f32 %v2311, %v2471
        %v2473 = vpop.f32.mrf.mxu0
        %v2474 = vpop.f32.mrf.mxu0
        %v2475 = vadd.f32 %v2314, %v2474
        %v2476 = vpop.f32.mrf.mxu0
        %2477 = vmatprep.mubr.bf16.mxu0 %v2010
        %2478 = vmatmul.mubr.bf16.gmra.mxu0 %v2009
        %v2479 = vpop.f32.mrf.mxu0
        %v2480 = vadd.f32 %v2319, %v2479
        %v2481 = vpop.f32.mrf.mxu0
        %v2482 = vpop.f32.mrf.mxu0
        %v2483 = vadd.f32 %v2322, %v2482
        %v2484 = vpop.f32.mrf.mxu0
        %2485 = vmatprep.mubr.bf16.mxu0 %v2014
        %2486 = vmatmul.mubr.bf16.gmra.mxu0 %v2013
        %v2487 = vpop.f32.mrf.mxu0
        %v2488 = vadd.f32 %v2327, %v2487
        %v2489 = vpop.f32.mrf.mxu0
        %v2490 = vpop.f32.mrf.mxu0
        %v2491 = vadd.f32 %v2330, %v2490
        %v2492 = vpop.f32.mrf.mxu0
        %2493 = vmatprep.mubr.bf16.mxu0 %v2018
        %2494 = vmatmul.mubr.bf16.gmra.mxu0 %v2017
        %v2495 = vpop.f32.mrf.mxu0
        %v2496 = vadd.f32 %v2335, %v2495
        %v2497 = vpop.f32.mrf.mxu0
        %v2498 = vpop.f32.mrf.mxu0
        %v2499 = vadd.f32 %v2338, %v2498
        %v2500 = vpop.f32.mrf.mxu0
        %2501 = vmatprep.mubr.bf16.mxu0 %v2022
        %2502 = vmatmul.mubr.bf16.gmra.mxu0 %v2021
        %v2503 = vpop.f32.mrf.mxu0
        %v2504 = vadd.f32 %v2343, %v2503
        %v2505 = vpop.f32.mrf.mxu0
        %v2506 = vpop.f32.mrf.mxu0
        %v2507 = vadd.f32 %v2346, %v2506
        %v2508 = vpop.f32.mrf.mxu0
        %2509 = vmatprep.mubr.bf16.mxu0 %v2026
        %2510 = vmatmul.mubr.bf16.gmra.mxu0 %v2025
        %v2511 = vpop.f32.mrf.mxu0
        %v2512 = vadd.f32 %v2351, %v2511
        %v2513 = vpop.f32.mrf.mxu0
        %v2514 = vpop.f32.mrf.mxu0
        %v2515 = vadd.f32 %v2354, %v2514
        %v2516 = vpop.f32.mrf.mxu0
        %2517 = vmatprep.mubr.bf16.mxu0 %v2030
        %2518 = vmatmul.mubr.bf16.gmra.mxu0 %v2029
        %v2519 = vpop.f32.mrf.mxu0
        %v2520 = vadd.f32 %v2359, %v2519
        %v2521 = vpop.f32.mrf.mxu0
        %v2522 = vpop.f32.mrf.mxu0
        %v2523 = vadd.f32 %v2362, %v2522
        %v2524 = vpop.f32.mrf.mxu0
        %2525 = vmatprep.mubr.bf16.mxu0 %v2034
        %2526 = vmatmul.mubr.bf16.gmra.mxu0 %v2033
        %v2527 = vpop.f32.mrf.mxu0
        %v2528 = vadd.f32 %v2367, %v2527
        %v2529 = vpop.f32.mrf.mxu0
        %v2530 = vpop.f32.mrf.mxu0
        %v2531 = vadd.f32 %v2370, %v2530
        %v2532 = vpop.f32.mrf.mxu0
        %2533 = vmatprep.mubr.bf16.mxu0 %v2038
        %2534 = vmatmul.mubr.bf16.gmra.mxu0 %v2037
        %v2535 = vpop.f32.mrf.mxu0
        %v2536 = vadd.f32 %v2375, %v2535
        %v2537 = vpop.f32.mrf.mxu0
        %v2538 = vpop.f32.mrf.mxu0
        %v2539 = vadd.f32 %v2378, %v2538
        %v2540 = vpop.f32.mrf.mxu0
        %2541 = vmatprep.mubr.bf16.mxu0 %v2042
        %2542 = vmatmul.mubr.bf16.gmra.mxu0 %v2041
        %v2543 = vpop.f32.mrf.mxu0
        %v2544 = vadd.f32 %v2383, %v2543
        %v2545 = vpop.f32.mrf.mxu0
        %v2546 = vpop.f32.mrf.mxu0
        %v2547 = vadd.f32 %v2386, %v2546
        %v2548 = vpop.f32.mrf.mxu0
        %2549 = vmatprep.mubr.bf16.mxu0 %v2046
        %2550 = vmatmul.mubr.bf16.gmra.mxu0 %v2045
        %v2551 = vpop.f32.mrf.mxu0
        %v2552 = vadd.f32 %v2391, %v2551
        %v2553 = vpop.f32.mrf.mxu0
        %v2554 = vpop.f32.mrf.mxu0
        %v2555 = vadd.f32 %v2394, %v2554
        %v2556 = vpop.f32.mrf.mxu0
        %2557 = vmatprep.mubr.bf16.mxu0 %v2050
        %2558 = vmatmul.mubr.bf16.gmra.mxu0 %v2049
        %v2559 = vpop.f32.mrf.mxu0
        %v2560 = vadd.f32 %v2399, %v2559
        %v2561 = vpop.f32.mrf.mxu0
        %v2562 = vpop.f32.mrf.mxu0
        %v2563 = vadd.f32 %v2402, %v2562
        %v2564 = vpop.f32.mrf.mxu0
        %2565 = vdwg.mxu0
        %v2566 = vlaneseq
        %v2567 = vshrl.u32 %v2566, 7
        %v2568 = vsub.s32 0, %v2567
        %v2569 = vrot.slane %v2209, %v2568
        %v2570 = vadd.f32 %v2440, %v2569
        %v2571 = vadd.f32 %v2443, %v2569
        %v2572 = vadd.f32 %v2448, %v2569
        %v2573 = vadd.f32 %v2451, %v2569
        %v2574 = vadd.f32 %v2456, %v2569
        %v2575 = vadd.f32 %v2459, %v2569
        %v2576 = vadd.f32 %v2464, %v2569
        %v2577 = vadd.f32 %v2467, %v2569
        %v2578 = vadd.f32 %v2472, %v2569
        %v2579 = vadd.f32 %v2475, %v2569
        %v2580 = vadd.f32 %v2480, %v2569
        %v2581 = vadd.f32 %v2483, %v2569
        %v2582 = vadd.f32 %v2488, %v2569
        %v2583 = vadd.f32 %v2491, %v2569
        %v2584 = vadd.f32 %v2496, %v2569
        %v2585 = vadd.f32 %v2499, %v2569
        %v2586 = vadd.f32 %v2504, %v2569
        %v2587 = vadd.f32 %v2507, %v2569
        %v2588 = vadd.f32 %v2512, %v2569
        %v2589 = vadd.f32 %v2515, %v2569
        %v2590 = vadd.f32 %v2520, %v2569
        %v2591 = vadd.f32 %v2523, %v2569
        %v2592 = vadd.f32 %v2528, %v2569
        %v2593 = vadd.f32 %v2531, %v2569
        %v2594 = vadd.f32 %v2536, %v2569
        %v2595 = vadd.f32 %v2539, %v2569
        %v2596 = vadd.f32 %v2544, %v2569
        %v2597 = vadd.f32 %v2547, %v2569
        %v2598 = vadd.f32 %v2552, %v2569
        %v2599 = vadd.f32 %v2555, %v2569
        %v2600 = vadd.f32 %v2560, %v2569
        %v2601 = vadd.f32 %v2563, %v2569
        %v2602 = vxor.u32 %v2570, 2147483648
        %v2603 = vxor.u32 %v2571, 2147483648
        %v2604 = vxor.u32 %v2572, 2147483648
        %v2605 = vxor.u32 %v2573, 2147483648
        %v2606 = vxor.u32 %v2574, 2147483648
        %v2607 = vxor.u32 %v2575, 2147483648
        %v2608 = vxor.u32 %v2576, 2147483648
        %v2609 = vxor.u32 %v2577, 2147483648
        %v2610 = vxor.u32 %v2578, 2147483648
        %v2611 = vxor.u32 %v2579, 2147483648
        %v2612 = vxor.u32 %v2580, 2147483648
        %v2613 = vxor.u32 %v2581, 2147483648
        %v2614 = vxor.u32 %v2582, 2147483648
        %v2615 = vxor.u32 %v2583, 2147483648
        %v2616 = vxor.u32 %v2584, 2147483648
        %v2617 = vxor.u32 %v2585, 2147483648
        %v2618 = vxor.u32 %v2586, 2147483648
        %v2619 = vxor.u32 %v2587, 2147483648
        %v2620 = vxor.u32 %v2588, 2147483648
        %v2621 = vxor.u32 %v2589, 2147483648
        %v2622 = vxor.u32 %v2590, 2147483648
        %v2623 = vxor.u32 %v2591, 2147483648
        %v2624 = vxor.u32 %v2592, 2147483648
        %v2625 = vxor.u32 %v2593, 2147483648
        %v2626 = vxor.u32 %v2594, 2147483648
        %v2627 = vxor.u32 %v2595, 2147483648
        %v2628 = vxor.u32 %v2596, 2147483648
        %v2629 = vxor.u32 %v2597, 2147483648
        %v2630 = vxor.u32 %v2598, 2147483648
        %v2631 = vxor.u32 %v2599, 2147483648
        %v2632 = vxor.u32 %v2600, 2147483648
        %v2633 = vxor.u32 %v2601, 2147483648
        %v2634 = vmul.f32 %v2602, 1.442695
        %v2635 = vpow.pop %v2634
        %v2636 = vmul.f32 %v2603, 1.442695
        %v2637 = vpow.pop %v2636
        %v2638 = vmul.f32 %v2604, 1.442695
        %v2639 = vpow.pop %v2638
        %v2640 = vmul.f32 %v2605, 1.442695
        %v2641 = vpow.pop %v2640
        %v2642 = vmul.f32 %v2606, 1.442695
        %v2643 = vpow.pop %v2642
        %v2644 = vmul.f32 %v2607, 1.442695
        %v2645 = vpow.pop %v2644
        %v2646 = vmul.f32 %v2608, 1.442695
        %v2647 = vpow.pop %v2646
        %v2648 = vmul.f32 %v2609, 1.442695
        %v2649 = vpow.pop %v2648
        %v2650 = vmul.f32 %v2610, 1.442695
        %v2651 = vpow.pop %v2650
        %v2652 = vmul.f32 %v2611, 1.442695
        %v2653 = vpow.pop %v2652
        %v2654 = vmul.f32 %v2612, 1.442695
        %v2655 = vpow.pop %v2654
        %v2656 = vmul.f32 %v2613, 1.442695
        %v2657 = vpow.pop %v2656
        %v2658 = vmul.f32 %v2614, 1.442695
        %v2659 = vpow.pop %v2658
        %v2660 = vmul.f32 %v2615, 1.442695
        %v2661 = vpow.pop %v2660
        %v2662 = vmul.f32 %v2616, 1.442695
        %v2663 = vpow.pop %v2662
        %v2664 = vmul.f32 %v2617, 1.442695
        %v2665 = vpow.pop %v2664
        %v2666 = vmul.f32 %v2618, 1.442695
        %v2667 = vpow.pop %v2666
        %v2668 = vmul.f32 %v2619, 1.442695
        %v2669 = vpow.pop %v2668
        %v2670 = vmul.f32 %v2620, 1.442695
        %v2671 = vpow.pop %v2670
        %v2672 = vmul.f32 %v2621, 1.442695
        %v2673 = vpow.pop %v2672
        %v2674 = vmul.f32 %v2622, 1.442695
        %v2675 = vpow.pop %v2674
        %v2676 = vmul.f32 %v2623, 1.442695
        %v2677 = vpow.pop %v2676
        %v2678 = vmul.f32 %v2624, 1.442695
        %v2679 = vpow.pop %v2678
        %v2680 = vmul.f32 %v2625, 1.442695
        %v2681 = vpow.pop %v2680
        %v2682 = vmul.f32 %v2626, 1.442695
        %v2683 = vpow.pop %v2682
        %v2684 = vmul.f32 %v2627, 1.442695
        %v2685 = vpow.pop %v2684
        %v2686 = vmul.f32 %v2628, 1.442695
        %v2687 = vpow.pop %v2686
        %v2688 = vmul.f32 %v2629, 1.442695
        %v2689 = vpow.pop %v2688
        %v2690 = vmul.f32 %v2630, 1.442695
        %v2691 = vpow.pop %v2690
        %v2692 = vmul.f32 %v2631, 1.442695
        %v2693 = vpow.pop %v2692
        %v2694 = vmul.f32 %v2632, 1.442695
        %v2695 = vpow.pop %v2694
        %v2696 = vmul.f32 %v2633, 1.442695
        %v2697 = vpow.pop %v2696
        %v2698 = vadd.f32 %v2635, 1.0
        %v2699 = vadd.f32 %v2637, 1.0
        %v2700 = vadd.f32 %v2639, 1.0
        %v2701 = vadd.f32 %v2641, 1.0
        %v2702 = vadd.f32 %v2643, 1.0
        %v2703 = vadd.f32 %v2645, 1.0
        %v2704 = vadd.f32 %v2647, 1.0
        %v2705 = vadd.f32 %v2649, 1.0
        %v2706 = vadd.f32 %v2651, 1.0
        %v2707 = vadd.f32 %v2653, 1.0
        %v2708 = vadd.f32 %v2655, 1.0
        %v2709 = vadd.f32 %v2657, 1.0
        %v2710 = vadd.f32 %v2659, 1.0
        %v2711 = vadd.f32 %v2661, 1.0
        %v2712 = vadd.f32 %v2663, 1.0
        %v2713 = vadd.f32 %v2665, 1.0
        %v2714 = vadd.f32 %v2667, 1.0
        %v2715 = vadd.f32 %v2669, 1.0
        %v2716 = vadd.f32 %v2671, 1.0
        %v2717 = vadd.f32 %v2673, 1.0
        %v2718 = vadd.f32 %v2675, 1.0
        %v2719 = vadd.f32 %v2677, 1.0
        %v2720 = vadd.f32 %v2679, 1.0
        %v2721 = vadd.f32 %v2681, 1.0
        %v2722 = vadd.f32 %v2683, 1.0
        %v2723 = vadd.f32 %v2685, 1.0
        %v2724 = vadd.f32 %v2687, 1.0
        %v2725 = vadd.f32 %v2689, 1.0
        %v2726 = vadd.f32 %v2691, 1.0
        %v2727 = vadd.f32 %v2693, 1.0
        %v2728 = vadd.f32 %v2695, 1.0
        %v2729 = vadd.f32 %v2697, 1.0
        %v2730 = vrcp.pop %v2698
        %v2731 = vmul.f32 1.0, %v2730
        %v2732 = vrcp.pop %v2699
        %v2733 = vmul.f32 1.0, %v2732
        %v2734 = vrcp.pop %v2700
        %v2735 = vmul.f32 1.0, %v2734
        %v2736 = vrcp.pop %v2701
        %v2737 = vmul.f32 1.0, %v2736
        %v2738 = vrcp.pop %v2702
        %v2739 = vmul.f32 1.0, %v2738
        %v2740 = vrcp.pop %v2703
        %v2741 = vmul.f32 1.0, %v2740
        %v2742 = vrcp.pop %v2704
        %v2743 = vmul.f32 1.0, %v2742
        %v2744 = vrcp.pop %v2705
        %v2745 = vmul.f32 1.0, %v2744
        %v2746 = vrcp.pop %v2706
        %v2747 = vmul.f32 1.0, %v2746
        %v2748 = vrcp.pop %v2707
        %v2749 = vmul.f32 1.0, %v2748
        %v2750 = vrcp.pop %v2708
        %v2751 = vmul.f32 1.0, %v2750
        %v2752 = vrcp.pop %v2709
        %v2753 = vmul.f32 1.0, %v2752
        %v2754 = vrcp.pop %v2710
        %v2755 = vmul.f32 1.0, %v2754
        %v2756 = vrcp.pop %v2711
        %v2757 = vmul.f32 1.0, %v2756
        %v2758 = vrcp.pop %v2712
        %v2759 = vmul.f32 1.0, %v2758
        %v2760 = vrcp.pop %v2713
        %v2761 = vmul.f32 1.0, %v2760
        %v2762 = vrcp.pop %v2714
        %v2763 = vmul.f32 1.0, %v2762
        %v2764 = vrcp.pop %v2715
        %v2765 = vmul.f32 1.0, %v2764
        %v2766 = vrcp.pop %v2716
        %v2767 = vmul.f32 1.0, %v2766
        %v2768 = vrcp.pop %v2717
        %v2769 = vmul.f32 1.0, %v2768
        %v2770 = vrcp.pop %v2718
        %v2771 = vmul.f32 1.0, %v2770
        %v2772 = vrcp.pop %v2719
        %v2773 = vmul.f32 1.0, %v2772
        %v2774 = vrcp.pop %v2720
        %v2775 = vmul.f32 1.0, %v2774
        %v2776 = vrcp.pop %v2721
        %v2777 = vmul.f32 1.0, %v2776
        %v2778 = vrcp.pop %v2722
        %v2779 = vmul.f32 1.0, %v2778
        %v2780 = vrcp.pop %v2723
        %v2781 = vmul.f32 1.0, %v2780
        %v2782 = vrcp.pop %v2724
        %v2783 = vmul.f32 1.0, %v2782
        %v2784 = vrcp.pop %v2725
        %v2785 = vmul.f32 1.0, %v2784
        %v2786 = vrcp.pop %v2726
        %v2787 = vmul.f32 1.0, %v2786
        %v2788 = vrcp.pop %v2727
        %v2789 = vmul.f32 1.0, %v2788
        %v2790 = vrcp.pop %v2728
        %v2791 = vmul.f32 1.0, %v2790
        %v2792 = vrcp.pop %v2729
        %v2793 = vmul.f32 1.0, %v2792
        %v2794 = vld [vmem:[%s411] sm:$0xff]
        %v2795 = vld [vmem:[%s411 + $0x8] sm:$0xff]
        %v2796 = vld [vmem:[%s411 + $0x10] sm:$0xff]
        %v2797 = vld [vmem:[%s411 + $0x18] sm:$0xff]
        %v2798 = vld [vmem:[%s411 + $0x20] sm:$0xff]
        %v2799 = vld [vmem:[%s411 + $0x28] sm:$0xff]
        %v2800 = vld [vmem:[%s411 + $0x30] sm:$0xff]
        %v2801 = vld [vmem:[%s411 + $0x38] sm:$0xff]
        %v2802 = vld [vmem:[%s411 + $0x40] sm:$0xff]
        %v2803 = vld [vmem:[%s411 + $0x48] sm:$0xff]
        %v2804 = vld [vmem:[%s411 + $0x50] sm:$0xff]
        %v2805 = vld [vmem:[%s411 + $0x58] sm:$0xff]
        %v2806 = vld [vmem:[%s411 + $0x60] sm:$0xff]
        %v2807 = vld [vmem:[%s411 + $0x68] sm:$0xff]
        %v2808 = vld [vmem:[%s411 + $0x70] sm:$0xff]
        %v2809 = vld [vmem:[%s411 + $0x78] sm:$0xff]
        %v2810 = vld [vmem:[%s411 + $0x80] sm:$0xff]
        %v2811 = vld [vmem:[%s411 + $0x88] sm:$0xff]
        %v2812 = vld [vmem:[%s411 + $0x90] sm:$0xff]
        %v2813 = vld [vmem:[%s411 + $0x98] sm:$0xff]
        %v2814 = vld [vmem:[%s411 + $0xa0] sm:$0xff]
        %v2815 = vld [vmem:[%s411 + $0xa8] sm:$0xff]
        %v2816 = vld [vmem:[%s411 + $0xb0] sm:$0xff]
        %v2817 = vld [vmem:[%s411 + $0xb8] sm:$0xff]
        %v2818 = vld [vmem:[%s411 + $0xc0] sm:$0xff]
        %v2819 = vld [vmem:[%s411 + $0xc8] sm:$0xff]
        %v2820 = vld [vmem:[%s411 + $0xd0] sm:$0xff]
        %v2821 = vld [vmem:[%s411 + $0xd8] sm:$0xff]
        %v2822 = vld [vmem:[%s411 + $0xe0] sm:$0xff]
        %v2823 = vld [vmem:[%s411 + $0xe8] sm:$0xff]
        %v2824 = vld [vmem:[%s411 + $0xf0] sm:$0xff]
        %v2825 = vld [vmem:[%s411 + $0xf8] sm:$0xff]
        %2827 = vset.pattern.permute.xlu0 0
        %2828 = vperm.xlu0 %2827, %v2794
        %v2829 = vpop.permute.xlu0 %2828
        %2832 = vset.pattern.permute.xlu0 0
        %2833 = vperm.xlu0 %2832, %v2795
        %v2834 = vpop.permute.xlu0 %2833
        %2837 = vset.pattern.permute.xlu0 0
        %2838 = vperm.xlu0 %2837, %v2796
        %v2839 = vpop.permute.xlu0 %2838
        %2842 = vset.pattern.permute.xlu0 0
        %2843 = vperm.xlu0 %2842, %v2797
        %v2844 = vpop.permute.xlu0 %2843
        %2847 = vset.pattern.permute.xlu0 0
        %2848 = vperm.xlu0 %2847, %v2798
        %v2849 = vpop.permute.xlu0 %2848
        %2852 = vset.pattern.permute.xlu0 0
        %2853 = vperm.xlu0 %2852, %v2799
        %v2854 = vpop.permute.xlu0 %2853
        %2857 = vset.pattern.permute.xlu0 0
        %2858 = vperm.xlu0 %2857, %v2800
        %v2859 = vpop.permute.xlu0 %2858
        %2862 = vset.pattern.permute.xlu0 0
        %2863 = vperm.xlu0 %2862, %v2801
        %v2864 = vpop.permute.xlu0 %2863
        %2867 = vset.pattern.permute.xlu0 0
        %2868 = vperm.xlu0 %2867, %v2802
        %v2869 = vpop.permute.xlu0 %2868
        %2872 = vset.pattern.permute.xlu0 0
        %2873 = vperm.xlu0 %2872, %v2803
        %v2874 = vpop.permute.xlu0 %2873
        %2877 = vset.pattern.permute.xlu0 0
        %2878 = vperm.xlu0 %2877, %v2804
        %v2879 = vpop.permute.xlu0 %2878
        %2882 = vset.pattern.permute.xlu0 0
        %2883 = vperm.xlu0 %2882, %v2805
        %v2884 = vpop.permute.xlu0 %2883
        %2887 = vset.pattern.permute.xlu0 0
        %2888 = vperm.xlu0 %2887, %v2806
        %v2889 = vpop.permute.xlu0 %2888
        %2892 = vset.pattern.permute.xlu0 0
        %2893 = vperm.xlu0 %2892, %v2807
        %v2894 = vpop.permute.xlu0 %2893
        %2897 = vset.pattern.permute.xlu0 0
        %2898 = vperm.xlu0 %2897, %v2808
        %v2899 = vpop.permute.xlu0 %2898
        %2902 = vset.pattern.permute.xlu0 0
        %2903 = vperm.xlu0 %2902, %v2809
        %v2904 = vpop.permute.xlu0 %2903
        %2907 = vset.pattern.permute.xlu0 0
        %2908 = vperm.xlu0 %2907, %v2810
        %v2909 = vpop.permute.xlu0 %2908
        %2912 = vset.pattern.permute.xlu0 0
        %2913 = vperm.xlu0 %2912, %v2811
        %v2914 = vpop.permute.xlu0 %2913
        %2917 = vset.pattern.permute.xlu0 0
        %2918 = vperm.xlu0 %2917, %v2812
        %v2919 = vpop.permute.xlu0 %2918
        %2922 = vset.pattern.permute.xlu0 0
        %2923 = vperm.xlu0 %2922, %v2813
        %v2924 = vpop.permute.xlu0 %2923
        %2927 = vset.pattern.permute.xlu0 0
        %2928 = vperm.xlu0 %2927, %v2814
        %v2929 = vpop.permute.xlu0 %2928
        %2932 = vset.pattern.permute.xlu0 0
        %2933 = vperm.xlu0 %2932, %v2815
        %v2934 = vpop.permute.xlu0 %2933
        %2937 = vset.pattern.permute.xlu0 0
        %2938 = vperm.xlu0 %2937, %v2816
        %v2939 = vpop.permute.xlu0 %2938
        %2942 = vset.pattern.permute.xlu0 0
        %2943 = vperm.xlu0 %2942, %v2817
        %v2944 = vpop.permute.xlu0 %2943
        %2947 = vset.pattern.permute.xlu0 0
        %2948 = vperm.xlu0 %2947, %v2818
        %v2949 = vpop.permute.xlu0 %2948
        %2952 = vset.pattern.permute.xlu0 0
        %2953 = vperm.xlu0 %2952, %v2819
        %v2954 = vpop.permute.xlu0 %2953
        %2957 = vset.pattern.permute.xlu0 0
        %2958 = vperm.xlu0 %2957, %v2820
        %v2959 = vpop.permute.xlu0 %2958
        %2962 = vset.pattern.permute.xlu0 0
        %2963 = vperm.xlu0 %2962, %v2821
        %v2964 = vpop.permute.xlu0 %2963
        %2967 = vset.pattern.permute.xlu0 0
        %2968 = vperm.xlu0 %2967, %v2822
        %v2969 = vpop.permute.xlu0 %2968
        %2972 = vset.pattern.permute.xlu0 0
        %2973 = vperm.xlu0 %2972, %v2823
        %v2974 = vpop.permute.xlu0 %2973
        %2977 = vset.pattern.permute.xlu0 0
        %2978 = vperm.xlu0 %2977, %v2824
        %v2979 = vpop.permute.xlu0 %2978
        %2982 = vset.pattern.permute.xlu0 0
        %2983 = vperm.xlu0 %2982, %v2825
        %v2984 = vpop.permute.xlu0 %2983
        %v2986 = vmul.f32 %v2731, %v2829
        %v2987 = vmul.f32 %v2733, %v2834
        %v2988 = vmul.f32 %v2735, %v2839
        %v2989 = vmul.f32 %v2737, %v2844
        %v2990 = vmul.f32 %v2739, %v2849
        %v2991 = vmul.f32 %v2741, %v2854
        %v2992 = vmul.f32 %v2743, %v2859
        %v2993 = vmul.f32 %v2745, %v2864
        %v2994 = vmul.f32 %v2747, %v2869
        %v2995 = vmul.f32 %v2749, %v2874
        %v2996 = vmul.f32 %v2751, %v2879
        %v2997 = vmul.f32 %v2753, %v2884
        %v2998 = vmul.f32 %v2755, %v2889
        %v2999 = vmul.f32 %v2757, %v2894
        %v3000 = vmul.f32 %v2759, %v2899
        %v3001 = vmul.f32 %v2761, %v2904
        %v3002 = vmul.f32 %v2763, %v2909
        %v3003 = vmul.f32 %v2765, %v2914
        %v3004 = vmul.f32 %v2767, %v2919
        %v3005 = vmul.f32 %v2769, %v2924
        %v3006 = vmul.f32 %v2771, %v2929
        %v3007 = vmul.f32 %v2773, %v2934
        %v3008 = vmul.f32 %v2775, %v2939
        %v3009 = vmul.f32 %v2777, %v2944
        %v3010 = vmul.f32 %v2779, %v2949
        %v3011 = vmul.f32 %v2781, %v2954
        %v3012 = vmul.f32 %v2783, %v2959
        %v3013 = vmul.f32 %v2785, %v2964
        %v3014 = vmul.f32 %v2787, %v2969
        %v3015 = vmul.f32 %v2789, %v2974
        %v3016 = vmul.f32 %v2791, %v2979
        %v3017 = vmul.f32 %v2793, %v2984
        %vm3018 = vcmask 64512
        %3019 = vst.msk [vmem:[%s416] sm:$0xff] %vm3018, %v2986
        %3020 = vst.msk [vmem:[%s416 + $0x8] sm:$0xff] %vm3018, %v2987
        %3021 = vst.msk [vmem:[%s416 + $0x10] sm:$0xff] %vm3018, %v2988
        %3022 = vst.msk [vmem:[%s416 + $0x18] sm:$0xff] %vm3018, %v2989
        %3023 = vst.msk [vmem:[%s416 + $0x20] sm:$0xff] %vm3018, %v2990
        %3024 = vst.msk [vmem:[%s416 + $0x28] sm:$0xff] %vm3018, %v2991
        %3025 = vst.msk [vmem:[%s416 + $0x30] sm:$0xff] %vm3018, %v2992
        %3026 = vst.msk [vmem:[%s416 + $0x38] sm:$0xff] %vm3018, %v2993
        %3027 = vst.msk [vmem:[%s416 + $0x40] sm:$0xff] %vm3018, %v2994
        %3028 = vst.msk [vmem:[%s416 + $0x48] sm:$0xff] %vm3018, %v2995
        %3029 = vst.msk [vmem:[%s416 + $0x50] sm:$0xff] %vm3018, %v2996
        %3030 = vst.msk [vmem:[%s416 + $0x58] sm:$0xff] %vm3018, %v2997
        %3031 = vst.msk [vmem:[%s416 + $0x60] sm:$0xff] %vm3018, %v2998
        %3032 = vst.msk [vmem:[%s416 + $0x68] sm:$0xff] %vm3018, %v2999
        %3033 = vst.msk [vmem:[%s416 + $0x70] sm:$0xff] %vm3018, %v3000
        %3034 = vst.msk [vmem:[%s416 + $0x78] sm:$0xff] %vm3018, %v3001
        %3035 = vst.msk [vmem:[%s416 + $0x80] sm:$0xff] %vm3018, %v3002
        %3036 = vst.msk [vmem:[%s416 + $0x88] sm:$0xff] %vm3018, %v3003
        %3037 = vst.msk [vmem:[%s416 + $0x90] sm:$0xff] %vm3018, %v3004
        %3038 = vst.msk [vmem:[%s416 + $0x98] sm:$0xff] %vm3018, %v3005
        %3039 = vst.msk [vmem:[%s416 + $0xa0] sm:$0xff] %vm3018, %v3006
        %3040 = vst.msk [vmem:[%s416 + $0xa8] sm:$0xff] %vm3018, %v3007
        %3041 = vst.msk [vmem:[%s416 + $0xb0] sm:$0xff] %vm3018, %v3008
        %3042 = vst.msk [vmem:[%s416 + $0xb8] sm:$0xff] %vm3018, %v3009
        %3043 = vst.msk [vmem:[%s416 + $0xc0] sm:$0xff] %vm3018, %v3010
        %3044 = vst.msk [vmem:[%s416 + $0xc8] sm:$0xff] %vm3018, %v3011
        %3045 = vst.msk [vmem:[%s416 + $0xd0] sm:$0xff] %vm3018, %v3012
        %3046 = vst.msk [vmem:[%s416 + $0xd8] sm:$0xff] %vm3018, %v3013
        %3047 = vst.msk [vmem:[%s416 + $0xe0] sm:$0xff] %vm3018, %v3014
        %3048 = vst.msk [vmem:[%s416 + $0xe8] sm:$0xff] %vm3018, %v3015
        %3049 = vst.msk [vmem:[%s416 + $0xf0] sm:$0xff] %vm3018, %v3016
        %3050 = vst.msk [vmem:[%s416 + $0xf8] sm:$0xff] %vm3018, %v3017
        %v3051 = vsel %vm3018, %v2986, 0.0
        %v3052 = vsel %vm3018, %v2987, 0.0
        %v3053 = vadd.f32 %v3051, %v3052
        %v3054 = vsel %vm3018, %v2988, 0.0
        %v3055 = vadd.f32 %v3053, %v3054
        %v3056 = vsel %vm3018, %v2989, 0.0
        %v3057 = vadd.f32 %v3055, %v3056
        %v3058 = vsel %vm3018, %v2990, 0.0
        %v3059 = vadd.f32 %v3057, %v3058
        %v3060 = vsel %vm3018, %v2991, 0.0
        %v3061 = vadd.f32 %v3059, %v3060
        %v3062 = vsel %vm3018, %v2992, 0.0
        %v3063 = vadd.f32 %v3061, %v3062
        %v3064 = vsel %vm3018, %v2993, 0.0
        %v3065 = vadd.f32 %v3063, %v3064
        %v3066 = vsel %vm3018, %v2994, 0.0
        %v3067 = vadd.f32 %v3065, %v3066
        %v3068 = vsel %vm3018, %v2995, 0.0
        %v3069 = vadd.f32 %v3067, %v3068
        %v3070 = vsel %vm3018, %v2996, 0.0
        %v3071 = vadd.f32 %v3069, %v3070
        %v3072 = vsel %vm3018, %v2997, 0.0
        %v3073 = vadd.f32 %v3071, %v3072
        %v3074 = vsel %vm3018, %v2998, 0.0
        %v3075 = vadd.f32 %v3073, %v3074
        %v3076 = vsel %vm3018, %v2999, 0.0
        %v3077 = vadd.f32 %v3075, %v3076
        %v3078 = vsel %vm3018, %v3000, 0.0
        %v3079 = vadd.f32 %v3077, %v3078
        %v3080 = vsel %vm3018, %v3001, 0.0
        %v3081 = vadd.f32 %v3079, %v3080
        %v3082 = vsel %vm3018, %v3002, 0.0
        %v3083 = vadd.f32 %v3081, %v3082
        %v3084 = vsel %vm3018, %v3003, 0.0
        %v3085 = vadd.f32 %v3083, %v3084
        %v3086 = vsel %vm3018, %v3004, 0.0
        %v3087 = vadd.f32 %v3085, %v3086
        %v3088 = vsel %vm3018, %v3005, 0.0
        %v3089 = vadd.f32 %v3087, %v3088
        %v3090 = vsel %vm3018, %v3006, 0.0
        %v3091 = vadd.f32 %v3089, %v3090
        %v3092 = vsel %vm3018, %v3007, 0.0
        %v3093 = vadd.f32 %v3091, %v3092
        %v3094 = vsel %vm3018, %v3008, 0.0
        %v3095 = vadd.f32 %v3093, %v3094
        %v3096 = vsel %vm3018, %v3009, 0.0
        %v3097 = vadd.f32 %v3095, %v3096
        %v3098 = vsel %vm3018, %v3010, 0.0
        %v3099 = vadd.f32 %v3097, %v3098
        %v3100 = vsel %vm3018, %v3011, 0.0
        %v3101 = vadd.f32 %v3099, %v3100
        %v3102 = vsel %vm3018, %v3012, 0.0
        %v3103 = vadd.f32 %v3101, %v3102
        %v3104 = vsel %vm3018, %v3013, 0.0
        %v3105 = vadd.f32 %v3103, %v3104
        %v3106 = vsel %vm3018, %v3014, 0.0
        %v3107 = vadd.f32 %v3105, %v3106
        %v3108 = vsel %vm3018, %v3015, 0.0
        %v3109 = vadd.f32 %v3107, %v3108
        %v3110 = vsel %vm3018, %v3016, 0.0
        %v3111 = vadd.f32 %v3109, %v3110
        %v3112 = vsel %vm3018, %v3017, 0.0
        %v3113 = vadd.f32 %v3111, %v3112
        %v3114 = vrot.slane %v3113, 4
        %v3115 = vadd.f32 %v3113, %v3114
        %v3116 = vrot.slane %v3115, 2
        %v3117 = vadd.f32 %v3115, %v3116
        %v3118 = vrot.slane %v3117, 1
        %v3119 = vadd.f32 %v3117, %v3118
        %vm3120 = vcmask 57344
        %3121 = vst.msk [vmem:[%s394] sm:$0x1] %vm3120, %v3119
        %s3122 = sand.u32 %s254, 1
        %s3123 = scalar_lea.sflag [#allocation3], %s3122
        %s3124 = sand.u32 %s254, 1
        %s3125 = scalar_lea.vmem [#allocation2], %s3124
        %p3126 = scmp.lt.s32.totalorder %s26, 1
        %s3127 = scalar_select %p3126, %s26, 1
        %s3128 = smul.addr %s3127, 32
        %s3129 = smul.addr %s3128, 8
        %s3130 = scalar_lea.vmem %s11, %s3129
        // Predicated region
        $region61: #{tpu_custom_call.1} parent=59 // pred_check
          %p3131 = pneg %p264
        $region62: #{tpu_custom_call.1} parent=59 // pred_check_branch
          %3133 = sbr.rel (%p3131) target = $region64
        $region63: #{tpu_custom_call.1} parent=59 // pred_region
          %s3135 = ssub.s32 16, 16
          %3136 = vsyncadd %s3123, %s3135
          %s3137 = smul.addr %s26, 16
          %s3138 = scalar_lea.hbm %s10, %s3137
          %s3140 = sshll.u32 %s3125, 4
          %s3141 = int_to_ptr.vmem [resolvable:$true] %s3140
          %3143 = dma.vmem_to_hbm [thread:$0]  %s3141, 16, %s3138, %s3123
        $region64: #{tpu_custom_call.1} parent=59 // pred_fallthru
          _
        // Predicated region
        $region65: #{tpu_custom_call.1} parent=59 // pred_check
          %p3144 = pneg %p290
        $region66: #{tpu_custom_call.1} parent=59 // pred_check_branch
          %3146 = sbr.rel (%p3144) target = $region68
        $region67: #{tpu_custom_call.1} parent=59 // pred_region
          _
        $region68: #{tpu_custom_call.1} parent=59 // pred_fallthru
          _
      $region60: #{tpu_custom_call.1} parent=5 // pred_fallthru
        _
      %p3147 = scmp.le.s32.totalorder 2, %s21
      // Predicated region
      $region69: #{tpu_custom_call.1} parent=5 // pred_check
        %p3148 = pneg %p3147
      $region70: #{tpu_custom_call.1} parent=5 // pred_check_branch
        %3150 = sbr.rel (%p3148) target = $region72
      $region71: #{tpu_custom_call.1} parent=5 // pred_region
        %s3151 = ssub.s32 %s21, 2
        // Predicated region
        $region73: #{tpu_custom_call.1} parent=71 // pred_check
          %p3152 = pneg %p270
        $region74: #{tpu_custom_call.1} parent=71 // pred_check_branch
          %3154 = sbr.rel (%p3152) target = $region76
        $region75: #{tpu_custom_call.1} parent=71 // pred_region
          %s3155 = sand.u32 %s255, 1
          %s3156 = scalar_lea.sflag [#allocation3], %s3155
          %s3157 = sand.u32 %s255, 1
          %s3158 = scalar_lea.vmem [#allocation2], %s3157
          %3159 = dma.done %s3156, 16
        $region76: #{tpu_custom_call.1} parent=71 // pred_fallthru
          _
        // Predicated region
        $region77: #{tpu_custom_call.1} parent=71 // pred_check
          %p3160 = pneg %p296
        $region78: #{tpu_custom_call.1} parent=71 // pred_check_branch
          %3162 = sbr.rel (%p3160) target = $region80
        $region79: #{tpu_custom_call.1} parent=71 // pred_region
          %p3163 = scmp.lt.s32.totalorder %s27, 1
          %s3164 = scalar_select %p3163, %s27, 1
          %s3165 = smul.addr %s3164, 32
          %s3166 = smul.addr %s3165, 8
          %s3167 = scalar_lea.vmem %s11, %s3166
        $region80: #{tpu_custom_call.1} parent=71 // pred_fallthru
          _
      $region72: #{tpu_custom_call.1} parent=5 // pred_fallthru
        _
    $region6: #{tpu_custom_call.1} parent=1 // loop_footer
      %s25 = sadd.s32 1, %s21
    $region7: #{tpu_custom_call.1} parent=1 // loop_footer_branch
      %20 = sbr.rel target = $region3
    $region8: #{tpu_custom_call.1} parent=1 // loop_exit
      _
    %3168 = vsyncpa [#allocation3], 1
    %s3169 = scalar_lea.sflag [#allocation3], 1
    %3170 = vsyncpa %s3169, 1

</llo_original>
